<compile_context>
chip_gen: v5e
topology: v5e:2x2
jax: 0.10.0
libtpu: 0.0.40
codegen_flags: <defaults>
</compile_context>

<pallas_src>
import math

import jax
import jax.numpy as jnp
from jax import lax
from jax.experimental import pallas as pl
from jax.experimental.pallas import tpu as pltpu

# ----------------------------- configuration (module defaults, small batch) -----------------------------
B = 2               # batch
INPUT_DIM = 7       # xt (action) dim
OUTPUT_DIM = 7      # predicted-noise dim
COND_DIM = 16       # conditioning dim
TIME_DIM = 64       # SinusoidalPosEmb output size (module default)
TE_HIDDEN = 128     # time_encoder MLP hidden (module: MLP(time_dim, [128], 128))
TE_OUT = 128        # time_encoder output (fixed by module)
HIDDEN_DIM = 256    # decoder hidden_dim (module default; multiple of 128 -> lane-dense)
NUM_BLOCKS = 3      # module default
XTC_PAD = 128       # zero-padded [xt|cond] lane width
OUT_PAD = 128       # zero-padded output lane width (sliced back to OUTPUT_DIM)
LN_EPS = 1e-5


# ----------------------------- in-kernel helpers -----------------------------
def _mish(x):
    # mish(x) = x * tanh(softplus(x)); numerically-stable softplus.
    sp = jnp.where(x > 20.0, x, jnp.log1p(jnp.exp(jnp.minimum(x, 20.0))))
    return x * jnp.tanh(sp)


# ----------------------------- the single fused kernel -----------------------------
def _idql_fused_kernel(t_ref, xtc_ref, freqs_ref,
                       te_w1c_ref, te_w1s_ref, te_b1_ref, te_w2_ref, te_b2_ref,
                       dw1t_ref, dw1x_ref, db1_ref,
                       ln_g_ref, ln_b_ref, bw1_ref, bb1_ref, bw2_ref, bb2_ref,
                       dw2_ref, db2_ref, o_ref):
    # --- SinusoidalPosEmb: f = t * freqs ; emb = [cos(f) | sin(f)] ---
    f = t_ref[...] * freqs_ref[...]                          # [B, TIME_DIM//2]
    cos_f = jnp.cos(f)
    sin_f = jnp.sin(f)

    # --- time_encoder MLP: Linear -> mish -> Linear (concat folded into split matmul) ---
    h = (jnp.dot(cos_f, te_w1c_ref[...], preferred_element_type=jnp.float32)
         + jnp.dot(sin_f, te_w1s_ref[...], preferred_element_type=jnp.float32)
         + te_b1_ref[...])
    h = _mish(h)
    temb = jnp.dot(h, te_w2_ref[...], preferred_element_type=jnp.float32) + te_b2_ref[...]

    # --- decoder dense1 over cat([time_emb, xt|cond]) as split matmul ---
    x = (jnp.dot(temb, dw1t_ref[...], preferred_element_type=jnp.float32)
         + jnp.dot(xtc_ref[...], dw1x_ref[...], preferred_element_type=jnp.float32)
         + db1_ref[...])

    # --- MLPResNet blocks: LayerNorm -> dense(4H) -> mish -> dense(H), residual add ---
    for i in range(NUM_BLOCKS):                              # static unroll (3 blocks)
        mu = jnp.mean(x, axis=-1, keepdims=True)
        var = jnp.mean(jnp.square(x - mu), axis=-1, keepdims=True)
        hn = (x - mu) * lax.rsqrt(var + LN_EPS)
        hn = hn * ln_g_ref[i] + ln_b_ref[i]
        hn = jnp.dot(hn, bw1_ref[i], preferred_element_type=jnp.float32) + bb1_ref[i]
        hn = _mish(hn)
        hn = jnp.dot(hn, bw2_ref[i], preferred_element_type=jnp.float32) + bb2_ref[i]
        x = x + hn

    # --- final: mish -> dense2 (output padded to OUT_PAD lanes, unmasked full-lane store) ---
    x = _mish(x)
    o_ref[...] = jnp.dot(x, dw2_ref[...], preferred_element_type=jnp.float32) + db2_ref[...]


# ----------------------------- wrapper -----------------------------
def idql_diffusion_forward(params, xt, t, cond=None):
    """Matches IDQLDiffusion.forward: temb = enc(posemb(t)); decoder(cat([temb, xt, cond]))."""
    B_ = xt.shape[0]
    t2 = t.reshape(-1, 1).astype(jnp.float32)
    if cond is not None:
        xt = jnp.concatenate([xt, cond], axis=-1)
    # zero-pad [xt|cond] to a full 128-lane slab (dec_w1_x rows are zero-padded to match)
    xtc = jnp.pad(xt.astype(jnp.float32), ((0, 0), (0, XTC_PAD - xt.shape[-1])))

    out_padded = pl.pallas_call(
        _idql_fused_kernel,
        out_shape=jax.ShapeDtypeStruct((B_, OUT_PAD), jnp.float32),
        compiler_params=pltpu.CompilerParams(vmem_limit_bytes=32 << 20),
    )(t2, xtc, params["freqs"],
      params["te_w1_cos"], params["te_w1_sin"], params["te_b1"],
      params["te_w2"], params["te_b2"],
      params["dec_w1_t"], params["dec_w1_x"], params["dec_b1"],
      params["blk_ln_g"], params["blk_ln_b"],
      params["blk_w1"], params["blk_b1"], params["blk_w2"], params["blk_b2"],
      params["dec_w2"], params["dec_b2"])
    return out_padded[:, :OUTPUT_DIM]


# ----------------------------- deterministic parameter init -----------------------------
def init_params(key):
    ks = iter(jax.random.split(key, 12))

    def dense(k, fi, fo):
        s = 1.0 / math.sqrt(fi)
        kw, kb = jax.random.split(k)
        w = jax.random.uniform(kw, (fi, fo), jnp.float32, -s, s)
        b = jax.random.uniform(kb, (fo,), jnp.float32, -s, s)
        return w, b

    p = {}
    half = TIME_DIM // 2
    # fixed sinusoidal frequencies (SinusoidalPosEmb)
    p["freqs"] = jnp.exp(
        jnp.arange(half, dtype=jnp.float32) * -(math.log(10000.0) / (half - 1))
    ).reshape(1, half)

    # time_encoder: Linear(64->128) -> mish -> Linear(128->128); W1 pre-split into cos/sin rows
    w, b = dense(next(ks), TIME_DIM, TE_HIDDEN)
    p["te_w1_cos"], p["te_w1_sin"] = w[:half], w[half:]
    p["te_b1"] = b.reshape(1, -1)
    w, b = dense(next(ks), TE_HIDDEN, TE_OUT)
    p["te_w2"], p["te_b2"] = w, b.reshape(1, -1)

    # decoder dense1 over [time_emb(128) | xt(7) | cond(16)] -> split + zero-padded slabs
    dec_in = TE_OUT + INPUT_DIM + COND_DIM
    w, b = dense(next(ks), dec_in, HIDDEN_DIM)
    p["dec_w1_t"] = w[:TE_OUT]                                        # [128, H]
    wx = w[TE_OUT:]                                                   # [23, H]
    p["dec_w1_x"] = jnp.zeros((XTC_PAD, HIDDEN_DIM), jnp.float32).at[: wx.shape[0]].set(wx)
    p["dec_b1"] = b.reshape(1, -1)

    # MLPResNet blocks (stacked along a leading axis -> one VMEM slab per parameter kind)
    g, be, w1s, b1s, w2s, b2s = [], [], [], [], [], []
    for _ in range(NUM_BLOCKS):
        w1, b1 = dense(next(ks), HIDDEN_DIM, HIDDEN_DIM * 4)
        w2, b2 = dense(next(ks), HIDDEN_DIM * 4, HIDDEN_DIM)
        g.append(jnp.ones((1, HIDDEN_DIM), jnp.float32))
        be.append(jnp.zeros((1, HIDDEN_DIM), jnp.float32))
        w1s.append(w1); b1s.append(b1.reshape(1, -1))
        w2s.append(w2); b2s.append(b2.reshape(1, -1))
    p["blk_ln_g"] = jnp.stack(g)
    p["blk_ln_b"] = jnp.stack(be)
    p["blk_w1"] = jnp.stack(w1s)
    p["blk_b1"] = jnp.stack(b1s)
    p["blk_w2"] = jnp.stack(w2s)
    p["blk_b2"] = jnp.stack(b2s)

    # decoder dense2: [H, 7] zero-padded to [H, 128] output lanes
    w, b = dense(next(ks), HIDDEN_DIM, OUTPUT_DIM)
    p["dec_w2"] = jnp.zeros((HIDDEN_DIM, OUT_PAD), jnp.float32).at[:, :OUTPUT_DIM].set(w)
    p["dec_b2"] = jnp.zeros((1, OUT_PAD), jnp.float32).at[:, :OUTPUT_DIM].set(b)
    return p


# ----------------------------- main -----------------------------
if __name__ == "__main__":
    key = jax.random.PRNGKey(0)
    kp, kx, kt, kc = jax.random.split(key, 4)
    params = init_params(kp)

    xt = jax.random.normal(kx, (B, INPUT_DIM), dtype=jnp.float32)     # noisy action
    t = jax.random.uniform(kt, (B,), dtype=jnp.float32)               # diffusion time
    cond = jax.random.normal(kc, (B, COND_DIM), dtype=jnp.float32)    # conditioning

    out = jax.jit(idql_diffusion_forward)(params, xt, t, cond)
    out = jax.block_until_ready(out)
    assert out.shape == (B, OUTPUT_DIM) and out.dtype == jnp.float32
    assert bool(jnp.all(jnp.isfinite(out)))
    print("KERNEL_OK")
</pallas_src>

<mosaic_0001>
module attributes {stable_mosaic.version = 11 : i64} {
  func.func @_idql_fused_kernel(%arg0: memref<2x1xf32, #tpu.memory_space<vmem>>, %arg1: memref<2x128xf32, #tpu.memory_space<vmem>>, %arg2: memref<1x32xf32, #tpu.memory_space<vmem>>, %arg3: memref<32x128xf32, #tpu.memory_space<vmem>>, %arg4: memref<32x128xf32, #tpu.memory_space<vmem>>, %arg5: memref<1x128xf32, #tpu.memory_space<vmem>>, %arg6: memref<128x128xf32, #tpu.memory_space<vmem>>, %arg7: memref<1x128xf32, #tpu.memory_space<vmem>>, %arg8: memref<128x256xf32, #tpu.memory_space<vmem>>, %arg9: memref<128x256xf32, #tpu.memory_space<vmem>>, %arg10: memref<1x256xf32, #tpu.memory_space<vmem>>, %arg11: memref<3x1x256xf32, #tpu.memory_space<vmem>>, %arg12: memref<3x1x256xf32, #tpu.memory_space<vmem>>, %arg13: memref<3x256x1024xf32, #tpu.memory_space<vmem>>, %arg14: memref<3x1x1024xf32, #tpu.memory_space<vmem>>, %arg15: memref<3x1024x256xf32, #tpu.memory_space<vmem>>, %arg16: memref<3x1x256xf32, #tpu.memory_space<vmem>>, %arg17: memref<256x128xf32, #tpu.memory_space<vmem>>, %arg18: memref<1x128xf32, #tpu.memory_space<vmem>>, %arg19: memref<2x128xf32, #tpu.memory_space<vmem>>) attributes {dimension_semantics = [], scalar_prefetch = 0 : i64, scratch_operands = 0 : i64, tpu.core_type = #tpu.core_type<tc>} {
    %c0 = arith.constant 0 : index
    %c0_0 = arith.constant 0 : index
    %0 = vector.load %arg0[%c0, %c0_0] : memref<2x1xf32, #tpu.memory_space<vmem>>, vector<2x1xf32>
    %c0_1 = arith.constant 0 : index
    %c0_2 = arith.constant 0 : index
    %1 = vector.load %arg2[%c0_1, %c0_2] : memref<1x32xf32, #tpu.memory_space<vmem>>, vector<1x32xf32>
    %2 = vector.broadcast %0 : vector<2x1xf32> to vector<2x32xf32>
    %3 = vector.broadcast %1 : vector<1x32xf32> to vector<2x32xf32>
    %4 = arith.mulf %2, %3 : vector<2x32xf32>
    %5 = math.cos %4 : vector<2x32xf32>
    %6 = math.sin %4 : vector<2x32xf32>
    %c0_3 = arith.constant 0 : index
    %c0_4 = arith.constant 0 : index
    %7 = vector.load %arg3[%c0_3, %c0_4] : memref<32x128xf32, #tpu.memory_space<vmem>>, vector<32x128xf32>
    %cst = arith.constant dense<0.000000e+00> : vector<2x128xf32>
    %8 = tpu.matmul %5, %7, %cst {dimension_numbers = #tpu.dot_dimension_numbers<[1], [0], [0], [1], [0, 0, 1, 1], [], []>} : vector<2x32xf32>, vector<32x128xf32>, vector<2x128xf32> -> vector<2x128xf32>
    %c0_5 = arith.constant 0 : index
    %c0_6 = arith.constant 0 : index
    %9 = vector.load %arg4[%c0_5, %c0_6] : memref<32x128xf32, #tpu.memory_space<vmem>>, vector<32x128xf32>
    %cst_7 = arith.constant dense<0.000000e+00> : vector<2x128xf32>
    %10 = tpu.matmul %6, %9, %cst_7 {dimension_numbers = #tpu.dot_dimension_numbers<[1], [0], [0], [1], [0, 0, 1, 1], [], []>} : vector<2x32xf32>, vector<32x128xf32>, vector<2x128xf32> -> vector<2x128xf32>
    %11 = arith.addf %8, %10 : vector<2x128xf32>
    %c0_8 = arith.constant 0 : index
    %c0_9 = arith.constant 0 : index
    %12 = vector.load %arg5[%c0_8, %c0_9] : memref<1x128xf32, #tpu.memory_space<vmem>>, vector<1x128xf32>
    %13 = vector.broadcast %12 : vector<1x128xf32> to vector<2x128xf32>
    %14 = arith.addf %11, %13 : vector<2x128xf32>
    %cst_10 = arith.constant 2.000000e+01 : f32
    %15 = vector.broadcast %cst_10 : f32 to vector<2x128xf32>
    %16 = arith.cmpf ogt, %14, %15 : vector<2x128xf32>
    %cst_11 = arith.constant 2.000000e+01 : f32
    %17 = vector.broadcast %cst_11 : f32 to vector<2x128xf32>
    %18 = arith.minimumf %14, %17 : vector<2x128xf32>
    %19 = math.exp %18 : vector<2x128xf32>
    %20 = math.log1p %19 : vector<2x128xf32>
    %21 = arith.select %16, %14, %20 : vector<2x128xi1>, vector<2x128xf32>
    %22 = math.tanh %21 : vector<2x128xf32>
    %23 = arith.mulf %14, %22 : vector<2x128xf32>
    %c0_12 = arith.constant 0 : index
    %c0_13 = arith.constant 0 : index
    %24 = vector.load %arg6[%c0_12, %c0_13] : memref<128x128xf32, #tpu.memory_space<vmem>>, vector<128x128xf32>
    %cst_14 = arith.constant dense<0.000000e+00> : vector<2x128xf32>
    %25 = tpu.matmul %23, %24, %cst_14 {dimension_numbers = #tpu.dot_dimension_numbers<[1], [0], [0], [1], [0, 0, 1, 1], [], []>} : vector<2x128xf32>, vector<128x128xf32>, vector<2x128xf32> -> vector<2x128xf32>
    %c0_15 = arith.constant 0 : index
    %c0_16 = arith.constant 0 : index
    %26 = vector.load %arg7[%c0_15, %c0_16] : memref<1x128xf32, #tpu.memory_space<vmem>>, vector<1x128xf32>
    %27 = vector.broadcast %26 : vector<1x128xf32> to vector<2x128xf32>
    %28 = arith.addf %25, %27 : vector<2x128xf32>
    %c0_17 = arith.constant 0 : index
    %c0_18 = arith.constant 0 : index
    %29 = vector.load %arg8[%c0_17, %c0_18] : memref<128x256xf32, #tpu.memory_space<vmem>>, vector<128x256xf32>
    %cst_19 = arith.constant dense<0.000000e+00> : vector<2x256xf32>
    %30 = tpu.matmul %28, %29, %cst_19 {dimension_numbers = #tpu.dot_dimension_numbers<[1], [0], [0], [1], [0, 0, 1, 1], [], []>} : vector<2x128xf32>, vector<128x256xf32>, vector<2x256xf32> -> vector<2x256xf32>
    %c0_20 = arith.constant 0 : index
    %c0_21 = arith.constant 0 : index
    %31 = vector.load %arg1[%c0_20, %c0_21] : memref<2x128xf32, #tpu.memory_space<vmem>>, vector<2x128xf32>
    %c0_22 = arith.constant 0 : index
    %c0_23 = arith.constant 0 : index
    %32 = vector.load %arg9[%c0_22, %c0_23] : memref<128x256xf32, #tpu.memory_space<vmem>>, vector<128x256xf32>
    %cst_24 = arith.constant dense<0.000000e+00> : vector<2x256xf32>
    %33 = tpu.matmul %31, %32, %cst_24 {dimension_numbers = #tpu.dot_dimension_numbers<[1], [0], [0], [1], [0, 0, 1, 1], [], []>} : vector<2x128xf32>, vector<128x256xf32>, vector<2x256xf32> -> vector<2x256xf32>
    %34 = arith.addf %30, %33 : vector<2x256xf32>
    %c0_25 = arith.constant 0 : index
    %c0_26 = arith.constant 0 : index
    %35 = vector.load %arg10[%c0_25, %c0_26] : memref<1x256xf32, #tpu.memory_space<vmem>>, vector<1x256xf32>
    %36 = vector.broadcast %35 : vector<1x256xf32> to vector<2x256xf32>
    %37 = arith.addf %34, %36 : vector<2x256xf32>
    %cst_27 = arith.constant dense<0.000000e+00> : vector<2xf32>
    %38 = vector.multi_reduction <add>, %37, %cst_27 [1] : vector<2x256xf32> to vector<2xf32>
    %39 = vector.shape_cast %38 : vector<2xf32> to vector<2x1xf32>
    %cst_28 = arith.constant 2.560000e+02 : f32
    %40 = vector.broadcast %cst_28 : f32 to vector<2x1xf32>
    %41 = arith.divf %39, %40 : vector<2x1xf32>
    %42 = vector.broadcast %41 : vector<2x1xf32> to vector<2x256xf32>
    %43 = arith.subf %37, %42 : vector<2x256xf32>
    %44 = arith.mulf %43, %43 : vector<2x256xf32>
    %cst_29 = arith.constant dense<0.000000e+00> : vector<2xf32>
    %45 = vector.multi_reduction <add>, %44, %cst_29 [1] : vector<2x256xf32> to vector<2xf32>
    %46 = vector.shape_cast %45 : vector<2xf32> to vector<2x1xf32>
    %cst_30 = arith.constant 2.560000e+02 : f32
    %47 = vector.broadcast %cst_30 : f32 to vector<2x1xf32>
    %48 = arith.divf %46, %47 : vector<2x1xf32>
    %49 = vector.broadcast %41 : vector<2x1xf32> to vector<2x256xf32>
    %50 = arith.subf %37, %49 : vector<2x256xf32>
    %cst_31 = arith.constant 9.99999974E-6 : f32
    %51 = vector.broadcast %cst_31 : f32 to vector<2x1xf32>
    %52 = arith.addf %48, %51 : vector<2x1xf32>
    %53 = math.rsqrt %52 : vector<2x1xf32>
    %54 = vector.broadcast %53 : vector<2x1xf32> to vector<2x256xf32>
    %55 = arith.mulf %50, %54 : vector<2x256xf32>
    %c0_32 = arith.constant 0 : index
    %c0_33 = arith.constant 0 : index
    %c0_34 = arith.constant 0 : index
    %56 = vector.load %arg11[%c0_32, %c0_33, %c0_34] : memref<3x1x256xf32, #tpu.memory_space<vmem>>, vector<1x1x256xf32>
    %57 = vector.shape_cast %56 : vector<1x1x256xf32> to vector<1x256xf32>
    %58 = vector.broadcast %57 : vector<1x256xf32> to vector<2x256xf32>
    %59 = arith.mulf %55, %58 : vector<2x256xf32>
    %c0_35 = arith.constant 0 : index
    %c0_36 = arith.constant 0 : index
    %c0_37 = arith.constant 0 : index
    %60 = vector.load %arg12[%c0_35, %c0_36, %c0_37] : memref<3x1x256xf32, #tpu.memory_space<vmem>>, vector<1x1x256xf32>
    %61 = vector.shape_cast %60 : vector<1x1x256xf32> to vector<1x256xf32>
    %62 = vector.broadcast %61 : vector<1x256xf32> to vector<2x256xf32>
    %63 = arith.addf %59, %62 : vector<2x256xf32>
    %c0_38 = arith.constant 0 : index
    %c0_39 = arith.constant 0 : index
    %c0_40 = arith.constant 0 : index
    %64 = vector.load %arg13[%c0_38, %c0_39, %c0_40] : memref<3x256x1024xf32, #tpu.memory_space<vmem>>, vector<1x256x1024xf32>
    %65 = vector.shape_cast %64 : vector<1x256x1024xf32> to vector<256x1024xf32>
    %cst_41 = arith.constant dense<0.000000e+00> : vector<2x1024xf32>
    %66 = tpu.matmul %63, %65, %cst_41 {dimension_numbers = #tpu.dot_dimension_numbers<[1], [0], [0], [1], [0, 0, 1, 1], [], []>} : vector<2x256xf32>, vector<256x1024xf32>, vector<2x1024xf32> -> vector<2x1024xf32>
    %c0_42 = arith.constant 0 : index
    %c0_43 = arith.constant 0 : index
    %c0_44 = arith.constant 0 : index
    %67 = vector.load %arg14[%c0_42, %c0_43, %c0_44] : memref<3x1x1024xf32, #tpu.memory_space<vmem>>, vector<1x1x1024xf32>
    %68 = vector.shape_cast %67 : vector<1x1x1024xf32> to vector<1x1024xf32>
    %69 = vector.broadcast %68 : vector<1x1024xf32> to vector<2x1024xf32>
    %70 = arith.addf %66, %69 : vector<2x1024xf32>
    %cst_45 = arith.constant 2.000000e+01 : f32
    %71 = vector.broadcast %cst_45 : f32 to vector<2x1024xf32>
    %72 = arith.cmpf ogt, %70, %71 : vector<2x1024xf32>
    %cst_46 = arith.constant 2.000000e+01 : f32
    %73 = vector.broadcast %cst_46 : f32 to vector<2x1024xf32>
    %74 = arith.minimumf %70, %73 : vector<2x1024xf32>
    %75 = math.exp %74 : vector<2x1024xf32>
    %76 = math.log1p %75 : vector<2x1024xf32>
    %77 = arith.select %72, %70, %76 : vector<2x1024xi1>, vector<2x1024xf32>
    %78 = math.tanh %77 : vector<2x1024xf32>
    %79 = arith.mulf %70, %78 : vector<2x1024xf32>
    %c0_47 = arith.constant 0 : index
    %c0_48 = arith.constant 0 : index
    %c0_49 = arith.constant 0 : index
    %80 = vector.load %arg15[%c0_47, %c0_48, %c0_49] : memref<3x1024x256xf32, #tpu.memory_space<vmem>>, vector<1x1024x256xf32>
    %81 = vector.shape_cast %80 : vector<1x1024x256xf32> to vector<1024x256xf32>
    %cst_50 = arith.constant dense<0.000000e+00> : vector<2x256xf32>
    %82 = tpu.matmul %79, %81, %cst_50 {dimension_numbers = #tpu.dot_dimension_numbers<[1], [0], [0], [1], [0, 0, 1, 1], [], []>} : vector<2x1024xf32>, vector<1024x256xf32>, vector<2x256xf32> -> vector<2x256xf32>
    %c0_51 = arith.constant 0 : index
    %c0_52 = arith.constant 0 : index
    %c0_53 = arith.constant 0 : index
    %83 = vector.load %arg16[%c0_51, %c0_52, %c0_53] : memref<3x1x256xf32, #tpu.memory_space<vmem>>, vector<1x1x256xf32>
    %84 = vector.shape_cast %83 : vector<1x1x256xf32> to vector<1x256xf32>
    %85 = vector.broadcast %84 : vector<1x256xf32> to vector<2x256xf32>
    %86 = arith.addf %82, %85 : vector<2x256xf32>
    %87 = arith.addf %37, %86 : vector<2x256xf32>
    %cst_54 = arith.constant dense<0.000000e+00> : vector<2xf32>
    %88 = vector.multi_reduction <add>, %87, %cst_54 [1] : vector<2x256xf32> to vector<2xf32>
    %89 = vector.shape_cast %88 : vector<2xf32> to vector<2x1xf32>
    %cst_55 = arith.constant 2.560000e+02 : f32
    %90 = vector.broadcast %cst_55 : f32 to vector<2x1xf32>
    %91 = arith.divf %89, %90 : vector<2x1xf32>
    %92 = vector.broadcast %91 : vector<2x1xf32> to vector<2x256xf32>
    %93 = arith.subf %87, %92 : vector<2x256xf32>
    %94 = arith.mulf %93, %93 : vector<2x256xf32>
    %cst_56 = arith.constant dense<0.000000e+00> : vector<2xf32>
    %95 = vector.multi_reduction <add>, %94, %cst_56 [1] : vector<2x256xf32> to vector<2xf32>
    %96 = vector.shape_cast %95 : vector<2xf32> to vector<2x1xf32>
    %cst_57 = arith.constant 2.560000e+02 : f32
    %97 = vector.broadcast %cst_57 : f32 to vector<2x1xf32>
    %98 = arith.divf %96, %97 : vector<2x1xf32>
    %99 = vector.broadcast %91 : vector<2x1xf32> to vector<2x256xf32>
    %100 = arith.subf %87, %99 : vector<2x256xf32>
    %cst_58 = arith.constant 9.99999974E-6 : f32
    %101 = vector.broadcast %cst_58 : f32 to vector<2x1xf32>
    %102 = arith.addf %98, %101 : vector<2x1xf32>
    %103 = math.rsqrt %102 : vector<2x1xf32>
    %104 = vector.broadcast %103 : vector<2x1xf32> to vector<2x256xf32>
    %105 = arith.mulf %100, %104 : vector<2x256xf32>
    %c1 = arith.constant 1 : index
    %c0_59 = arith.constant 0 : index
    %c0_60 = arith.constant 0 : index
    %106 = vector.load %arg11[%c1, %c0_59, %c0_60] : memref<3x1x256xf32, #tpu.memory_space<vmem>>, vector<1x1x256xf32>
    %107 = vector.shape_cast %106 : vector<1x1x256xf32> to vector<1x256xf32>
    %108 = vector.broadcast %107 : vector<1x256xf32> to vector<2x256xf32>
    %109 = arith.mulf %105, %108 : vector<2x256xf32>
    %c1_61 = arith.constant 1 : index
    %c0_62 = arith.constant 0 : index
    %c0_63 = arith.constant 0 : index
    %110 = vector.load %arg12[%c1_61, %c0_62, %c0_63] : memref<3x1x256xf32, #tpu.memory_space<vmem>>, vector<1x1x256xf32>
    %111 = vector.shape_cast %110 : vector<1x1x256xf32> to vector<1x256xf32>
    %112 = vector.broadcast %111 : vector<1x256xf32> to vector<2x256xf32>
    %113 = arith.addf %109, %112 : vector<2x256xf32>
    %c1_64 = arith.constant 1 : index
    %c0_65 = arith.constant 0 : index
    %c0_66 = arith.constant 0 : index
    %114 = vector.load %arg13[%c1_64, %c0_65, %c0_66] : memref<3x256x1024xf32, #tpu.memory_space<vmem>>, vector<1x256x1024xf32>
    %115 = vector.shape_cast %114 : vector<1x256x1024xf32> to vector<256x1024xf32>
    %cst_67 = arith.constant dense<0.000000e+00> : vector<2x1024xf32>
    %116 = tpu.matmul %113, %115, %cst_67 {dimension_numbers = #tpu.dot_dimension_numbers<[1], [0], [0], [1], [0, 0, 1, 1], [], []>} : vector<2x256xf32>, vector<256x1024xf32>, vector<2x1024xf32> -> vector<2x1024xf32>
    %c1_68 = arith.constant 1 : index
    %c0_69 = arith.constant 0 : index
    %c0_70 = arith.constant 0 : index
    %117 = vector.load %arg14[%c1_68, %c0_69, %c0_70] : memref<3x1x1024xf32, #tpu.memory_space<vmem>>, vector<1x1x1024xf32>
    %118 = vector.shape_cast %117 : vector<1x1x1024xf32> to vector<1x1024xf32>
    %119 = vector.broadcast %118 : vector<1x1024xf32> to vector<2x1024xf32>
    %120 = arith.addf %116, %119 : vector<2x1024xf32>
    %cst_71 = arith.constant 2.000000e+01 : f32
    %121 = vector.broadcast %cst_71 : f32 to vector<2x1024xf32>
    %122 = arith.cmpf ogt, %120, %121 : vector<2x1024xf32>
    %cst_72 = arith.constant 2.000000e+01 : f32
    %123 = vector.broadcast %cst_72 : f32 to vector<2x1024xf32>
    %124 = arith.minimumf %120, %123 : vector<2x1024xf32>
    %125 = math.exp %124 : vector<2x1024xf32>
    %126 = math.log1p %125 : vector<2x1024xf32>
    %127 = arith.select %122, %120, %126 : vector<2x1024xi1>, vector<2x1024xf32>
    %128 = math.tanh %127 : vector<2x1024xf32>
    %129 = arith.mulf %120, %128 : vector<2x1024xf32>
    %c1_73 = arith.constant 1 : index
    %c0_74 = arith.constant 0 : index
    %c0_75 = arith.constant 0 : index
    %130 = vector.load %arg15[%c1_73, %c0_74, %c0_75] : memref<3x1024x256xf32, #tpu.memory_space<vmem>>, vector<1x1024x256xf32>
    %131 = vector.shape_cast %130 : vector<1x1024x256xf32> to vector<1024x256xf32>
    %cst_76 = arith.constant dense<0.000000e+00> : vector<2x256xf32>
    %132 = tpu.matmul %129, %131, %cst_76 {dimension_numbers = #tpu.dot_dimension_numbers<[1], [0], [0], [1], [0, 0, 1, 1], [], []>} : vector<2x1024xf32>, vector<1024x256xf32>, vector<2x256xf32> -> vector<2x256xf32>
    %c1_77 = arith.constant 1 : index
    %c0_78 = arith.constant 0 : index
    %c0_79 = arith.constant 0 : index
    %133 = vector.load %arg16[%c1_77, %c0_78, %c0_79] : memref<3x1x256xf32, #tpu.memory_space<vmem>>, vector<1x1x256xf32>
    %134 = vector.shape_cast %133 : vector<1x1x256xf32> to vector<1x256xf32>
    %135 = vector.broadcast %134 : vector<1x256xf32> to vector<2x256xf32>
    %136 = arith.addf %132, %135 : vector<2x256xf32>
    %137 = arith.addf %87, %136 : vector<2x256xf32>
    %cst_80 = arith.constant dense<0.000000e+00> : vector<2xf32>
    %138 = vector.multi_reduction <add>, %137, %cst_80 [1] : vector<2x256xf32> to vector<2xf32>
    %139 = vector.shape_cast %138 : vector<2xf32> to vector<2x1xf32>
    %cst_81 = arith.constant 2.560000e+02 : f32
    %140 = vector.broadcast %cst_81 : f32 to vector<2x1xf32>
    %141 = arith.divf %139, %140 : vector<2x1xf32>
    %142 = vector.broadcast %141 : vector<2x1xf32> to vector<2x256xf32>
    %143 = arith.subf %137, %142 : vector<2x256xf32>
    %144 = arith.mulf %143, %143 : vector<2x256xf32>
    %cst_82 = arith.constant dense<0.000000e+00> : vector<2xf32>
    %145 = vector.multi_reduction <add>, %144, %cst_82 [1] : vector<2x256xf32> to vector<2xf32>
    %146 = vector.shape_cast %145 : vector<2xf32> to vector<2x1xf32>
    %cst_83 = arith.constant 2.560000e+02 : f32
    %147 = vector.broadcast %cst_83 : f32 to vector<2x1xf32>
    %148 = arith.divf %146, %147 : vector<2x1xf32>
    %149 = vector.broadcast %141 : vector<2x1xf32> to vector<2x256xf32>
    %150 = arith.subf %137, %149 : vector<2x256xf32>
    %cst_84 = arith.constant 9.99999974E-6 : f32
    %151 = vector.broadcast %cst_84 : f32 to vector<2x1xf32>
    %152 = arith.addf %148, %151 : vector<2x1xf32>
    %153 = math.rsqrt %152 : vector<2x1xf32>
    %154 = vector.broadcast %153 : vector<2x1xf32> to vector<2x256xf32>
    %155 = arith.mulf %150, %154 : vector<2x256xf32>
    %c2 = arith.constant 2 : index
    %c0_85 = arith.constant 0 : index
    %c0_86 = arith.constant 0 : index
    %156 = vector.load %arg11[%c2, %c0_85, %c0_86] : memref<3x1x256xf32, #tpu.memory_space<vmem>>, vector<1x1x256xf32>
    %157 = vector.shape_cast %156 : vector<1x1x256xf32> to vector<1x256xf32>
    %158 = vector.broadcast %157 : vector<1x256xf32> to vector<2x256xf32>
    %159 = arith.mulf %155, %158 : vector<2x256xf32>
    %c2_87 = arith.constant 2 : index
    %c0_88 = arith.constant 0 : index
    %c0_89 = arith.constant 0 : index
    %160 = vector.load %arg12[%c2_87, %c0_88, %c0_89] : memref<3x1x256xf32, #tpu.memory_space<vmem>>, vector<1x1x256xf32>
    %161 = vector.shape_cast %160 : vector<1x1x256xf32> to vector<1x256xf32>
    %162 = vector.broadcast %161 : vector<1x256xf32> to vector<2x256xf32>
    %163 = arith.addf %159, %162 : vector<2x256xf32>
    %c2_90 = arith.constant 2 : index
    %c0_91 = arith.constant 0 : index
    %c0_92 = arith.constant 0 : index
    %164 = vector.load %arg13[%c2_90, %c0_91, %c0_92] : memref<3x256x1024xf32, #tpu.memory_space<vmem>>, vector<1x256x1024xf32>
    %165 = vector.shape_cast %164 : vector<1x256x1024xf32> to vector<256x1024xf32>
    %cst_93 = arith.constant dense<0.000000e+00> : vector<2x1024xf32>
    %166 = tpu.matmul %163, %165, %cst_93 {dimension_numbers = #tpu.dot_dimension_numbers<[1], [0], [0], [1], [0, 0, 1, 1], [], []>} : vector<2x256xf32>, vector<256x1024xf32>, vector<2x1024xf32> -> vector<2x1024xf32>
    %c2_94 = arith.constant 2 : index
    %c0_95 = arith.constant 0 : index
    %c0_96 = arith.constant 0 : index
    %167 = vector.load %arg14[%c2_94, %c0_95, %c0_96] : memref<3x1x1024xf32, #tpu.memory_space<vmem>>, vector<1x1x1024xf32>
    %168 = vector.shape_cast %167 : vector<1x1x1024xf32> to vector<1x1024xf32>
    %169 = vector.broadcast %168 : vector<1x1024xf32> to vector<2x1024xf32>
    %170 = arith.addf %166, %169 : vector<2x1024xf32>
    %cst_97 = arith.constant 2.000000e+01 : f32
    %171 = vector.broadcast %cst_97 : f32 to vector<2x1024xf32>
    %172 = arith.cmpf ogt, %170, %171 : vector<2x1024xf32>
    %cst_98 = arith.constant 2.000000e+01 : f32
    %173 = vector.broadcast %cst_98 : f32 to vector<2x1024xf32>
    %174 = arith.minimumf %170, %173 : vector<2x1024xf32>
    %175 = math.exp %174 : vector<2x1024xf32>
    %176 = math.log1p %175 : vector<2x1024xf32>
    %177 = arith.select %172, %170, %176 : vector<2x1024xi1>, vector<2x1024xf32>
    %178 = math.tanh %177 : vector<2x1024xf32>
    %179 = arith.mulf %170, %178 : vector<2x1024xf32>
    %c2_99 = arith.constant 2 : index
    %c0_100 = arith.constant 0 : index
    %c0_101 = arith.constant 0 : index
    %180 = vector.load %arg15[%c2_99, %c0_100, %c0_101] : memref<3x1024x256xf32, #tpu.memory_space<vmem>>, vector<1x1024x256xf32>
    %181 = vector.shape_cast %180 : vector<1x1024x256xf32> to vector<1024x256xf32>
    %cst_102 = arith.constant dense<0.000000e+00> : vector<2x256xf32>
    %182 = tpu.matmul %179, %181, %cst_102 {dimension_numbers = #tpu.dot_dimension_numbers<[1], [0], [0], [1], [0, 0, 1, 1], [], []>} : vector<2x1024xf32>, vector<1024x256xf32>, vector<2x256xf32> -> vector<2x256xf32>
    %c2_103 = arith.constant 2 : index
    %c0_104 = arith.constant 0 : index
    %c0_105 = arith.constant 0 : index
    %183 = vector.load %arg16[%c2_103, %c0_104, %c0_105] : memref<3x1x256xf32, #tpu.memory_space<vmem>>, vector<1x1x256xf32>
    %184 = vector.shape_cast %183 : vector<1x1x256xf32> to vector<1x256xf32>
    %185 = vector.broadcast %184 : vector<1x256xf32> to vector<2x256xf32>
    %186 = arith.addf %182, %185 : vector<2x256xf32>
    %187 = arith.addf %137, %186 : vector<2x256xf32>
    %cst_106 = arith.constant 2.000000e+01 : f32
    %188 = vector.broadcast %cst_106 : f32 to vector<2x256xf32>
    %189 = arith.cmpf ogt, %187, %188 : vector<2x256xf32>
    %cst_107 = arith.constant 2.000000e+01 : f32
    %190 = vector.broadcast %cst_107 : f32 to vector<2x256xf32>
    %191 = arith.minimumf %187, %190 : vector<2x256xf32>
    %192 = math.exp %191 : vector<2x256xf32>
    %193 = math.log1p %192 : vector<2x256xf32>
    %194 = arith.select %189, %187, %193 : vector<2x256xi1>, vector<2x256xf32>
    %195 = math.tanh %194 : vector<2x256xf32>
    %196 = arith.mulf %187, %195 : vector<2x256xf32>
    %c0_108 = arith.constant 0 : index
    %c0_109 = arith.constant 0 : index
    %197 = vector.load %arg17[%c0_108, %c0_109] : memref<256x128xf32, #tpu.memory_space<vmem>>, vector<256x128xf32>
    %cst_110 = arith.constant dense<0.000000e+00> : vector<2x128xf32>
    %198 = tpu.matmul %196, %197, %cst_110 {dimension_numbers = #tpu.dot_dimension_numbers<[1], [0], [0], [1], [0, 0, 1, 1], [], []>} : vector<2x256xf32>, vector<256x128xf32>, vector<2x128xf32> -> vector<2x128xf32>
    %c0_111 = arith.constant 0 : index
    %c0_112 = arith.constant 0 : index
    %199 = vector.load %arg18[%c0_111, %c0_112] : memref<1x128xf32, #tpu.memory_space<vmem>>, vector<1x128xf32>
    %200 = vector.broadcast %199 : vector<1x128xf32> to vector<2x128xf32>
    %201 = arith.addf %198, %200 : vector<2x128xf32>
    %c0_113 = arith.constant 0 : index
    %c0_114 = arith.constant 0 : index
    %202 = vector.load %arg19[%c0_113, %c0_114] : memref<2x128xf32, #tpu.memory_space<vmem>>, vector<2x128xf32>
    tpu.vector_store %arg19[%c0_113, %c0_114], %201 {strides = array<i32>} : memref<2x128xf32, #tpu.memory_space<vmem>>, vector<2x128xf32>,
    return
  }
}

</mosaic_0001>

<llo_original>
// kernel: idql_diffusion_forward.1
$region0: #{idql_diffusion_forward.1}
  #allocation0 [shape = 'u32[]', space=smem, size = 0x4, offset = 0x4, fixed_abs, tag = 'smem constant byte address 0x4 - core index']
  #allocation1 [shape = 'u32[72,128]{1,0:T(1,128)}', space=vmem, size = 0x9000, scoped, tag = 'internal scratch']
  %s0 = inlined_call_operand.vmem [shape: f32[2,1], index: 0, kind: input, shape index: {}]
  %s1 = inlined_call_operand.vmem [shape: f32[2,128], index: 1, kind: input, shape index: {}]
  %s2 = inlined_call_operand.hbm [shape: f32[1,32], index: 2, kind: input, shape index: {}]
  %s3 = inlined_call_operand.hbm [shape: f32[32,128], index: 3, kind: input, shape index: {}]
  %s4 = inlined_call_operand.hbm [shape: f32[32,128], index: 4, kind: input, shape index: {}]
  %s5 = inlined_call_operand.hbm [shape: f32[1,128], index: 5, kind: input, shape index: {}]
  %s6 = inlined_call_operand.hbm [shape: f32[128,128], index: 6, kind: input, shape index: {}]
  %s7 = inlined_call_operand.hbm [shape: f32[1,128], index: 7, kind: input, shape index: {}]
  %s8 = inlined_call_operand.hbm [shape: f32[128,256], index: 8, kind: input, shape index: {}]
  %s9 = inlined_call_operand.hbm [shape: f32[128,256], index: 9, kind: input, shape index: {}]
  %s10 = inlined_call_operand.hbm [shape: f32[1,256], index: 10, kind: input, shape index: {}]
  %s11 = inlined_call_operand.hbm [shape: f32[3,1,256], index: 11, kind: input, shape index: {}]
  %s12 = inlined_call_operand.hbm [shape: f32[3,1,256], index: 12, kind: input, shape index: {}]
  %s13 = inlined_call_operand.hbm [shape: f32[3,256,1024], index: 13, kind: input, shape index: {}]
  %s14 = inlined_call_operand.hbm [shape: f32[3,1,1024], index: 14, kind: input, shape index: {}]
  %s15 = inlined_call_operand.hbm [shape: f32[3,1024,256], index: 15, kind: input, shape index: {}]
  %s16 = inlined_call_operand.hbm [shape: f32[3,1,256], index: 16, kind: input, shape index: {}]
  %s17 = inlined_call_operand.hbm [shape: f32[256,128], index: 17, kind: input, shape index: {}]
  %s18 = inlined_call_operand.hbm [shape: f32[1,128], index: 18, kind: input, shape index: {}]
  %s19 = inlined_call_operand.hbm [shape: f32[2,128], index: 19, kind: output, shape index: {}]
  %s20 = sld [smem:[#allocation0]]
  $region154: #{idql_diffusion_forward.1} parent=0
    _
  %s22 = ssub.s32 1, %s20
  %s23 = scalar_select 0, %s22, %s20
  $region1: #{idql_diffusion_forward.1} parent=0
    #allocation2 [shape = 'u8[512]{0}', space=vmem, size = 0x400, scoped, tag = 'input window, operand 2, single buffered']
    #allocation3 [shape = 's32[1]{0}', space=sflag, size = 0x4, scoped, tag = 'scoped memory for idql_diffusion_forward.1']
    #allocation4 [shape = 's32[1]{0}', space=sflag, size = 0x4, scoped, tag = 'scoped memory for idql_diffusion_forward.1']
    #allocation5 [shape = 'u8[16384]{0}', space=vmem, size = 0x4000, scoped, tag = 'input window, operand 3, single buffered']
    #allocation6 [shape = 's32[1]{0}', space=sflag, size = 0x4, scoped, tag = 'scoped memory for idql_diffusion_forward.1']
    #allocation7 [shape = 'u8[16384]{0}', space=vmem, size = 0x4000, scoped, tag = 'input window, operand 4, single buffered']
    #allocation8 [shape = 'u8[512]{0}', space=vmem, size = 0x400, scoped, tag = 'input window, operand 5, single buffered']
    #allocation9 [shape = 's32[1]{0}', space=sflag, size = 0x4, scoped, tag = 'scoped memory for idql_diffusion_forward.1']
    #allocation10 [shape = 'u8[65536]{0}', space=vmem, size = 0x10000, scoped, tag = 'input window, operand 6, single buffered']
    #allocation11 [shape = 'u8[512]{0}', space=vmem, size = 0x400, scoped, tag = 'input window, operand 7, single buffered']
    #allocation12 [shape = 's32[1]{0}', space=sflag, size = 0x4, scoped, tag = 'scoped memory for idql_diffusion_forward.1']
    #allocation13 [shape = 'u8[131072]{0}', space=vmem, size = 0x20000, scoped, tag = 'input window, operand 8, single buffered']
    #allocation14 [shape = 'u8[131072]{0}', space=vmem, size = 0x20000, scoped, tag = 'input window, operand 9, single buffered']
    #allocation15 [shape = 's32[1]{0}', space=sflag, size = 0x4, scoped, tag = 'scoped memory for idql_diffusion_forward.1']
    #allocation16 [shape = 'u8[1024]{0}', space=vmem, size = 0x400, scoped, tag = 'input window, operand 10, single buffered']
    #allocation17 [shape = 'u8[3072]{0}', space=vmem, size = 0xc00, scoped, tag = 'input window, operand 11, single buffered']
    #allocation18 [shape = 's32[1]{0}', space=sflag, size = 0x4, scoped, tag = 'scoped memory for idql_diffusion_forward.1']
    #allocation19 [shape = 'u8[3072]{0}', space=vmem, size = 0xc00, scoped, tag = 'input window, operand 12, single buffered']
    #allocation20 [shape = 'u8[3145728]{0}', space=vmem, size = 0x300000, scoped, tag = 'input window, operand 13, single buffered']
    #allocation21 [shape = 's32[1]{0}', space=sflag, size = 0x4, scoped, tag = 'scoped memory for idql_diffusion_forward.1']
    #allocation22 [shape = 'u8[12288]{0}', space=vmem, size = 0x3000, scoped, tag = 'input window, operand 14, single buffered']
    #allocation23 [shape = 'u8[3145728]{0}', space=vmem, size = 0x300000, scoped, tag = 'input window, operand 15, single buffered']
    #allocation24 [shape = 's32[1]{0}', space=sflag, size = 0x4, scoped, tag = 'scoped memory for idql_diffusion_forward.1']
    #allocation25 [shape = 'u8[3072]{0}', space=vmem, size = 0xc00, scoped, tag = 'input window, operand 16, single buffered']
    #allocation26 [shape = 'u8[131072]{0}', space=vmem, size = 0x20000, scoped, tag = 'input window, operand 17, single buffered']
    #allocation27 [shape = 's32[1]{0}', space=sflag, size = 0x4, scoped, tag = 'scoped memory for idql_diffusion_forward.1']
    #allocation28 [shape = 'u8[512]{0}', space=vmem, size = 0x400, scoped, tag = 'input window, operand 18, single buffered']
    #allocation29 [shape = 'u8[1024]{0}', space=vmem, size = 0x400, scoped, tag = 'output window, operand 0, single buffered']
    %24 = vsyncpa [#allocation3], 0
    %25 = vsyncpa [#allocation6], 0
    %26 = vsyncpa [#allocation9], 0
    %27 = vsyncpa [#allocation12], 0
    %28 = vsyncpa [#allocation15], 0
    %29 = vsyncpa [#allocation18], 0
    %30 = vsyncpa [#allocation21], 0
    %31 = vsyncpa [#allocation24], 0
    %32 = vsyncpa [#allocation27], 0
    %33 = vsyncpa [#allocation4], 0
    // Predicated region
    $region2: #{idql_diffusion_forward.1} parent=1 // pred_check
      _
    $region3: #{idql_diffusion_forward.1} parent=1 // pred_check_branch
      %35 = sbr.rel (0) target = $region5
    $region4: #{idql_diffusion_forward.1} parent=1 // pred_region
      _
    $region5: #{idql_diffusion_forward.1} parent=1 // pred_fallthru
      _
    // Predicated region
    $region6: #{idql_diffusion_forward.1} parent=1 // pred_check
      _
    $region7: #{idql_diffusion_forward.1} parent=1 // pred_check_branch
      %37 = sbr.rel (0) target = $region9
    $region8: #{idql_diffusion_forward.1} parent=1 // pred_region
      _
    $region9: #{idql_diffusion_forward.1} parent=1 // pred_fallthru
      _
    // Predicated region
    $region10: #{idql_diffusion_forward.1} parent=1 // pred_check
      _
    $region11: #{idql_diffusion_forward.1} parent=1 // pred_check_branch
      %39 = sbr.rel (0) target = $region13
    $region12: #{idql_diffusion_forward.1} parent=1 // pred_region
      %41 = vsyncadd [#allocation3], 0
      %s43 = sshll.u32 %s2, 4
      %s44 = int_to_ptr.hbm [resolvable:$true] %s43
      %s45 = sshll.u32 [#allocation2], 4
      %s46 = int_to_ptr.vmem [resolvable:$true] %s45
      %48 = dma.hbm_to_vmem [thread:$0]  %s44, 16, %s46, [#allocation3]
    $region13: #{idql_diffusion_forward.1} parent=1 // pred_fallthru
      _
    // Predicated region
    $region14: #{idql_diffusion_forward.1} parent=1 // pred_check
      _
    $region15: #{idql_diffusion_forward.1} parent=1 // pred_check_branch
      %50 = sbr.rel (0) target = $region17
    $region16: #{idql_diffusion_forward.1} parent=1 // pred_region
      %52 = vsyncadd [#allocation6], 0
      %s53 = sshll.u32 %s3, 4
      %s54 = int_to_ptr.hbm [resolvable:$true] %s53
      %s55 = sshll.u32 [#allocation5], 4
      %s56 = int_to_ptr.vmem [resolvable:$true] %s55
      %61 = dma.hbm_to_vmem [thread:$0]  %s54, 512, %s56, [#allocation6], 128, 128, 8
    $region17: #{idql_diffusion_forward.1} parent=1 // pred_fallthru
      _
    // Predicated region
    $region18: #{idql_diffusion_forward.1} parent=1 // pred_check
      _
    $region19: #{idql_diffusion_forward.1} parent=1 // pred_check_branch
      %63 = sbr.rel (0) target = $region21
    $region20: #{idql_diffusion_forward.1} parent=1 // pred_region
      %65 = vsyncadd [#allocation6], 0
      %s66 = sshll.u32 %s4, 4
      %s67 = int_to_ptr.hbm [resolvable:$true] %s66
      %s68 = sshll.u32 [#allocation7], 4
      %s69 = int_to_ptr.vmem [resolvable:$true] %s68
      %74 = dma.hbm_to_vmem [thread:$0]  %s67, 512, %s69, [#allocation6], 128, 128, 8
    $region21: #{idql_diffusion_forward.1} parent=1 // pred_fallthru
      _
    // Predicated region
    $region22: #{idql_diffusion_forward.1} parent=1 // pred_check
      _
    $region23: #{idql_diffusion_forward.1} parent=1 // pred_check_branch
      %76 = sbr.rel (0) target = $region25
    $region24: #{idql_diffusion_forward.1} parent=1 // pred_region
      %78 = vsyncadd [#allocation9], 0
      %s80 = sshll.u32 %s5, 4
      %s81 = int_to_ptr.hbm [resolvable:$true] %s80
      %s82 = sshll.u32 [#allocation8], 4
      %s83 = int_to_ptr.vmem [resolvable:$true] %s82
      %85 = dma.hbm_to_vmem [thread:$0]  %s81, 16, %s83, [#allocation9]
    $region25: #{idql_diffusion_forward.1} parent=1 // pred_fallthru
      _
    // Predicated region
    $region26: #{idql_diffusion_forward.1} parent=1 // pred_check
      _
    $region27: #{idql_diffusion_forward.1} parent=1 // pred_check_branch
      %87 = sbr.rel (0) target = $region29
    $region28: #{idql_diffusion_forward.1} parent=1 // pred_region
      %89 = vsyncadd [#allocation9], 0
      %s90 = sshll.u32 %s6, 4
      %s91 = int_to_ptr.hbm [resolvable:$true] %s90
      %s92 = sshll.u32 [#allocation10], 4
      %s93 = int_to_ptr.vmem [resolvable:$true] %s92
      %98 = dma.hbm_to_vmem [thread:$0]  %s91, 2048, %s93, [#allocation9], 128, 128, 8
    $region29: #{idql_diffusion_forward.1} parent=1 // pred_fallthru
      _
    // Predicated region
    $region30: #{idql_diffusion_forward.1} parent=1 // pred_check
      _
    $region31: #{idql_diffusion_forward.1} parent=1 // pred_check_branch
      %100 = sbr.rel (0) target = $region33
    $region32: #{idql_diffusion_forward.1} parent=1 // pred_region
      %102 = vsyncadd [#allocation12], 0
      %s104 = sshll.u32 %s7, 4
      %s105 = int_to_ptr.hbm [resolvable:$true] %s104
      %s106 = sshll.u32 [#allocation11], 4
      %s107 = int_to_ptr.vmem [resolvable:$true] %s106
      %109 = dma.hbm_to_vmem [thread:$0]  %s105, 16, %s107, [#allocation12]
    $region33: #{idql_diffusion_forward.1} parent=1 // pred_fallthru
      _
    // Predicated region
    $region34: #{idql_diffusion_forward.1} parent=1 // pred_check
      _
    $region35: #{idql_diffusion_forward.1} parent=1 // pred_check_branch
      %111 = sbr.rel (0) target = $region37
    $region36: #{idql_diffusion_forward.1} parent=1 // pred_region
      %113 = vsyncadd [#allocation12], 0
      %s114 = sshll.u32 %s8, 4
      %s115 = int_to_ptr.hbm [resolvable:$true] %s114
      %s116 = sshll.u32 [#allocation13], 4
      %s117 = int_to_ptr.vmem [resolvable:$true] %s116
      %122 = dma.hbm_to_vmem [thread:$0]  %s115, 4096, %s117, [#allocation12], 256, 256, 16
    $region37: #{idql_diffusion_forward.1} parent=1 // pred_fallthru
      _
    // Predicated region
    $region38: #{idql_diffusion_forward.1} parent=1 // pred_check
      _
    $region39: #{idql_diffusion_forward.1} parent=1 // pred_check_branch
      %124 = sbr.rel (0) target = $region41
    $region40: #{idql_diffusion_forward.1} parent=1 // pred_region
      %126 = vsyncadd [#allocation15], 0
      %s127 = sshll.u32 %s9, 4
      %s128 = int_to_ptr.hbm [resolvable:$true] %s127
      %s129 = sshll.u32 [#allocation14], 4
      %s130 = int_to_ptr.vmem [resolvable:$true] %s129
      %135 = dma.hbm_to_vmem [thread:$0]  %s128, 4096, %s130, [#allocation15], 256, 256, 16
    $region41: #{idql_diffusion_forward.1} parent=1 // pred_fallthru
      _
    // Predicated region
    $region42: #{idql_diffusion_forward.1} parent=1 // pred_check
      _
    $region43: #{idql_diffusion_forward.1} parent=1 // pred_check_branch
      %137 = sbr.rel (0) target = $region45
    $region44: #{idql_diffusion_forward.1} parent=1 // pred_region
      %139 = vsyncadd [#allocation15], 0
      %s141 = sshll.u32 %s10, 4
      %s142 = int_to_ptr.hbm [resolvable:$true] %s141
      %s143 = sshll.u32 [#allocation16], 4
      %s144 = int_to_ptr.vmem [resolvable:$true] %s143
      %146 = dma.hbm_to_vmem [thread:$0]  %s142, 32, %s144, [#allocation15]
    $region45: #{idql_diffusion_forward.1} parent=1 // pred_fallthru
      _
    // Predicated region
    $region46: #{idql_diffusion_forward.1} parent=1 // pred_check
      _
    $region47: #{idql_diffusion_forward.1} parent=1 // pred_check_branch
      %148 = sbr.rel (0) target = $region49
    $region48: #{idql_diffusion_forward.1} parent=1 // pred_region
      %150 = vsyncadd [#allocation18], 0
      %s151 = sshll.u32 %s11, 4
      %s152 = int_to_ptr.hbm [resolvable:$true] %s151
      %s153 = sshll.u32 [#allocation17], 4
      %s154 = int_to_ptr.vmem [resolvable:$true] %s153
      %159 = dma.hbm_to_vmem [thread:$0]  %s152, 96, %s154, [#allocation18], 32, 32, 2
    $region49: #{idql_diffusion_forward.1} parent=1 // pred_fallthru
      _
    // Predicated region
    $region50: #{idql_diffusion_forward.1} parent=1 // pred_check
      _
    $region51: #{idql_diffusion_forward.1} parent=1 // pred_check_branch
      %161 = sbr.rel (0) target = $region53
    $region52: #{idql_diffusion_forward.1} parent=1 // pred_region
      %163 = vsyncadd [#allocation18], 0
      %s164 = sshll.u32 %s12, 4
      %s165 = int_to_ptr.hbm [resolvable:$true] %s164
      %s166 = sshll.u32 [#allocation19], 4
      %s167 = int_to_ptr.vmem [resolvable:$true] %s166
      %172 = dma.hbm_to_vmem [thread:$0]  %s165, 96, %s167, [#allocation18], 32, 32, 2
    $region53: #{idql_diffusion_forward.1} parent=1 // pred_fallthru
      _
    // Predicated region
    $region54: #{idql_diffusion_forward.1} parent=1 // pred_check
      _
    $region55: #{idql_diffusion_forward.1} parent=1 // pred_check_branch
      %174 = sbr.rel (0) target = $region57
    $region56: #{idql_diffusion_forward.1} parent=1 // pred_region
      %176 = vsyncadd [#allocation21], 0
      %s177 = sshll.u32 %s13, 4
      %s178 = int_to_ptr.hbm [resolvable:$true] %s177
      %s179 = sshll.u32 [#allocation20], 4
      %s180 = int_to_ptr.vmem [resolvable:$true] %s179
      %185 = dma.hbm_to_vmem [thread:$0]  %s178, 98304, %s180, [#allocation21], 1024, 1024, 64
    $region57: #{idql_diffusion_forward.1} parent=1 // pred_fallthru
      _
    // Predicated region
    $region58: #{idql_diffusion_forward.1} parent=1 // pred_check
      _
    $region59: #{idql_diffusion_forward.1} parent=1 // pred_check_branch
      %187 = sbr.rel (0) target = $region61
    $region60: #{idql_diffusion_forward.1} parent=1 // pred_region
      %189 = vsyncadd [#allocation21], 0
      %s190 = sshll.u32 %s14, 4
      %s191 = int_to_ptr.hbm [resolvable:$true] %s190
      %s192 = sshll.u32 [#allocation22], 4
      %s193 = int_to_ptr.vmem [resolvable:$true] %s192
      %198 = dma.hbm_to_vmem [thread:$0]  %s191, 384, %s193, [#allocation21], 128, 128, 8
    $region61: #{idql_diffusion_forward.1} parent=1 // pred_fallthru
      _
    // Predicated region
    $region62: #{idql_diffusion_forward.1} parent=1 // pred_check
      _
    $region63: #{idql_diffusion_forward.1} parent=1 // pred_check_branch
      %200 = sbr.rel (0) target = $region65
    $region64: #{idql_diffusion_forward.1} parent=1 // pred_region
      %202 = vsyncadd [#allocation24], 0
      %s203 = sshll.u32 %s15, 4
      %s204 = int_to_ptr.hbm [resolvable:$true] %s203
      %s205 = sshll.u32 [#allocation23], 4
      %s206 = int_to_ptr.vmem [resolvable:$true] %s205
      %211 = dma.hbm_to_vmem [thread:$0]  %s204, 98304, %s206, [#allocation24], 256, 256, 16
    $region65: #{idql_diffusion_forward.1} parent=1 // pred_fallthru
      _
    // Predicated region
    $region66: #{idql_diffusion_forward.1} parent=1 // pred_check
      _
    $region67: #{idql_diffusion_forward.1} parent=1 // pred_check_branch
      %213 = sbr.rel (0) target = $region69
    $region68: #{idql_diffusion_forward.1} parent=1 // pred_region
      %215 = vsyncadd [#allocation24], 0
      %s216 = sshll.u32 %s16, 4
      %s217 = int_to_ptr.hbm [resolvable:$true] %s216
      %s218 = sshll.u32 [#allocation25], 4
      %s219 = int_to_ptr.vmem [resolvable:$true] %s218
      %224 = dma.hbm_to_vmem [thread:$0]  %s217, 96, %s219, [#allocation24], 32, 32, 2
    $region69: #{idql_diffusion_forward.1} parent=1 // pred_fallthru
      _
    // Predicated region
    $region70: #{idql_diffusion_forward.1} parent=1 // pred_check
      _
    $region71: #{idql_diffusion_forward.1} parent=1 // pred_check_branch
      %226 = sbr.rel (0) target = $region73
    $region72: #{idql_diffusion_forward.1} parent=1 // pred_region
      %228 = vsyncadd [#allocation27], 0
      %s229 = sshll.u32 %s17, 4
      %s230 = int_to_ptr.hbm [resolvable:$true] %s229
      %s231 = sshll.u32 [#allocation26], 4
      %s232 = int_to_ptr.vmem [resolvable:$true] %s231
      %237 = dma.hbm_to_vmem [thread:$0]  %s230, 4096, %s232, [#allocation27], 128, 128, 8
    $region73: #{idql_diffusion_forward.1} parent=1 // pred_fallthru
      _
    // Predicated region
    $region74: #{idql_diffusion_forward.1} parent=1 // pred_check
      _
    $region75: #{idql_diffusion_forward.1} parent=1 // pred_check_branch
      %239 = sbr.rel (0) target = $region77
    $region76: #{idql_diffusion_forward.1} parent=1 // pred_region
      %241 = vsyncadd [#allocation27], 0
      %s243 = sshll.u32 %s18, 4
      %s244 = int_to_ptr.hbm [resolvable:$true] %s243
      %s245 = sshll.u32 [#allocation28], 4
      %s246 = int_to_ptr.vmem [resolvable:$true] %s245
      %248 = dma.hbm_to_vmem [thread:$0]  %s244, 16, %s246, [#allocation27]
    $region77: #{idql_diffusion_forward.1} parent=1 // pred_fallthru
      _
    // Predicated region
    $region78: #{idql_diffusion_forward.1} parent=1 // pred_check
      _
    $region79: #{idql_diffusion_forward.1} parent=1 // pred_check_branch
      %250 = sbr.rel (0) target = $region81
    $region80: #{idql_diffusion_forward.1} parent=1 // pred_region
      %252 = dma.done [#allocation3], 16
    $region81: #{idql_diffusion_forward.1} parent=1 // pred_fallthru
      _
    // Predicated region
    $region82: #{idql_diffusion_forward.1} parent=1 // pred_check
      _
    $region83: #{idql_diffusion_forward.1} parent=1 // pred_check_branch
      %254 = sbr.rel (0) target = $region85
    $region84: #{idql_diffusion_forward.1} parent=1 // pred_region
      %256 = dma.done [#allocation6], 512
    $region85: #{idql_diffusion_forward.1} parent=1 // pred_fallthru
      _
    // Predicated region
    $region86: #{idql_diffusion_forward.1} parent=1 // pred_check
      _
    $region87: #{idql_diffusion_forward.1} parent=1 // pred_check_branch
      %258 = sbr.rel (0) target = $region89
    $region88: #{idql_diffusion_forward.1} parent=1 // pred_region
      %260 = dma.done [#allocation6], 512
    $region89: #{idql_diffusion_forward.1} parent=1 // pred_fallthru
      _
    // Predicated region
    $region90: #{idql_diffusion_forward.1} parent=1 // pred_check
      _
    $region91: #{idql_diffusion_forward.1} parent=1 // pred_check_branch
      %262 = sbr.rel (0) target = $region93
    $region92: #{idql_diffusion_forward.1} parent=1 // pred_region
      %264 = dma.done [#allocation9], 16
    $region93: #{idql_diffusion_forward.1} parent=1 // pred_fallthru
      _
    // Predicated region
    $region94: #{idql_diffusion_forward.1} parent=1 // pred_check
      _
    $region95: #{idql_diffusion_forward.1} parent=1 // pred_check_branch
      %266 = sbr.rel (0) target = $region97
    $region96: #{idql_diffusion_forward.1} parent=1 // pred_region
      %268 = dma.done [#allocation9], 2048
    $region97: #{idql_diffusion_forward.1} parent=1 // pred_fallthru
      _
    // Predicated region
    $region98: #{idql_diffusion_forward.1} parent=1 // pred_check
      _
    $region99: #{idql_diffusion_forward.1} parent=1 // pred_check_branch
      %270 = sbr.rel (0) target = $region101
    $region100: #{idql_diffusion_forward.1} parent=1 // pred_region
      %272 = dma.done [#allocation12], 16
    $region101: #{idql_diffusion_forward.1} parent=1 // pred_fallthru
      _
    // Predicated region
    $region102: #{idql_diffusion_forward.1} parent=1 // pred_check
      _
    $region103: #{idql_diffusion_forward.1} parent=1 // pred_check_branch
      %274 = sbr.rel (0) target = $region105
    $region104: #{idql_diffusion_forward.1} parent=1 // pred_region
      %276 = dma.done [#allocation12], 4096
    $region105: #{idql_diffusion_forward.1} parent=1 // pred_fallthru
      _
    // Predicated region
    $region106: #{idql_diffusion_forward.1} parent=1 // pred_check
      _
    $region107: #{idql_diffusion_forward.1} parent=1 // pred_check_branch
      %278 = sbr.rel (0) target = $region109
    $region108: #{idql_diffusion_forward.1} parent=1 // pred_region
      %280 = dma.done [#allocation15], 4096
    $region109: #{idql_diffusion_forward.1} parent=1 // pred_fallthru
      _
    // Predicated region
    $region110: #{idql_diffusion_forward.1} parent=1 // pred_check
      _
    $region111: #{idql_diffusion_forward.1} parent=1 // pred_check_branch
      %282 = sbr.rel (0) target = $region113
    $region112: #{idql_diffusion_forward.1} parent=1 // pred_region
      %284 = dma.done [#allocation15], 32
    $region113: #{idql_diffusion_forward.1} parent=1 // pred_fallthru
      _
    // Predicated region
    $region114: #{idql_diffusion_forward.1} parent=1 // pred_check
      _
    $region115: #{idql_diffusion_forward.1} parent=1 // pred_check_branch
      %286 = sbr.rel (0) target = $region117
    $region116: #{idql_diffusion_forward.1} parent=1 // pred_region
      %288 = dma.done [#allocation18], 96
    $region117: #{idql_diffusion_forward.1} parent=1 // pred_fallthru
      _
    // Predicated region
    $region118: #{idql_diffusion_forward.1} parent=1 // pred_check
      _
    $region119: #{idql_diffusion_forward.1} parent=1 // pred_check_branch
      %290 = sbr.rel (0) target = $region121
    $region120: #{idql_diffusion_forward.1} parent=1 // pred_region
      %292 = dma.done [#allocation18], 96
    $region121: #{idql_diffusion_forward.1} parent=1 // pred_fallthru
      _
    // Predicated region
    $region122: #{idql_diffusion_forward.1} parent=1 // pred_check
      _
    $region123: #{idql_diffusion_forward.1} parent=1 // pred_check_branch
      %294 = sbr.rel (0) target = $region125
    $region124: #{idql_diffusion_forward.1} parent=1 // pred_region
      %296 = dma.done [#allocation21], 98304
    $region125: #{idql_diffusion_forward.1} parent=1 // pred_fallthru
      _
    // Predicated region
    $region126: #{idql_diffusion_forward.1} parent=1 // pred_check
      _
    $region127: #{idql_diffusion_forward.1} parent=1 // pred_check_branch
      %298 = sbr.rel (0) target = $region129
    $region128: #{idql_diffusion_forward.1} parent=1 // pred_region
      %300 = dma.done [#allocation21], 384
    $region129: #{idql_diffusion_forward.1} parent=1 // pred_fallthru
      _
    // Predicated region
    $region130: #{idql_diffusion_forward.1} parent=1 // pred_check
      _
    $region131: #{idql_diffusion_forward.1} parent=1 // pred_check_branch
      %302 = sbr.rel (0) target = $region133
    $region132: #{idql_diffusion_forward.1} parent=1 // pred_region
      %304 = dma.done [#allocation24], 98304
    $region133: #{idql_diffusion_forward.1} parent=1 // pred_fallthru
      _
    // Predicated region
    $region134: #{idql_diffusion_forward.1} parent=1 // pred_check
      _
    $region135: #{idql_diffusion_forward.1} parent=1 // pred_check_branch
      %306 = sbr.rel (0) target = $region137
    $region136: #{idql_diffusion_forward.1} parent=1 // pred_region
      %308 = dma.done [#allocation24], 96
    $region137: #{idql_diffusion_forward.1} parent=1 // pred_fallthru
      _
    // Predicated region
    $region138: #{idql_diffusion_forward.1} parent=1 // pred_check
      _
    $region139: #{idql_diffusion_forward.1} parent=1 // pred_check_branch
      %310 = sbr.rel (0) target = $region141
    $region140: #{idql_diffusion_forward.1} parent=1 // pred_region
      %312 = dma.done [#allocation27], 4096
    $region141: #{idql_diffusion_forward.1} parent=1 // pred_fallthru
      _
    // Predicated region
    $region142: #{idql_diffusion_forward.1} parent=1 // pred_check
      _
    $region143: #{idql_diffusion_forward.1} parent=1 // pred_check_branch
      %314 = sbr.rel (0) target = $region145
    $region144: #{idql_diffusion_forward.1} parent=1 // pred_region
      %316 = dma.done [#allocation27], 16
    $region145: #{idql_diffusion_forward.1} parent=1 // pred_fallthru
      _
    %v317 = vld [vmem:[%s0] sm:$0x3]
    %v318 = vld [vmem:[#allocation2] sm:$0x1]
    %320 = vset.pattern.permute.xlu0 0
    %321 = vperm.xlu0 %320, %v317
    %v322 = vpop.permute.xlu0 %321
    %v325 = vperm.slane %v318, 0
    %v327 = vmul.f32 %v322, %v325
    %v328 = vand.u32 2147483647, %v327
    %vm329 = vcmp.le.f32.partialorder %v328, 0.7853982
    %vm330 = vcmp.lt.s32.totalorder %v327, 0
    %v331 = vand.u32 %v327, 2139095040
    %v332 = vshrl.u32 %v331, 23
    %v333 = vsub.s32 %v332, 127
    %v334 = vand.u32 2147483647, %v327
    %v335 = vand.u32 %v334, 8388607
    %v336 = vor.u32 %v335, 8388608
    %v337 = vsub.s32 0, %v336
    %v338 = vadd.s32 %v333, 1
    %vm339 = vcmp.gt.s32.totalorder %v338, 0
    %v340 = vsel %vm339, %v338, 0
    %v341 = vshrl.u32 %v340, 5
    %v342 = vand.u32 %v340, 31
    %v343 = vsub.s32 32, %v342
    %v344 = vshrl.u32 683565275, %v343
    %v345 = vshll.u32 683565275, %v342
    %v346 = vshrl.u32 2475754826, %v343
    %v347 = vor.u32 %v345, %v346
    %v348 = vshll.u32 2475754826, %v342
    %v349 = vshrl.u32 2131351028, %v343
    %v350 = vor.u32 %v348, %v349
    %v351 = vshll.u32 2131351028, %v342
    %v352 = vshrl.u32 2102212464, %v343
    %v353 = vor.u32 %v351, %v352
    %v354 = vshll.u32 2102212464, %v342
    %v355 = vshrl.u32 920167782, %v343
    %v356 = vor.u32 %v354, %v355
    %v357 = vshll.u32 920167782, %v342
    %v358 = vshrl.u32 1326507024, %v343
    %v359 = vor.u32 %v357, %v358
    %vm360 = vcmp.lt.s32.totalorder %v341, 1
    %vm361 = vcmp.lt.s32.totalorder %v341, 2
    %vm362 = vcmp.lt.s32.totalorder %v341, 3
    %vm363 = vcmp.lt.s32.totalorder %v341, 4
    %v364 = vsel %vm360, %v344, %v347
    %v365 = vsel %vm363, %v353, 2102212464
    %v366 = vsel %vm362, %v350, %v365
    %v367 = vsel %vm361, %v364, %v366
    %v368 = vsel %vm360, %v347, %v350
    %v369 = vsel %vm363, %v356, 920167782
    %v370 = vsel %vm362, %v353, %v369
    %v371 = vsel %vm361, %v368, %v370
    %v372 = vsel %vm360, %v350, %v353
    %v373 = vsel %vm363, %v359, 1326507024
    %v374 = vsel %vm362, %v356, %v373
    %v375 = vsel %vm361, %v372, %v374
    %v376 = vshll.u32 %v336, 8
    %v377 = vand.u32 %v376, 65535
    %v378 = vshrl.u32 %v376, 16
    %v379 = vand.u32 %v375, 65535
    %v380 = vshrl.u32 %v375, 16
    %v381 = vmul.u32 %v377, %v379
    %v382 = vmul.u32 %v377, %v380
    %v383 = vmul.u32 %v378, %v379
    %v384 = vmul.u32 %v378, %v380
    %v385 = vshll.u32 %v382, 16
    %v386 = vshrl.u32 %v382, 16
    %v387 = vshll.u32 %v383, 16
    %v388 = vshrl.u32 %v383, 16
    %vm389 = vc.u32 %v381, %v385
    %v390 = vsel %vm389, 1, 0
    %v391 = vadd.s32 %v381, %v385
    %v392 = vadd.s32 %v384, %v390
    %vm393 = vc.u32 %v391, %v387
    %v394 = vsel %vm393, 1, 0
    %v395 = vadd.s32 %v391, %v387
    %v396 = vadd.s32 %v392, %v394
    %v397 = vadd.s32 %v396, %v386
    %v398 = vadd.s32 %v397, %v388
    %v399 = vand.u32 %v376, 65535
    %v400 = vshrl.u32 %v376, 16
    %v401 = vand.u32 %v371, 65535
    %v402 = vshrl.u32 %v371, 16
    %v403 = vmul.u32 %v399, %v401
    %v404 = vmul.u32 %v399, %v402
    %v405 = vmul.u32 %v400, %v401
    %v406 = vmul.u32 %v400, %v402
    %v407 = vshll.u32 %v404, 16
    %v408 = vshrl.u32 %v404, 16
    %v409 = vshll.u32 %v405, 16
    %v410 = vshrl.u32 %v405, 16
    %vm411 = vc.u32 %v403, %v407
    %v412 = vsel %vm411, 1, 0
    %v413 = vadd.s32 %v403, %v407
    %v414 = vadd.s32 %v406, %v412
    %vm415 = vc.u32 %v413, %v409
    %v416 = vsel %vm415, 1, 0
    %v417 = vadd.s32 %v413, %v409
    %v418 = vadd.s32 %v414, %v416
    %v419 = vadd.s32 %v418, %v408
    %v420 = vadd.s32 %v419, %v410
    %v421 = vmul.u32 %v376, %v367
    %v422 = vadd.s32 %v398, %v417
    %vm423 = vc.u32 %v398, %v417
    %v424 = vadd.s32 %v420, 1
    %v425 = vsel %vm423, %v424, %v420
    %v426 = vadd.s32 %v421, %v425
    %v427 = vadd.s32 %v426, 536870912
    %v428 = vshrl.u32 %v427, 30
    %v429 = vshll.u32 %v428, 30
    %v430 = vsub.s32 %v426, %v429
    %vm431 = vcmp.lt.s32.totalorder %v430, 0
    %v432 = vsub.s32 0, %v430
    %v433 = vsel %vm431, %v432, %v430
    %v434 = vclz %v433
    %v435 = vsub.s32 %v434, 2
    %vm436 = vcmp.gt.s32.totalorder 0, %v435
    %v437 = vsel %vm436, 0, %v435
    %v438 = vsub.s32 32, %v437
    %v439 = vshll.u32 %v430, %v437
    %v440 = vshrl.u32 %v422, %v438
    %v441 = vor.u32 %v439, %v440
    %v442 = vsub.s32 4294967266, %v437
    %v443 = vadd.s32 %v442, 127
    %v444 = vshll.u32 %v443, 23
    %v445 = vor.u32 4788187, %v444
    %v446 = vand.u32 2147483647, %v445
    %v448 = vcvt.s32.f32 %v441
    %v449 = vmul.f32 %v448, %v446
    %v450 = vxor.u32 %v449, 2147483648
    %v451 = vsel %vm330, %v450, %v449
    %v452 = vsub.s32 4, %v428
    %v453 = vsel %vm330, %v452, %v428
    %v454 = vsel %vm329, %v327, %v451
    %v455 = vsel %vm329, 0, %v453
    %v456 = vmul.f32 %v454, %v454
    %v457 = vmul.f32 %v456, -0.001358992
    %v458 = vadd.f32 %v457, 0.041655596
    %v459 = vmul.f32 %v456, %v458
    %v460 = vadd.f32 %v459, -0.4999988
    %v461 = vmul.f32 %v456, %v460
    %v462 = vadd.f32 1.0, %v461
    %v463 = vmul.f32 %v454, %v454
    %v464 = vmul.f32 %v463, -0.00019511016
    %v465 = vadd.f32 %v464, 0.008332121
    %v466 = vmul.f32 %v463, %v465
    %v467 = vadd.f32 %v466, -0.16666654
    %v468 = vmul.f32 %v463, %v467
    %v469 = vadd.f32 %v468, 1.0
    %v470 = vmul.f32 %v469, %v454
    %vm471 = vweird.f32 %v327
    %v472 = vand.u32 %v455, 3
    %vm473 = vcmp.lt.s32.totalorder %v472, 2
    %vm474 = vcmp.eq.s32.totalorder %v472, 0
    %v475 = vxor.u32 %v470, 2147483648
    %v476 = vsel %vm474, %v462, %v475
    %vm477 = vcmp.eq.s32.totalorder %v472, 2
    %v478 = vxor.u32 %v462, 2147483648
    %v479 = vsel %vm477, %v478, %v470
    %v480 = vsel %vm473, %v476, %v479
    %v481 = vsel %vm471, nan, %v480
    %v482 = vand.u32 2147483647, %v327
    %vm483 = vcmp.le.f32.partialorder %v482, 0.7853982
    %vm484 = vcmp.lt.s32.totalorder %v327, 0
    %v485 = vand.u32 %v327, 2139095040
    %v486 = vshrl.u32 %v485, 23
    %v487 = vsub.s32 %v486, 127
    %v488 = vand.u32 2147483647, %v327
    %v489 = vand.u32 %v488, 8388607
    %v490 = vor.u32 %v489, 8388608
    %v491 = vsub.s32 0, %v490
    %v492 = vadd.s32 %v487, 1
    %vm493 = vcmp.gt.s32.totalorder %v492, 0
    %v494 = vsel %vm493, %v492, 0
    %v495 = vshrl.u32 %v494, 5
    %v496 = vand.u32 %v494, 31
    %v497 = vsub.s32 32, %v496
    %v498 = vshrl.u32 683565275, %v497
    %v499 = vshll.u32 683565275, %v496
    %v500 = vshrl.u32 2475754826, %v497
    %v501 = vor.u32 %v499, %v500
    %v502 = vshll.u32 2475754826, %v496
    %v503 = vshrl.u32 2131351028, %v497
    %v504 = vor.u32 %v502, %v503
    %v505 = vshll.u32 2131351028, %v496
    %v506 = vshrl.u32 2102212464, %v497
    %v507 = vor.u32 %v505, %v506
    %v508 = vshll.u32 2102212464, %v496
    %v509 = vshrl.u32 920167782, %v497
    %v510 = vor.u32 %v508, %v509
    %v511 = vshll.u32 920167782, %v496
    %v512 = vshrl.u32 1326507024, %v497
    %v513 = vor.u32 %v511, %v512
    %vm514 = vcmp.lt.s32.totalorder %v495, 1
    %vm515 = vcmp.lt.s32.totalorder %v495, 2
    %vm516 = vcmp.lt.s32.totalorder %v495, 3
    %vm517 = vcmp.lt.s32.totalorder %v495, 4
    %v518 = vsel %vm514, %v498, %v501
    %v519 = vsel %vm517, %v507, 2102212464
    %v520 = vsel %vm516, %v504, %v519
    %v521 = vsel %vm515, %v518, %v520
    %v522 = vsel %vm514, %v501, %v504
    %v523 = vsel %vm517, %v510, 920167782
    %v524 = vsel %vm516, %v507, %v523
    %v525 = vsel %vm515, %v522, %v524
    %v526 = vsel %vm514, %v504, %v507
    %v527 = vsel %vm517, %v513, 1326507024
    %v528 = vsel %vm516, %v510, %v527
    %v529 = vsel %vm515, %v526, %v528
    %v530 = vshll.u32 %v490, 8
    %v531 = vand.u32 %v530, 65535
    %v532 = vshrl.u32 %v530, 16
    %v533 = vand.u32 %v529, 65535
    %v534 = vshrl.u32 %v529, 16
    %v535 = vmul.u32 %v531, %v533
    %v536 = vmul.u32 %v531, %v534
    %v537 = vmul.u32 %v532, %v533
    %v538 = vmul.u32 %v532, %v534
    %v539 = vshll.u32 %v536, 16
    %v540 = vshrl.u32 %v536, 16
    %v541 = vshll.u32 %v537, 16
    %v542 = vshrl.u32 %v537, 16
    %vm543 = vc.u32 %v535, %v539
    %v544 = vsel %vm543, 1, 0
    %v545 = vadd.s32 %v535, %v539
    %v546 = vadd.s32 %v538, %v544
    %vm547 = vc.u32 %v545, %v541
    %v548 = vsel %vm547, 1, 0
    %v549 = vadd.s32 %v545, %v541
    %v550 = vadd.s32 %v546, %v548
    %v551 = vadd.s32 %v550, %v540
    %v552 = vadd.s32 %v551, %v542
    %v553 = vand.u32 %v530, 65535
    %v554 = vshrl.u32 %v530, 16
    %v555 = vand.u32 %v525, 65535
    %v556 = vshrl.u32 %v525, 16
    %v557 = vmul.u32 %v553, %v555
    %v558 = vmul.u32 %v553, %v556
    %v559 = vmul.u32 %v554, %v555
    %v560 = vmul.u32 %v554, %v556
    %v561 = vshll.u32 %v558, 16
    %v562 = vshrl.u32 %v558, 16
    %v563 = vshll.u32 %v559, 16
    %v564 = vshrl.u32 %v559, 16
    %vm565 = vc.u32 %v557, %v561
    %v566 = vsel %vm565, 1, 0
    %v567 = vadd.s32 %v557, %v561
    %v568 = vadd.s32 %v560, %v566
    %vm569 = vc.u32 %v567, %v563
    %v570 = vsel %vm569, 1, 0
    %v571 = vadd.s32 %v567, %v563
    %v572 = vadd.s32 %v568, %v570
    %v573 = vadd.s32 %v572, %v562
    %v574 = vadd.s32 %v573, %v564
    %v575 = vmul.u32 %v530, %v521
    %v576 = vadd.s32 %v552, %v571
    %vm577 = vc.u32 %v552, %v571
    %v578 = vadd.s32 %v574, 1
    %v579 = vsel %vm577, %v578, %v574
    %v580 = vadd.s32 %v575, %v579
    %v581 = vadd.s32 %v580, 536870912
    %v582 = vshrl.u32 %v581, 30
    %v583 = vshll.u32 %v582, 30
    %v584 = vsub.s32 %v580, %v583
    %vm585 = vcmp.lt.s32.totalorder %v584, 0
    %v586 = vsub.s32 0, %v584
    %v587 = vsel %vm585, %v586, %v584
    %v588 = vclz %v587
    %v589 = vsub.s32 %v588, 2
    %vm590 = vcmp.gt.s32.totalorder 0, %v589
    %v591 = vsel %vm590, 0, %v589
    %v592 = vsub.s32 32, %v591
    %v593 = vshll.u32 %v584, %v591
    %v594 = vshrl.u32 %v576, %v592
    %v595 = vor.u32 %v593, %v594
    %v596 = vsub.s32 4294967266, %v591
    %v597 = vadd.s32 %v596, 127
    %v598 = vshll.u32 %v597, 23
    %v599 = vor.u32 4788187, %v598
    %v600 = vand.u32 2147483647, %v599
    %v602 = vcvt.s32.f32 %v595
    %v603 = vmul.f32 %v602, %v600
    %v604 = vxor.u32 %v603, 2147483648
    %v605 = vsel %vm484, %v604, %v603
    %v606 = vsub.s32 4, %v582
    %v607 = vsel %vm484, %v606, %v582
    %v608 = vsel %vm483, %v327, %v605
    %v609 = vsel %vm483, 0, %v607
    %v610 = vmul.f32 %v608, %v608
    %v611 = vmul.f32 %v610, -0.001358992
    %v612 = vadd.f32 %v611, 0.041655596
    %v613 = vmul.f32 %v610, %v612
    %v614 = vadd.f32 %v613, -0.4999988
    %v615 = vmul.f32 %v610, %v614
    %v616 = vadd.f32 1.0, %v615
    %v617 = vmul.f32 %v608, %v608
    %v618 = vmul.f32 %v617, -0.00019511016
    %v619 = vadd.f32 %v618, 0.008332121
    %v620 = vmul.f32 %v617, %v619
    %v621 = vadd.f32 %v620, -0.16666654
    %v622 = vmul.f32 %v617, %v621
    %v623 = vadd.f32 %v622, 1.0
    %v624 = vmul.f32 %v623, %v608
    %vm625 = vweird.f32 %v327
    %v626 = vadd.s32 %v609, 3
    %v627 = vand.u32 %v626, 3
    %vm628 = vcmp.lt.s32.totalorder %v627, 2
    %vm629 = vcmp.eq.s32.totalorder %v627, 0
    %v630 = vxor.u32 %v624, 2147483648
    %v631 = vsel %vm629, %v616, %v630
    %vm632 = vcmp.eq.s32.totalorder %v627, 2
    %v633 = vxor.u32 %v616, 2147483648
    %v634 = vsel %vm632, %v633, %v624
    %v635 = vsel %vm628, %v631, %v634
    %v636 = vsel %vm625, nan, %v635
    %v637 = vld [vmem:[#allocation5] sm:$0xff]
    %v638 = vld [vmem:[#allocation5 + $0x8] sm:$0xff]
    %v639 = vld [vmem:[#allocation5 + $0x10] sm:$0xff]
    %v640 = vld [vmem:[#allocation5 + $0x18] sm:$0xff]
    %v641 = vld [vmem:[#allocation7] sm:$0xff]
    %v642 = vld [vmem:[#allocation7 + $0x8] sm:$0xff]
    %v643 = vld [vmem:[#allocation7 + $0x10] sm:$0xff]
    %v644 = vld [vmem:[#allocation7 + $0x18] sm:$0xff]
    %vm645 = vcmask 261120
    %v647 = vsel %vm645, %v636, 0
    %649 = vmatpush.msra.mxu0 0.0
    %650 = vmatpush.msra.mxu0 0.0
    %651 = vmatpush.msra.mxu0 0.0
    %652 = vmatpush.msra.mxu0 0.0
    %653 = vmatpush.msra.mxu0 0.0
    %654 = vmatpush.msra.mxu0 0.0
    %655 = vmatpush.msra.mxu0 0.0
    %656 = vmatpush.msra.mxu0 0.0
    %657 = vmatpush.msra.mxu0 0.0
    %658 = vmatpush.msra.mxu0 0.0
    %659 = vmatpush.msra.mxu0 0.0
    %660 = vmatpush.msra.mxu0 0.0
    %661 = vmatpush.msra.mxu0 %v644
    %662 = vmatpush.msra.mxu0 %v643
    %663 = vmatpush.msra.mxu0 %v642
    %664 = vmatpush.msra.mxu0 %v641
    %665 = vmatmul.f32.gmra.mxu0 %v647
    %v666 = vpop.f32.mrf.mxu0
    %v667 = vadd.f32 0.0, %v666
    %668 = vdwg.mxu0
    %v670 = vsel %vm645, %v481, 0
    %672 = vmatpush.msra.mxu0 0.0
    %673 = vmatpush.msra.mxu0 0.0
    %674 = vmatpush.msra.mxu0 0.0
    %675 = vmatpush.msra.mxu0 0.0
    %676 = vmatpush.msra.mxu0 0.0
    %677 = vmatpush.msra.mxu0 0.0
    %678 = vmatpush.msra.mxu0 0.0
    %679 = vmatpush.msra.mxu0 0.0
    %680 = vmatpush.msra.mxu0 0.0
    %681 = vmatpush.msra.mxu0 0.0
    %682 = vmatpush.msra.mxu0 0.0
    %683 = vmatpush.msra.mxu0 0.0
    %684 = vmatpush.msra.mxu0 %v640
    %685 = vmatpush.msra.mxu0 %v639
    %686 = vmatpush.msra.mxu0 %v638
    %687 = vmatpush.msra.mxu0 %v637
    %688 = vmatmul.f32.gmra.mxu0 %v670
    %v689 = vpop.f32.mrf.mxu0
    %v690 = vadd.f32 %v667, %v689
    %691 = vdwg.mxu0
    %v692 = vld [vmem:[#allocation8] sm:$0x1]
    %v694 = vperm.slane %v692, 0
    %v696 = vadd.f32 %v690, %v694
    %vm697 = vcmp.gt.f32.partialorder %v696, 20.0
    %v698 = vmin.f32 %v696, 20.0
    %v699 = vmul.f32 %v698, 1.442695
    %v700 = vpow.pop %v699
    %v701 = vadd.f32 %v700, 1.0
    %v702 = vlog2.pop %v701
    %v703 = vmul.f32 %v702, 0.6931472
    %v704 = vmul.f32 -0.5, %v700
    %v705 = vadd.f32 %v704, 1.0
    %v706 = vmul.f32 %v705, %v700
    %v707 = vand.u32 2147483647, %v700
    %vm708 = vcmp.lt.f32.partialorder %v707, 0.0004427343
    %v709 = vsel %vm708, %v706, %v703
    %v710 = vsel %vm697, %v696, %v709
    %v711 = vtanh.pop %v710
    %v712 = vmul.f32 %v696, %v711
    %v713 = vld [vmem:[#allocation10] sm:$0xff]
    %v714 = vld [vmem:[#allocation10 + $0x8] sm:$0xff]
    %v715 = vld [vmem:[#allocation10 + $0x10] sm:$0xff]
    %v716 = vld [vmem:[#allocation10 + $0x18] sm:$0xff]
    %v717 = vld [vmem:[#allocation10 + $0x20] sm:$0xff]
    %v718 = vld [vmem:[#allocation10 + $0x28] sm:$0xff]
    %v719 = vld [vmem:[#allocation10 + $0x30] sm:$0xff]
    %v720 = vld [vmem:[#allocation10 + $0x38] sm:$0xff]
    %v721 = vld [vmem:[#allocation10 + $0x40] sm:$0xff]
    %v722 = vld [vmem:[#allocation10 + $0x48] sm:$0xff]
    %v723 = vld [vmem:[#allocation10 + $0x50] sm:$0xff]
    %v724 = vld [vmem:[#allocation10 + $0x58] sm:$0xff]
    %v725 = vld [vmem:[#allocation10 + $0x60] sm:$0xff]
    %v726 = vld [vmem:[#allocation10 + $0x68] sm:$0xff]
    %v727 = vld [vmem:[#allocation10 + $0x70] sm:$0xff]
    %v728 = vld [vmem:[#allocation10 + $0x78] sm:$0xff]
    %v729 = vld [vmem:[#allocation11] sm:$0x1]
    %v731 = vperm.slane %v729, 0
    %733 = vmatpush.msra.mxu0 %v728
    %734 = vmatpush.msra.mxu0 %v727
    %735 = vmatpush.msra.mxu0 %v726
    %736 = vmatpush.msra.mxu0 %v725
    %737 = vmatpush.msra.mxu0 %v724
    %738 = vmatpush.msra.mxu0 %v723
    %739 = vmatpush.msra.mxu0 %v722
    %740 = vmatpush.msra.mxu0 %v721
    %741 = vmatpush.msra.mxu0 %v720
    %742 = vmatpush.msra.mxu0 %v719
    %743 = vmatpush.msra.mxu0 %v718
    %744 = vmatpush.msra.mxu0 %v717
    %745 = vmatpush.msra.mxu0 %v716
    %746 = vmatpush.msra.mxu0 %v715
    %747 = vmatpush.msra.mxu0 %v714
    %748 = vmatpush.msra.mxu0 %v713
    %749 = vmatmul.f32.gmra.mxu0 %v712
    %v750 = vpop.f32.mrf.mxu0
    %v751 = vadd.f32 %v731, %v750
    %752 = vdwg.mxu0
    %v753 = vld [vmem:[#allocation13] sm:$0xff]
    %v754 = vld [vmem:[#allocation13 + $0x8] sm:$0xff]
    %v755 = vld [vmem:[#allocation13 + $0x10] sm:$0xff]
    %v756 = vld [vmem:[#allocation13 + $0x18] sm:$0xff]
    %v757 = vld [vmem:[#allocation13 + $0x20] sm:$0xff]
    %v758 = vld [vmem:[#allocation13 + $0x28] sm:$0xff]
    %v759 = vld [vmem:[#allocation13 + $0x30] sm:$0xff]
    %v760 = vld [vmem:[#allocation13 + $0x38] sm:$0xff]
    %v761 = vld [vmem:[#allocation13 + $0x40] sm:$0xff]
    %v762 = vld [vmem:[#allocation13 + $0x48] sm:$0xff]
    %v763 = vld [vmem:[#allocation13 + $0x50] sm:$0xff]
    %v764 = vld [vmem:[#allocation13 + $0x58] sm:$0xff]
    %v765 = vld [vmem:[#allocation13 + $0x60] sm:$0xff]
    %v766 = vld [vmem:[#allocation13 + $0x68] sm:$0xff]
    %v767 = vld [vmem:[#allocation13 + $0x70] sm:$0xff]
    %v768 = vld [vmem:[#allocation13 + $0x78] sm:$0xff]
    %v769 = vld [vmem:[#allocation13 + $0x80] sm:$0xff]
    %v770 = vld [vmem:[#allocation13 + $0x88] sm:$0xff]
    %v771 = vld [vmem:[#allocation13 + $0x90] sm:$0xff]
    %v772 = vld [vmem:[#allocation13 + $0x98] sm:$0xff]
    %v773 = vld [vmem:[#allocation13 + $0xa0] sm:$0xff]
    %v774 = vld [vmem:[#allocation13 + $0xa8] sm:$0xff]
    %v775 = vld [vmem:[#allocation13 + $0xb0] sm:$0xff]
    %v776 = vld [vmem:[#allocation13 + $0xb8] sm:$0xff]
    %v777 = vld [vmem:[#allocation13 + $0xc0] sm:$0xff]
    %v778 = vld [vmem:[#allocation13 + $0xc8] sm:$0xff]
    %v779 = vld [vmem:[#allocation13 + $0xd0] sm:$0xff]
    %v780 = vld [vmem:[#allocation13 + $0xd8] sm:$0xff]
    %v781 = vld [vmem:[#allocation13 + $0xe0] sm:$0xff]
    %v782 = vld [vmem:[#allocation13 + $0xe8] sm:$0xff]
    %v783 = vld [vmem:[#allocation13 + $0xf0] sm:$0xff]
    %v784 = vld [vmem:[#allocation13 + $0xf8] sm:$0xff]
    %v785 = vld [vmem:[%s1] sm:$0x3]
    %v786 = vld [vmem:[#allocation14] sm:$0xff]
    %v787 = vld [vmem:[#allocation14 + $0x8] sm:$0xff]
    %v788 = vld [vmem:[#allocation14 + $0x10] sm:$0xff]
    %v789 = vld [vmem:[#allocation14 + $0x18] sm:$0xff]
    %v790 = vld [vmem:[#allocation14 + $0x20] sm:$0xff]
    %v791 = vld [vmem:[#allocation14 + $0x28] sm:$0xff]
    %v792 = vld [vmem:[#allocation14 + $0x30] sm:$0xff]
    %v793 = vld [vmem:[#allocation14 + $0x38] sm:$0xff]
    %v794 = vld [vmem:[#allocation14 + $0x40] sm:$0xff]
    %v795 = vld [vmem:[#allocation14 + $0x48] sm:$0xff]
    %v796 = vld [vmem:[#allocation14 + $0x50] sm:$0xff]
    %v797 = vld [vmem:[#allocation14 + $0x58] sm:$0xff]
    %v798 = vld [vmem:[#allocation14 + $0x60] sm:$0xff]
    %v799 = vld [vmem:[#allocation14 + $0x68] sm:$0xff]
    %v800 = vld [vmem:[#allocation14 + $0x70] sm:$0xff]
    %v801 = vld [vmem:[#allocation14 + $0x78] sm:$0xff]
    %v802 = vld [vmem:[#allocation14 + $0x80] sm:$0xff]
    %v803 = vld [vmem:[#allocation14 + $0x88] sm:$0xff]
    %v804 = vld [vmem:[#allocation14 + $0x90] sm:$0xff]
    %v805 = vld [vmem:[#allocation14 + $0x98] sm:$0xff]
    %v806 = vld [vmem:[#allocation14 + $0xa0] sm:$0xff]
    %v807 = vld [vmem:[#allocation14 + $0xa8] sm:$0xff]
    %v808 = vld [vmem:[#allocation14 + $0xb0] sm:$0xff]
    %v809 = vld [vmem:[#allocation14 + $0xb8] sm:$0xff]
    %v810 = vld [vmem:[#allocation14 + $0xc0] sm:$0xff]
    %v811 = vld [vmem:[#allocation14 + $0xc8] sm:$0xff]
    %v812 = vld [vmem:[#allocation14 + $0xd0] sm:$0xff]
    %v813 = vld [vmem:[#allocation14 + $0xd8] sm:$0xff]
    %v814 = vld [vmem:[#allocation14 + $0xe0] sm:$0xff]
    %v815 = vld [vmem:[#allocation14 + $0xe8] sm:$0xff]
    %v816 = vld [vmem:[#allocation14 + $0xf0] sm:$0xff]
    %v817 = vld [vmem:[#allocation14 + $0xf8] sm:$0xff]
    %818 = vmatpush.msra.mxu0 %v816
    %819 = vmatpush.msra.mxu0 %v814
    %820 = vmatpush.msra.mxu0 %v812
    %821 = vmatpush.msra.mxu0 %v810
    %822 = vmatpush.msra.mxu0 %v808
    %823 = vmatpush.msra.mxu0 %v806
    %824 = vmatpush.msra.mxu0 %v804
    %825 = vmatpush.msra.mxu0 %v802
    %826 = vmatpush.msra.mxu0 %v800
    %827 = vmatpush.msra.mxu0 %v798
    %828 = vmatpush.msra.mxu0 %v796
    %829 = vmatpush.msra.mxu0 %v794
    %830 = vmatpush.msra.mxu0 %v792
    %831 = vmatpush.msra.mxu0 %v790
    %832 = vmatpush.msra.mxu0 %v788
    %833 = vmatpush.msra.mxu0 %v786
    %834 = vmatmul.f32.gmra.mxu0 %v785
    %v835 = vpop.f32.mrf.mxu0
    %v836 = vadd.f32 0.0, %v835
    %837 = vdwg.mxu0
    %838 = vmatpush.msra.mxu0 %v817
    %839 = vmatpush.msra.mxu0 %v815
    %840 = vmatpush.msra.mxu0 %v813
    %841 = vmatpush.msra.mxu0 %v811
    %842 = vmatpush.msra.mxu0 %v809
    %843 = vmatpush.msra.mxu0 %v807
    %844 = vmatpush.msra.mxu0 %v805
    %845 = vmatpush.msra.mxu0 %v803
    %846 = vmatpush.msra.mxu0 %v801
    %847 = vmatpush.msra.mxu0 %v799
    %848 = vmatpush.msra.mxu0 %v797
    %849 = vmatpush.msra.mxu0 %v795
    %850 = vmatpush.msra.mxu0 %v793
    %851 = vmatpush.msra.mxu0 %v791
    %852 = vmatpush.msra.mxu0 %v789
    %853 = vmatpush.msra.mxu0 %v787
    %854 = vmatmul.f32.gmra.mxu0 %v785
    %v855 = vpop.f32.mrf.mxu0
    %v856 = vadd.f32 0.0, %v855
    %857 = vdwg.mxu0
    %858 = vmatpush.msra.mxu0 %v783
    %859 = vmatpush.msra.mxu0 %v781
    %860 = vmatpush.msra.mxu0 %v779
    %861 = vmatpush.msra.mxu0 %v777
    %862 = vmatpush.msra.mxu0 %v775
    %863 = vmatpush.msra.mxu0 %v773
    %864 = vmatpush.msra.mxu0 %v771
    %865 = vmatpush.msra.mxu0 %v769
    %866 = vmatpush.msra.mxu0 %v767
    %867 = vmatpush.msra.mxu0 %v765
    %868 = vmatpush.msra.mxu0 %v763
    %869 = vmatpush.msra.mxu0 %v761
    %870 = vmatpush.msra.mxu0 %v759
    %871 = vmatpush.msra.mxu0 %v757
    %872 = vmatpush.msra.mxu0 %v755
    %873 = vmatpush.msra.mxu0 %v753
    %874 = vmatmul.f32.gmra.mxu0 %v751
    %v875 = vpop.f32.mrf.mxu0
    %v876 = vadd.f32 %v836, %v875
    %877 = vdwg.mxu0
    %878 = vmatpush.msra.mxu0 %v784
    %879 = vmatpush.msra.mxu0 %v782
    %880 = vmatpush.msra.mxu0 %v780
    %881 = vmatpush.msra.mxu0 %v778
    %882 = vmatpush.msra.mxu0 %v776
    %883 = vmatpush.msra.mxu0 %v774
    %884 = vmatpush.msra.mxu0 %v772
    %885 = vmatpush.msra.mxu0 %v770
    %886 = vmatpush.msra.mxu0 %v768
    %887 = vmatpush.msra.mxu0 %v766
    %888 = vmatpush.msra.mxu0 %v764
    %889 = vmatpush.msra.mxu0 %v762
    %890 = vmatpush.msra.mxu0 %v760
    %891 = vmatpush.msra.mxu0 %v758
    %892 = vmatpush.msra.mxu0 %v756
    %893 = vmatpush.msra.mxu0 %v754
    %894 = vmatmul.f32.gmra.mxu0 %v751
    %v895 = vpop.f32.mrf.mxu0
    %v896 = vadd.f32 %v856, %v895
    %897 = vdwg.mxu0
    %v898 = vld [vmem:[#allocation16] sm:$0x3]
    %v900 = vperm.slane %v898, 0
    %v901 = vperm.slane %v898, 1
    %v904 = vadd.f32 %v876, %v900
    %v905 = vadd.f32 %v896, %v901
    %vm906 = vcmask 1041408
    %v907 = vsel %vm906, %v904, 0.0
    %v908 = vsel %vm906, %v905, 0.0
    %v909 = vadd.f32 %v907, %v908
    %910 = vadd.xlane.f32.xlu0 %v909
    %v911 = vpop.xlane.xlu0 %910
    %v912 = vrcp.pop 256.0
    %v913 = vmul.f32 256.0, %v912
    %v914 = vsub.f32 1.0, %v913
    %v915 = vmul.f32 %v912, %v914
    %v916 = vadd.f32 %v912, %v915
    %vm917 = vweird.f32 %v912
    %v918 = vsel %vm917, %v912, %v916
    %v919 = vmul.f32 %v911, %v918
    %v920 = vsub.f32 %v904, %v919
    %v921 = vsub.f32 %v905, %v919
    %v922 = vmul.f32 %v920, %v920
    %v923 = vmul.f32 %v921, %v921
    %v924 = vsel %vm906, %v922, 0.0
    %v925 = vsel %vm906, %v923, 0.0
    %v926 = vadd.f32 %v924, %v925
    %927 = vadd.xlane.f32.xlu0 %v926
    %v928 = vpop.xlane.xlu0 %927
    %v929 = vmul.f32 %v928, %v918
    %v930 = vadd.f32 %v929, 1e-05
    %v931 = vrsqrt.pop %v930
    %v932 = vmul.f32 %v931, %v930
    %v933 = vmul.f32 %v932, %v931
    %v934 = vmul.f32 0.5, %v933
    %v935 = vsub.f32 1.5, %v934
    %v936 = vmul.f32 %v931, %v935
    %vm937 = vweird.f32 %v930
    %vm938 = vweird.f32 %v931
    %vm939 = vmor %vm937, %vm938
    %v940 = vsel %vm939, %v931, %v936
    %v941 = vmul.f32 %v920, %v940
    %v942 = vmul.f32 %v921, %v940
    %v943 = vld [vmem:[#allocation17] sm:$0x3]
    %v945 = vperm.slane %v943, 0
    %v946 = vperm.slane %v943, 1
    %v949 = vmul.f32 %v941, %v945
    %v950 = vmul.f32 %v942, %v946
    %v951 = vld [vmem:[#allocation19] sm:$0x3]
    %v953 = vperm.slane %v951, 0
    %v954 = vperm.slane %v951, 1
    %v957 = vadd.f32 %v949, %v953
    %v958 = vadd.f32 %v950, %v954
    %v959 = vld [vmem:[#allocation20] sm:$0xff]
    %v960 = vld [vmem:[#allocation20 + $0x8] sm:$0xff]
    %v961 = vld [vmem:[#allocation20 + $0x10] sm:$0xff]
    %v962 = vld [vmem:[#allocation20 + $0x18] sm:$0xff]
    %v963 = vld [vmem:[#allocation20 + $0x20] sm:$0xff]
    %v964 = vld [vmem:[#allocation20 + $0x28] sm:$0xff]
    %v965 = vld [vmem:[#allocation20 + $0x30] sm:$0xff]
    %v966 = vld [vmem:[#allocation20 + $0x38] sm:$0xff]
    %v967 = vld [vmem:[#allocation20 + $0x40] sm:$0xff]
    %v968 = vld [vmem:[#allocation20 + $0x48] sm:$0xff]
    %v969 = vld [vmem:[#allocation20 + $0x50] sm:$0xff]
    %v970 = vld [vmem:[#allocation20 + $0x58] sm:$0xff]
    %v971 = vld [vmem:[#allocation20 + $0x60] sm:$0xff]
    %v972 = vld [vmem:[#allocation20 + $0x68] sm:$0xff]
    %v973 = vld [vmem:[#allocation20 + $0x70] sm:$0xff]
    %v974 = vld [vmem:[#allocation20 + $0x78] sm:$0xff]
    %v975 = vld [vmem:[#allocation20 + $0x80] sm:$0xff]
    %v976 = vld [vmem:[#allocation20 + $0x88] sm:$0xff]
    %v977 = vld [vmem:[#allocation20 + $0x90] sm:$0xff]
    %v978 = vld [vmem:[#allocation20 + $0x98] sm:$0xff]
    %v979 = vld [vmem:[#allocation20 + $0xa0] sm:$0xff]
    %v980 = vld [vmem:[#allocation20 + $0xa8] sm:$0xff]
    %v981 = vld [vmem:[#allocation20 + $0xb0] sm:$0xff]
    %v982 = vld [vmem:[#allocation20 + $0xb8] sm:$0xff]
    %v983 = vld [vmem:[#allocation20 + $0xc0] sm:$0xff]
    %v984 = vld [vmem:[#allocation20 + $0xc8] sm:$0xff]
    %v985 = vld [vmem:[#allocation20 + $0xd0] sm:$0xff]
    %v986 = vld [vmem:[#allocation20 + $0xd8] sm:$0xff]
    %v987 = vld [vmem:[#allocation20 + $0xe0] sm:$0xff]
    %v988 = vld [vmem:[#allocation20 + $0xe8] sm:$0xff]
    %v989 = vld [vmem:[#allocation20 + $0xf0] sm:$0xff]
    %v990 = vld [vmem:[#allocation20 + $0xf8] sm:$0xff]
    %v991 = vld [vmem:[#allocation20 + $0x100] sm:$0xff]
    %v992 = vld [vmem:[#allocation20 + $0x108] sm:$0xff]
    %v993 = vld [vmem:[#allocation20 + $0x110] sm:$0xff]
    %v994 = vld [vmem:[#allocation20 + $0x118] sm:$0xff]
    %v995 = vld [vmem:[#allocation20 + $0x120] sm:$0xff]
    %v996 = vld [vmem:[#allocation20 + $0x128] sm:$0xff]
    %v997 = vld [vmem:[#allocation20 + $0x130] sm:$0xff]
    %v998 = vld [vmem:[#allocation20 + $0x138] sm:$0xff]
    %v999 = vld [vmem:[#allocation20 + $0x140] sm:$0xff]
    %v1000 = vld [vmem:[#allocation20 + $0x148] sm:$0xff]
    %v1001 = vld [vmem:[#allocation20 + $0x150] sm:$0xff]
    %v1002 = vld [vmem:[#allocation20 + $0x158] sm:$0xff]
    %v1003 = vld [vmem:[#allocation20 + $0x160] sm:$0xff]
    %v1004 = vld [vmem:[#allocation20 + $0x168] sm:$0xff]
    %v1005 = vld [vmem:[#allocation20 + $0x170] sm:$0xff]
    %v1006 = vld [vmem:[#allocation20 + $0x178] sm:$0xff]
    %v1007 = vld [vmem:[#allocation20 + $0x180] sm:$0xff]
    %v1008 = vld [vmem:[#allocation20 + $0x188] sm:$0xff]
    %v1009 = vld [vmem:[#allocation20 + $0x190] sm:$0xff]
    %v1010 = vld [vmem:[#allocation20 + $0x198] sm:$0xff]
    %v1011 = vld [vmem:[#allocation20 + $0x1a0] sm:$0xff]
    %v1012 = vld [vmem:[#allocation20 + $0x1a8] sm:$0xff]
    %v1013 = vld [vmem:[#allocation20 + $0x1b0] sm:$0xff]
    %v1014 = vld [vmem:[#allocation20 + $0x1b8] sm:$0xff]
    %v1015 = vld [vmem:[#allocation20 + $0x1c0] sm:$0xff]
    %v1016 = vld [vmem:[#allocation20 + $0x1c8] sm:$0xff]
    %v1017 = vld [vmem:[#allocation20 + $0x1d0] sm:$0xff]
    %v1018 = vld [vmem:[#allocation20 + $0x1d8] sm:$0xff]
    %v1019 = vld [vmem:[#allocation20 + $0x1e0] sm:$0xff]
    %v1020 = vld [vmem:[#allocation20 + $0x1e8] sm:$0xff]
    %v1021 = vld [vmem:[#allocation20 + $0x1f0] sm:$0xff]
    %v1022 = vld [vmem:[#allocation20 + $0x1f8] sm:$0xff]
    %v1023 = vld [vmem:[#allocation20 + $0x200] sm:$0xff]
    %v1024 = vld [vmem:[#allocation20 + $0x208] sm:$0xff]
    %v1025 = vld [vmem:[#allocation20 + $0x210] sm:$0xff]
    %v1026 = vld [vmem:[#allocation20 + $0x218] sm:$0xff]
    %v1027 = vld [vmem:[#allocation20 + $0x220] sm:$0xff]
    %v1028 = vld [vmem:[#allocation20 + $0x228] sm:$0xff]
    %v1029 = vld [vmem:[#allocation20 + $0x230] sm:$0xff]
    %v1030 = vld [vmem:[#allocation20 + $0x238] sm:$0xff]
    %v1031 = vld [vmem:[#allocation20 + $0x240] sm:$0xff]
    %v1032 = vld [vmem:[#allocation20 + $0x248] sm:$0xff]
    %v1033 = vld [vmem:[#allocation20 + $0x250] sm:$0xff]
    %v1034 = vld [vmem:[#allocation20 + $0x258] sm:$0xff]
    %v1035 = vld [vmem:[#allocation20 + $0x260] sm:$0xff]
    %v1036 = vld [vmem:[#allocation20 + $0x268] sm:$0xff]
    %v1037 = vld [vmem:[#allocation20 + $0x270] sm:$0xff]
    %v1038 = vld [vmem:[#allocation20 + $0x278] sm:$0xff]
    %v1039 = vld [vmem:[#allocation20 + $0x280] sm:$0xff]
    %v1040 = vld [vmem:[#allocation20 + $0x288] sm:$0xff]
    %v1041 = vld [vmem:[#allocation20 + $0x290] sm:$0xff]
    %v1042 = vld [vmem:[#allocation20 + $0x298] sm:$0xff]
    %v1043 = vld [vmem:[#allocation20 + $0x2a0] sm:$0xff]
    %v1044 = vld [vmem:[#allocation20 + $0x2a8] sm:$0xff]
    %v1045 = vld [vmem:[#allocation20 + $0x2b0] sm:$0xff]
    %v1046 = vld [vmem:[#allocation20 + $0x2b8] sm:$0xff]
    %v1047 = vld [vmem:[#allocation20 + $0x2c0] sm:$0xff]
    %v1048 = vld [vmem:[#allocation20 + $0x2c8] sm:$0xff]
    %v1049 = vld [vmem:[#allocation20 + $0x2d0] sm:$0xff]
    %v1050 = vld [vmem:[#allocation20 + $0x2d8] sm:$0xff]
    %v1051 = vld [vmem:[#allocation20 + $0x2e0] sm:$0xff]
    %v1052 = vld [vmem:[#allocation20 + $0x2e8] sm:$0xff]
    %v1053 = vld [vmem:[#allocation20 + $0x2f0] sm:$0xff]
    %v1054 = vld [vmem:[#allocation20 + $0x2f8] sm:$0xff]
    %v1055 = vld [vmem:[#allocation20 + $0x300] sm:$0xff]
    %v1056 = vld [vmem:[#allocation20 + $0x308] sm:$0xff]
    %v1057 = vld [vmem:[#allocation20 + $0x310] sm:$0xff]
    %v1058 = vld [vmem:[#allocation20 + $0x318] sm:$0xff]
    %v1059 = vld [vmem:[#allocation20 + $0x320] sm:$0xff]
    %v1060 = vld [vmem:[#allocation20 + $0x328] sm:$0xff]
    %v1061 = vld [vmem:[#allocation20 + $0x330] sm:$0xff]
    %v1062 = vld [vmem:[#allocation20 + $0x338] sm:$0xff]
    %v1063 = vld [vmem:[#allocation20 + $0x340] sm:$0xff]
    %v1064 = vld [vmem:[#allocation20 + $0x348] sm:$0xff]
    %v1065 = vld [vmem:[#allocation20 + $0x350] sm:$0xff]
    %v1066 = vld [vmem:[#allocation20 + $0x358] sm:$0xff]
    %v1067 = vld [vmem:[#allocation20 + $0x360] sm:$0xff]
    %v1068 = vld [vmem:[#allocation20 + $0x368] sm:$0xff]
    %v1069 = vld [vmem:[#allocation20 + $0x370] sm:$0xff]
    %v1070 = vld [vmem:[#allocation20 + $0x378] sm:$0xff]
    %v1071 = vld [vmem:[#allocation20 + $0x380] sm:$0xff]
    %v1072 = vld [vmem:[#allocation20 + $0x388] sm:$0xff]
    %v1073 = vld [vmem:[#allocation20 + $0x390] sm:$0xff]
    %v1074 = vld [vmem:[#allocation20 + $0x398] sm:$0xff]
    %v1075 = vld [vmem:[#allocation20 + $0x3a0] sm:$0xff]
    %v1076 = vld [vmem:[#allocation20 + $0x3a8] sm:$0xff]
    %v1077 = vld [vmem:[#allocation20 + $0x3b0] sm:$0xff]
    %v1078 = vld [vmem:[#allocation20 + $0x3b8] sm:$0xff]
    %v1079 = vld [vmem:[#allocation20 + $0x3c0] sm:$0xff]
    %v1080 = vld [vmem:[#allocation20 + $0x3c8] sm:$0xff]
    %v1081 = vld [vmem:[#allocation20 + $0x3d0] sm:$0xff]
    %v1082 = vld [vmem:[#allocation20 + $0x3d8] sm:$0xff]
    %v1083 = vld [vmem:[#allocation20 + $0x3e0] sm:$0xff]
    %v1084 = vld [vmem:[#allocation20 + $0x3e8] sm:$0xff]
    %v1085 = vld [vmem:[#allocation20 + $0x3f0] sm:$0xff]
    %v1086 = vld [vmem:[#allocation20 + $0x3f8] sm:$0xff]
    %v1087 = vld [vmem:[#allocation20 + $0x400] sm:$0xff]
    %v1088 = vld [vmem:[#allocation20 + $0x408] sm:$0xff]
    %v1089 = vld [vmem:[#allocation20 + $0x410] sm:$0xff]
    %v1090 = vld [vmem:[#allocation20 + $0x418] sm:$0xff]
    %v1091 = vld [vmem:[#allocation20 + $0x420] sm:$0xff]
    %v1092 = vld [vmem:[#allocation20 + $0x428] sm:$0xff]
    %v1093 = vld [vmem:[#allocation20 + $0x430] sm:$0xff]
    %v1094 = vld [vmem:[#allocation20 + $0x438] sm:$0xff]
    %v1095 = vld [vmem:[#allocation20 + $0x440] sm:$0xff]
    %v1096 = vld [vmem:[#allocation20 + $0x448] sm:$0xff]
    %v1097 = vld [vmem:[#allocation20 + $0x450] sm:$0xff]
    %v1098 = vld [vmem:[#allocation20 + $0x458] sm:$0xff]
    %v1099 = vld [vmem:[#allocation20 + $0x460] sm:$0xff]
    %v1100 = vld [vmem:[#allocation20 + $0x468] sm:$0xff]
    %v1101 = vld [vmem:[#allocation20 + $0x470] sm:$0xff]
    %v1102 = vld [vmem:[#allocation20 + $0x478] sm:$0xff]
    %v1103 = vld [vmem:[#allocation20 + $0x480] sm:$0xff]
    %v1104 = vld [vmem:[#allocation20 + $0x488] sm:$0xff]
    %v1105 = vld [vmem:[#allocation20 + $0x490] sm:$0xff]
    %v1106 = vld [vmem:[#allocation20 + $0x498] sm:$0xff]
    %v1107 = vld [vmem:[#allocation20 + $0x4a0] sm:$0xff]
    %v1108 = vld [vmem:[#allocation20 + $0x4a8] sm:$0xff]
    %v1109 = vld [vmem:[#allocation20 + $0x4b0] sm:$0xff]
    %v1110 = vld [vmem:[#allocation20 + $0x4b8] sm:$0xff]
    %v1111 = vld [vmem:[#allocation20 + $0x4c0] sm:$0xff]
    %v1112 = vld [vmem:[#allocation20 + $0x4c8] sm:$0xff]
    %v1113 = vld [vmem:[#allocation20 + $0x4d0] sm:$0xff]
    %v1114 = vld [vmem:[#allocation20 + $0x4d8] sm:$0xff]
    %v1115 = vld [vmem:[#allocation20 + $0x4e0] sm:$0xff]
    %v1116 = vld [vmem:[#allocation20 + $0x4e8] sm:$0xff]
    %v1117 = vld [vmem:[#allocation20 + $0x4f0] sm:$0xff]
    %v1118 = vld [vmem:[#allocation20 + $0x4f8] sm:$0xff]
    %v1119 = vld [vmem:[#allocation20 + $0x500] sm:$0xff]
    %v1120 = vld [vmem:[#allocation20 + $0x508] sm:$0xff]
    %v1121 = vld [vmem:[#allocation20 + $0x510] sm:$0xff]
    %v1122 = vld [vmem:[#allocation20 + $0x518] sm:$0xff]
    %v1123 = vld [vmem:[#allocation20 + $0x520] sm:$0xff]
    %v1124 = vld [vmem:[#allocation20 + $0x528] sm:$0xff]
    %v1125 = vld [vmem:[#allocation20 + $0x530] sm:$0xff]
    %v1126 = vld [vmem:[#allocation20 + $0x538] sm:$0xff]
    %v1127 = vld [vmem:[#allocation20 + $0x540] sm:$0xff]
    %v1128 = vld [vmem:[#allocation20 + $0x548] sm:$0xff]
    %v1129 = vld [vmem:[#allocation20 + $0x550] sm:$0xff]
    %v1130 = vld [vmem:[#allocation20 + $0x558] sm:$0xff]
    %v1131 = vld [vmem:[#allocation20 + $0x560] sm:$0xff]
    %v1132 = vld [vmem:[#allocation20 + $0x568] sm:$0xff]
    %v1133 = vld [vmem:[#allocation20 + $0x570] sm:$0xff]
    %v1134 = vld [vmem:[#allocation20 + $0x578] sm:$0xff]
    %v1135 = vld [vmem:[#allocation20 + $0x580] sm:$0xff]
    %v1136 = vld [vmem:[#allocation20 + $0x588] sm:$0xff]
    %v1137 = vld [vmem:[#allocation20 + $0x590] sm:$0xff]
    %v1138 = vld [vmem:[#allocation20 + $0x598] sm:$0xff]
    %v1139 = vld [vmem:[#allocation20 + $0x5a0] sm:$0xff]
    %v1140 = vld [vmem:[#allocation20 + $0x5a8] sm:$0xff]
    %v1141 = vld [vmem:[#allocation20 + $0x5b0] sm:$0xff]
    %v1142 = vld [vmem:[#allocation20 + $0x5b8] sm:$0xff]
    %v1143 = vld [vmem:[#allocation20 + $0x5c0] sm:$0xff]
    %v1144 = vld [vmem:[#allocation20 + $0x5c8] sm:$0xff]
    %v1145 = vld [vmem:[#allocation20 + $0x5d0] sm:$0xff]
    %v1146 = vld [vmem:[#allocation20 + $0x5d8] sm:$0xff]
    %v1147 = vld [vmem:[#allocation20 + $0x5e0] sm:$0xff]
    %v1148 = vld [vmem:[#allocation20 + $0x5e8] sm:$0xff]
    %v1149 = vld [vmem:[#allocation20 + $0x5f0] sm:$0xff]
    %v1150 = vld [vmem:[#allocation20 + $0x5f8] sm:$0xff]
    %v1151 = vld [vmem:[#allocation20 + $0x600] sm:$0xff]
    %v1152 = vld [vmem:[#allocation20 + $0x608] sm:$0xff]
    %v1153 = vld [vmem:[#allocation20 + $0x610] sm:$0xff]
    %v1154 = vld [vmem:[#allocation20 + $0x618] sm:$0xff]
    %v1155 = vld [vmem:[#allocation20 + $0x620] sm:$0xff]
    %v1156 = vld [vmem:[#allocation20 + $0x628] sm:$0xff]
    %v1157 = vld [vmem:[#allocation20 + $0x630] sm:$0xff]
    %v1158 = vld [vmem:[#allocation20 + $0x638] sm:$0xff]
    %v1159 = vld [vmem:[#allocation20 + $0x640] sm:$0xff]
    %v1160 = vld [vmem:[#allocation20 + $0x648] sm:$0xff]
    %v1161 = vld [vmem:[#allocation20 + $0x650] sm:$0xff]
    %v1162 = vld [vmem:[#allocation20 + $0x658] sm:$0xff]
    %v1163 = vld [vmem:[#allocation20 + $0x660] sm:$0xff]
    %v1164 = vld [vmem:[#allocation20 + $0x668] sm:$0xff]
    %v1165 = vld [vmem:[#allocation20 + $0x670] sm:$0xff]
    %v1166 = vld [vmem:[#allocation20 + $0x678] sm:$0xff]
    %v1167 = vld [vmem:[#allocation20 + $0x680] sm:$0xff]
    %v1168 = vld [vmem:[#allocation20 + $0x688] sm:$0xff]
    %v1169 = vld [vmem:[#allocation20 + $0x690] sm:$0xff]
    %v1170 = vld [vmem:[#allocation20 + $0x698] sm:$0xff]
    %v1171 = vld [vmem:[#allocation20 + $0x6a0] sm:$0xff]
    %v1172 = vld [vmem:[#allocation20 + $0x6a8] sm:$0xff]
    %v1173 = vld [vmem:[#allocation20 + $0x6b0] sm:$0xff]
    %v1174 = vld [vmem:[#allocation20 + $0x6b8] sm:$0xff]
    %v1175 = vld [vmem:[#allocation20 + $0x6c0] sm:$0xff]
    %v1176 = vld [vmem:[#allocation20 + $0x6c8] sm:$0xff]
    %v1177 = vld [vmem:[#allocation20 + $0x6d0] sm:$0xff]
    %v1178 = vld [vmem:[#allocation20 + $0x6d8] sm:$0xff]
    %v1179 = vld [vmem:[#allocation20 + $0x6e0] sm:$0xff]
    %v1180 = vld [vmem:[#allocation20 + $0x6e8] sm:$0xff]
    %v1181 = vld [vmem:[#allocation20 + $0x6f0] sm:$0xff]
    %v1182 = vld [vmem:[#allocation20 + $0x6f8] sm:$0xff]
    %v1183 = vld [vmem:[#allocation20 + $0x700] sm:$0xff]
    %v1184 = vld [vmem:[#allocation20 + $0x708] sm:$0xff]
    %v1185 = vld [vmem:[#allocation20 + $0x710] sm:$0xff]
    %v1186 = vld [vmem:[#allocation20 + $0x718] sm:$0xff]
    %v1187 = vld [vmem:[#allocation20 + $0x720] sm:$0xff]
    %v1188 = vld [vmem:[#allocation20 + $0x728] sm:$0xff]
    %v1189 = vld [vmem:[#allocation20 + $0x730] sm:$0xff]
    %v1190 = vld [vmem:[#allocation20 + $0x738] sm:$0xff]
    %v1191 = vld [vmem:[#allocation20 + $0x740] sm:$0xff]
    %v1192 = vld [vmem:[#allocation20 + $0x748] sm:$0xff]
    %v1193 = vld [vmem:[#allocation20 + $0x750] sm:$0xff]
    %v1194 = vld [vmem:[#allocation20 + $0x758] sm:$0xff]
    %v1195 = vld [vmem:[#allocation20 + $0x760] sm:$0xff]
    %v1196 = vld [vmem:[#allocation20 + $0x768] sm:$0xff]
    %v1197 = vld [vmem:[#allocation20 + $0x770] sm:$0xff]
    %v1198 = vld [vmem:[#allocation20 + $0x778] sm:$0xff]
    %v1199 = vld [vmem:[#allocation20 + $0x780] sm:$0xff]
    %v1200 = vld [vmem:[#allocation20 + $0x788] sm:$0xff]
    %v1201 = vld [vmem:[#allocation20 + $0x790] sm:$0xff]
    %v1202 = vld [vmem:[#allocation20 + $0x798] sm:$0xff]
    %v1203 = vld [vmem:[#allocation20 + $0x7a0] sm:$0xff]
    %v1204 = vld [vmem:[#allocation20 + $0x7a8] sm:$0xff]
    %v1205 = vld [vmem:[#allocation20 + $0x7b0] sm:$0xff]
    %v1206 = vld [vmem:[#allocation20 + $0x7b8] sm:$0xff]
    %v1207 = vld [vmem:[#allocation20 + $0x7c0] sm:$0xff]
    %v1208 = vld [vmem:[#allocation20 + $0x7c8] sm:$0xff]
    %v1209 = vld [vmem:[#allocation20 + $0x7d0] sm:$0xff]
    %v1210 = vld [vmem:[#allocation20 + $0x7d8] sm:$0xff]
    %v1211 = vld [vmem:[#allocation20 + $0x7e0] sm:$0xff]
    %v1212 = vld [vmem:[#allocation20 + $0x7e8] sm:$0xff]
    %v1213 = vld [vmem:[#allocation20 + $0x7f0] sm:$0xff]
    %v1214 = vld [vmem:[#allocation20 + $0x7f8] sm:$0xff]
    %v1215 = vld [vmem:[#allocation22] sm:$0xff]
    %v1217 = vperm.slane %v1215, 0
    %v1218 = vperm.slane %v1215, 1
    %v1219 = vperm.slane %v1215, 2
    %v1220 = vperm.slane %v1215, 3
    %v1221 = vperm.slane %v1215, 4
    %v1222 = vperm.slane %v1215, 5
    %v1223 = vperm.slane %v1215, 6
    %v1224 = vperm.slane %v1215, 7
    %1233 = vmatpush.msra.mxu0 %v1079
    %1234 = vmatpush.msra.mxu0 %v1071
    %1235 = vmatpush.msra.mxu0 %v1063
    %1236 = vmatpush.msra.mxu0 %v1055
    %1237 = vmatpush.msra.mxu0 %v1047
    %1238 = vmatpush.msra.mxu0 %v1039
    %1239 = vmatpush.msra.mxu0 %v1031
    %1240 = vmatpush.msra.mxu0 %v1023
    %1241 = vmatpush.msra.mxu0 %v1015
    %1242 = vmatpush.msra.mxu0 %v1007
    %1243 = vmatpush.msra.mxu0 %v999
    %1244 = vmatpush.msra.mxu0 %v991
    %1245 = vmatpush.msra.mxu0 %v983
    %1246 = vmatpush.msra.mxu0 %v975
    %1247 = vmatpush.msra.mxu0 %v967
    %1248 = vmatpush.msra.mxu0 %v959
    %1249 = vmatmul.f32.gmra.mxu0 %v957
    %v1250 = vpop.f32.mrf.mxu0
    %v1251 = vadd.f32 %v1217, %v1250
    %1252 = vdwg.mxu0
    %1253 = vmatpush.msra.mxu0 %v1207
    %1254 = vmatpush.msra.mxu0 %v1199
    %1255 = vmatpush.msra.mxu0 %v1191
    %1256 = vmatpush.msra.mxu0 %v1183
    %1257 = vmatpush.msra.mxu0 %v1175
    %1258 = vmatpush.msra.mxu0 %v1167
    %1259 = vmatpush.msra.mxu0 %v1159
    %1260 = vmatpush.msra.mxu0 %v1151
    %1261 = vmatpush.msra.mxu0 %v1143
    %1262 = vmatpush.msra.mxu0 %v1135
    %1263 = vmatpush.msra.mxu0 %v1127
    %1264 = vmatpush.msra.mxu0 %v1119
    %1265 = vmatpush.msra.mxu0 %v1111
    %1266 = vmatpush.msra.mxu0 %v1103
    %1267 = vmatpush.msra.mxu0 %v1095
    %1268 = vmatpush.msra.mxu0 %v1087
    %1269 = vmatmul.f32.gmra.mxu0 %v958
    %v1270 = vpop.f32.mrf.mxu0
    %v1271 = vadd.f32 %v1251, %v1270
    %1272 = vdwg.mxu0
    %1273 = vmatpush.msra.mxu0 %v1080
    %1274 = vmatpush.msra.mxu0 %v1072
    %1275 = vmatpush.msra.mxu0 %v1064
    %1276 = vmatpush.msra.mxu0 %v1056
    %1277 = vmatpush.msra.mxu0 %v1048
    %1278 = vmatpush.msra.mxu0 %v1040
    %1279 = vmatpush.msra.mxu0 %v1032
    %1280 = vmatpush.msra.mxu0 %v1024
    %1281 = vmatpush.msra.mxu0 %v1016
    %1282 = vmatpush.msra.mxu0 %v1008
    %1283 = vmatpush.msra.mxu0 %v1000
    %1284 = vmatpush.msra.mxu0 %v992
    %1285 = vmatpush.msra.mxu0 %v984
    %1286 = vmatpush.msra.mxu0 %v976
    %1287 = vmatpush.msra.mxu0 %v968
    %1288 = vmatpush.msra.mxu0 %v960
    %1289 = vmatmul.f32.gmra.mxu0 %v957
    %v1290 = vpop.f32.mrf.mxu0
    %v1291 = vadd.f32 %v1218, %v1290
    %1292 = vdwg.mxu0
    %1293 = vmatpush.msra.mxu0 %v1208
    %1294 = vmatpush.msra.mxu0 %v1200
    %1295 = vmatpush.msra.mxu0 %v1192
    %1296 = vmatpush.msra.mxu0 %v1184
    %1297 = vmatpush.msra.mxu0 %v1176
    %1298 = vmatpush.msra.mxu0 %v1168
    %1299 = vmatpush.msra.mxu0 %v1160
    %1300 = vmatpush.msra.mxu0 %v1152
    %1301 = vmatpush.msra.mxu0 %v1144
    %1302 = vmatpush.msra.mxu0 %v1136
    %1303 = vmatpush.msra.mxu0 %v1128
    %1304 = vmatpush.msra.mxu0 %v1120
    %1305 = vmatpush.msra.mxu0 %v1112
    %1306 = vmatpush.msra.mxu0 %v1104
    %1307 = vmatpush.msra.mxu0 %v1096
    %1308 = vmatpush.msra.mxu0 %v1088
    %1309 = vmatmul.f32.gmra.mxu0 %v958
    %v1310 = vpop.f32.mrf.mxu0
    %v1311 = vadd.f32 %v1291, %v1310
    %1312 = vdwg.mxu0
    %1313 = vmatpush.msra.mxu0 %v1081
    %1314 = vmatpush.msra.mxu0 %v1073
    %1315 = vmatpush.msra.mxu0 %v1065
    %1316 = vmatpush.msra.mxu0 %v1057
    %1317 = vmatpush.msra.mxu0 %v1049
    %1318 = vmatpush.msra.mxu0 %v1041
    %1319 = vmatpush.msra.mxu0 %v1033
    %1320 = vmatpush.msra.mxu0 %v1025
    %1321 = vmatpush.msra.mxu0 %v1017
    %1322 = vmatpush.msra.mxu0 %v1009
    %1323 = vmatpush.msra.mxu0 %v1001
    %1324 = vmatpush.msra.mxu0 %v993
    %1325 = vmatpush.msra.mxu0 %v985
    %1326 = vmatpush.msra.mxu0 %v977
    %1327 = vmatpush.msra.mxu0 %v969
    %1328 = vmatpush.msra.mxu0 %v961
    %1329 = vmatmul.f32.gmra.mxu0 %v957
    %v1330 = vpop.f32.mrf.mxu0
    %v1331 = vadd.f32 %v1219, %v1330
    %1332 = vdwg.mxu0
    %1333 = vmatpush.msra.mxu0 %v1209
    %1334 = vmatpush.msra.mxu0 %v1201
    %1335 = vmatpush.msra.mxu0 %v1193
    %1336 = vmatpush.msra.mxu0 %v1185
    %1337 = vmatpush.msra.mxu0 %v1177
    %1338 = vmatpush.msra.mxu0 %v1169
    %1339 = vmatpush.msra.mxu0 %v1161
    %1340 = vmatpush.msra.mxu0 %v1153
    %1341 = vmatpush.msra.mxu0 %v1145
    %1342 = vmatpush.msra.mxu0 %v1137
    %1343 = vmatpush.msra.mxu0 %v1129
    %1344 = vmatpush.msra.mxu0 %v1121
    %1345 = vmatpush.msra.mxu0 %v1113
    %1346 = vmatpush.msra.mxu0 %v1105
    %1347 = vmatpush.msra.mxu0 %v1097
    %1348 = vmatpush.msra.mxu0 %v1089
    %1349 = vmatmul.f32.gmra.mxu0 %v958
    %v1350 = vpop.f32.mrf.mxu0
    %v1351 = vadd.f32 %v1331, %v1350
    %1352 = vdwg.mxu0
    %1353 = vmatpush.msra.mxu0 %v1082
    %1354 = vmatpush.msra.mxu0 %v1074
    %1355 = vmatpush.msra.mxu0 %v1066
    %1356 = vmatpush.msra.mxu0 %v1058
    %1357 = vmatpush.msra.mxu0 %v1050
    %1358 = vmatpush.msra.mxu0 %v1042
    %1359 = vmatpush.msra.mxu0 %v1034
    %1360 = vmatpush.msra.mxu0 %v1026
    %1361 = vmatpush.msra.mxu0 %v1018
    %1362 = vmatpush.msra.mxu0 %v1010
    %1363 = vmatpush.msra.mxu0 %v1002
    %1364 = vmatpush.msra.mxu0 %v994
    %1365 = vmatpush.msra.mxu0 %v986
    %1366 = vmatpush.msra.mxu0 %v978
    %1367 = vmatpush.msra.mxu0 %v970
    %1368 = vmatpush.msra.mxu0 %v962
    %1369 = vmatmul.f32.gmra.mxu0 %v957
    %v1370 = vpop.f32.mrf.mxu0
    %v1371 = vadd.f32 %v1220, %v1370
    %1372 = vdwg.mxu0
    %1373 = vmatpush.msra.mxu0 %v1210
    %1374 = vmatpush.msra.mxu0 %v1202
    %1375 = vmatpush.msra.mxu0 %v1194
    %1376 = vmatpush.msra.mxu0 %v1186
    %1377 = vmatpush.msra.mxu0 %v1178
    %1378 = vmatpush.msra.mxu0 %v1170
    %1379 = vmatpush.msra.mxu0 %v1162
    %1380 = vmatpush.msra.mxu0 %v1154
    %1381 = vmatpush.msra.mxu0 %v1146
    %1382 = vmatpush.msra.mxu0 %v1138
    %1383 = vmatpush.msra.mxu0 %v1130
    %1384 = vmatpush.msra.mxu0 %v1122
    %1385 = vmatpush.msra.mxu0 %v1114
    %1386 = vmatpush.msra.mxu0 %v1106
    %1387 = vmatpush.msra.mxu0 %v1098
    %1388 = vmatpush.msra.mxu0 %v1090
    %1389 = vmatmul.f32.gmra.mxu0 %v958
    %v1390 = vpop.f32.mrf.mxu0
    %v1391 = vadd.f32 %v1371, %v1390
    %1392 = vdwg.mxu0
    %1393 = vmatpush.msra.mxu0 %v1083
    %1394 = vmatpush.msra.mxu0 %v1075
    %1395 = vmatpush.msra.mxu0 %v1067
    %1396 = vmatpush.msra.mxu0 %v1059
    %1397 = vmatpush.msra.mxu0 %v1051
    %1398 = vmatpush.msra.mxu0 %v1043
    %1399 = vmatpush.msra.mxu0 %v1035
    %1400 = vmatpush.msra.mxu0 %v1027
    %1401 = vmatpush.msra.mxu0 %v1019
    %1402 = vmatpush.msra.mxu0 %v1011
    %1403 = vmatpush.msra.mxu0 %v1003
    %1404 = vmatpush.msra.mxu0 %v995
    %1405 = vmatpush.msra.mxu0 %v987
    %1406 = vmatpush.msra.mxu0 %v979
    %1407 = vmatpush.msra.mxu0 %v971
    %1408 = vmatpush.msra.mxu0 %v963
    %1409 = vmatmul.f32.gmra.mxu0 %v957
    %v1410 = vpop.f32.mrf.mxu0
    %v1411 = vadd.f32 %v1221, %v1410
    %1412 = vdwg.mxu0
    %1413 = vmatpush.msra.mxu0 %v1211
    %1414 = vmatpush.msra.mxu0 %v1203
    %1415 = vmatpush.msra.mxu0 %v1195
    %1416 = vmatpush.msra.mxu0 %v1187
    %1417 = vmatpush.msra.mxu0 %v1179
    %1418 = vmatpush.msra.mxu0 %v1171
    %1419 = vmatpush.msra.mxu0 %v1163
    %1420 = vmatpush.msra.mxu0 %v1155
    %1421 = vmatpush.msra.mxu0 %v1147
    %1422 = vmatpush.msra.mxu0 %v1139
    %1423 = vmatpush.msra.mxu0 %v1131
    %1424 = vmatpush.msra.mxu0 %v1123
    %1425 = vmatpush.msra.mxu0 %v1115
    %1426 = vmatpush.msra.mxu0 %v1107
    %1427 = vmatpush.msra.mxu0 %v1099
    %1428 = vmatpush.msra.mxu0 %v1091
    %1429 = vmatmul.f32.gmra.mxu0 %v958
    %v1430 = vpop.f32.mrf.mxu0
    %v1431 = vadd.f32 %v1411, %v1430
    %1432 = vdwg.mxu0
    %1433 = vmatpush.msra.mxu0 %v1084
    %1434 = vmatpush.msra.mxu0 %v1076
    %1435 = vmatpush.msra.mxu0 %v1068
    %1436 = vmatpush.msra.mxu0 %v1060
    %1437 = vmatpush.msra.mxu0 %v1052
    %1438 = vmatpush.msra.mxu0 %v1044
    %1439 = vmatpush.msra.mxu0 %v1036
    %1440 = vmatpush.msra.mxu0 %v1028
    %1441 = vmatpush.msra.mxu0 %v1020
    %1442 = vmatpush.msra.mxu0 %v1012
    %1443 = vmatpush.msra.mxu0 %v1004
    %1444 = vmatpush.msra.mxu0 %v996
    %1445 = vmatpush.msra.mxu0 %v988
    %1446 = vmatpush.msra.mxu0 %v980
    %1447 = vmatpush.msra.mxu0 %v972
    %1448 = vmatpush.msra.mxu0 %v964
    %1449 = vmatmul.f32.gmra.mxu0 %v957
    %v1450 = vpop.f32.mrf.mxu0
    %v1451 = vadd.f32 %v1222, %v1450
    %1452 = vdwg.mxu0
    %1453 = vmatpush.msra.mxu0 %v1212
    %1454 = vmatpush.msra.mxu0 %v1204
    %1455 = vmatpush.msra.mxu0 %v1196
    %1456 = vmatpush.msra.mxu0 %v1188
    %1457 = vmatpush.msra.mxu0 %v1180
    %1458 = vmatpush.msra.mxu0 %v1172
    %1459 = vmatpush.msra.mxu0 %v1164
    %1460 = vmatpush.msra.mxu0 %v1156
    %1461 = vmatpush.msra.mxu0 %v1148
    %1462 = vmatpush.msra.mxu0 %v1140
    %1463 = vmatpush.msra.mxu0 %v1132
    %1464 = vmatpush.msra.mxu0 %v1124
    %1465 = vmatpush.msra.mxu0 %v1116
    %1466 = vmatpush.msra.mxu0 %v1108
    %1467 = vmatpush.msra.mxu0 %v1100
    %1468 = vmatpush.msra.mxu0 %v1092
    %1469 = vmatmul.f32.gmra.mxu0 %v958
    %v1470 = vpop.f32.mrf.mxu0
    %v1471 = vadd.f32 %v1451, %v1470
    %1472 = vdwg.mxu0
    %1473 = vmatpush.msra.mxu0 %v1085
    %1474 = vmatpush.msra.mxu0 %v1077
    %1475 = vmatpush.msra.mxu0 %v1069
    %1476 = vmatpush.msra.mxu0 %v1061
    %1477 = vmatpush.msra.mxu0 %v1053
    %1478 = vmatpush.msra.mxu0 %v1045
    %1479 = vmatpush.msra.mxu0 %v1037
    %1480 = vmatpush.msra.mxu0 %v1029
    %1481 = vmatpush.msra.mxu0 %v1021
    %1482 = vmatpush.msra.mxu0 %v1013
    %1483 = vmatpush.msra.mxu0 %v1005
    %1484 = vmatpush.msra.mxu0 %v997
    %1485 = vmatpush.msra.mxu0 %v989
    %1486 = vmatpush.msra.mxu0 %v981
    %1487 = vmatpush.msra.mxu0 %v973
    %1488 = vmatpush.msra.mxu0 %v965
    %1489 = vmatmul.f32.gmra.mxu0 %v957
    %v1490 = vpop.f32.mrf.mxu0
    %v1491 = vadd.f32 %v1223, %v1490
    %1492 = vdwg.mxu0
    %1493 = vmatpush.msra.mxu0 %v1213
    %1494 = vmatpush.msra.mxu0 %v1205
    %1495 = vmatpush.msra.mxu0 %v1197
    %1496 = vmatpush.msra.mxu0 %v1189
    %1497 = vmatpush.msra.mxu0 %v1181
    %1498 = vmatpush.msra.mxu0 %v1173
    %1499 = vmatpush.msra.mxu0 %v1165
    %1500 = vmatpush.msra.mxu0 %v1157
    %1501 = vmatpush.msra.mxu0 %v1149
    %1502 = vmatpush.msra.mxu0 %v1141
    %1503 = vmatpush.msra.mxu0 %v1133
    %1504 = vmatpush.msra.mxu0 %v1125
    %1505 = vmatpush.msra.mxu0 %v1117
    %1506 = vmatpush.msra.mxu0 %v1109
    %1507 = vmatpush.msra.mxu0 %v1101
    %1508 = vmatpush.msra.mxu0 %v1093
    %1509 = vmatmul.f32.gmra.mxu0 %v958
    %v1510 = vpop.f32.mrf.mxu0
    %v1511 = vadd.f32 %v1491, %v1510
    %1512 = vdwg.mxu0
    %1513 = vmatpush.msra.mxu0 %v1086
    %1514 = vmatpush.msra.mxu0 %v1078
    %1515 = vmatpush.msra.mxu0 %v1070
    %1516 = vmatpush.msra.mxu0 %v1062
    %1517 = vmatpush.msra.mxu0 %v1054
    %1518 = vmatpush.msra.mxu0 %v1046
    %1519 = vmatpush.msra.mxu0 %v1038
    %1520 = vmatpush.msra.mxu0 %v1030
    %1521 = vmatpush.msra.mxu0 %v1022
    %1522 = vmatpush.msra.mxu0 %v1014
    %1523 = vmatpush.msra.mxu0 %v1006
    %1524 = vmatpush.msra.mxu0 %v998
    %1525 = vmatpush.msra.mxu0 %v990
    %1526 = vmatpush.msra.mxu0 %v982
    %1527 = vmatpush.msra.mxu0 %v974
    %1528 = vmatpush.msra.mxu0 %v966
    %1529 = vmatmul.f32.gmra.mxu0 %v957
    %v1530 = vpop.f32.mrf.mxu0
    %v1531 = vadd.f32 %v1224, %v1530
    %1532 = vdwg.mxu0
    %1533 = vmatpush.msra.mxu0 %v1214
    %1534 = vmatpush.msra.mxu0 %v1206
    %1535 = vmatpush.msra.mxu0 %v1198
    %1536 = vmatpush.msra.mxu0 %v1190
    %1537 = vmatpush.msra.mxu0 %v1182
    %1538 = vmatpush.msra.mxu0 %v1174
    %1539 = vmatpush.msra.mxu0 %v1166
    %1540 = vmatpush.msra.mxu0 %v1158
    %1541 = vmatpush.msra.mxu0 %v1150
    %1542 = vmatpush.msra.mxu0 %v1142
    %1543 = vmatpush.msra.mxu0 %v1134
    %1544 = vmatpush.msra.mxu0 %v1126
    %1545 = vmatpush.msra.mxu0 %v1118
    %1546 = vmatpush.msra.mxu0 %v1110
    %1547 = vmatpush.msra.mxu0 %v1102
    %1548 = vmatpush.msra.mxu0 %v1094
    %1549 = vmatmul.f32.gmra.mxu0 %v958
    %v1550 = vpop.f32.mrf.mxu0
    %v1551 = vadd.f32 %v1531, %v1550
    %1552 = vdwg.mxu0
    %vm1553 = vcmp.gt.f32.partialorder %v1271, 20.0
    %vm1554 = vcmp.gt.f32.partialorder %v1311, 20.0
    %vm1555 = vcmp.gt.f32.partialorder %v1351, 20.0
    %vm1556 = vcmp.gt.f32.partialorder %v1391, 20.0
    %vm1557 = vcmp.gt.f32.partialorder %v1431, 20.0
    %vm1558 = vcmp.gt.f32.partialorder %v1471, 20.0
    %vm1559 = vcmp.gt.f32.partialorder %v1511, 20.0
    %vm1560 = vcmp.gt.f32.partialorder %v1551, 20.0
    %v1561 = vmin.f32 %v1271, 20.0
    %v1562 = vmin.f32 %v1311, 20.0
    %v1563 = vmin.f32 %v1351, 20.0
    %v1564 = vmin.f32 %v1391, 20.0
    %v1565 = vmin.f32 %v1431, 20.0
    %v1566 = vmin.f32 %v1471, 20.0
    %v1567 = vmin.f32 %v1511, 20.0
    %v1568 = vmin.f32 %v1551, 20.0
    %v1569 = vmul.f32 %v1561, 1.442695
    %v1570 = vpow.pop %v1569
    %v1571 = vmul.f32 %v1562, 1.442695
    %v1572 = vpow.pop %v1571
    %v1573 = vmul.f32 %v1563, 1.442695
    %v1574 = vpow.pop %v1573
    %v1575 = vmul.f32 %v1564, 1.442695
    %v1576 = vpow.pop %v1575
    %v1577 = vmul.f32 %v1565, 1.442695
    %v1578 = vpow.pop %v1577
    %v1579 = vmul.f32 %v1566, 1.442695
    %v1580 = vpow.pop %v1579
    %v1581 = vmul.f32 %v1567, 1.442695
    %v1582 = vpow.pop %v1581
    %v1583 = vmul.f32 %v1568, 1.442695
    %v1584 = vpow.pop %v1583
    %v1585 = vadd.f32 %v1570, 1.0
    %v1586 = vlog2.pop %v1585
    %v1587 = vmul.f32 %v1586, 0.6931472
    %v1588 = vmul.f32 -0.5, %v1570
    %v1589 = vadd.f32 %v1588, 1.0
    %v1590 = vmul.f32 %v1589, %v1570
    %v1591 = vand.u32 2147483647, %v1570
    %vm1592 = vcmp.lt.f32.partialorder %v1591, 0.0004427343
    %v1593 = vsel %vm1592, %v1590, %v1587
    %v1594 = vadd.f32 %v1572, 1.0
    %v1595 = vlog2.pop %v1594
    %v1596 = vmul.f32 %v1595, 0.6931472
    %v1597 = vmul.f32 -0.5, %v1572
    %v1598 = vadd.f32 %v1597, 1.0
    %v1599 = vmul.f32 %v1598, %v1572
    %v1600 = vand.u32 2147483647, %v1572
    %vm1601 = vcmp.lt.f32.partialorder %v1600, 0.0004427343
    %v1602 = vsel %vm1601, %v1599, %v1596
    %v1603 = vadd.f32 %v1574, 1.0
    %v1604 = vlog2.pop %v1603
    %v1605 = vmul.f32 %v1604, 0.6931472
    %v1606 = vmul.f32 -0.5, %v1574
    %v1607 = vadd.f32 %v1606, 1.0
    %v1608 = vmul.f32 %v1607, %v1574
    %v1609 = vand.u32 2147483647, %v1574
    %vm1610 = vcmp.lt.f32.partialorder %v1609, 0.0004427343
    %v1611 = vsel %vm1610, %v1608, %v1605
    %v1612 = vadd.f32 %v1576, 1.0
    %v1613 = vlog2.pop %v1612
    %v1614 = vmul.f32 %v1613, 0.6931472
    %v1615 = vmul.f32 -0.5, %v1576
    %v1616 = vadd.f32 %v1615, 1.0
    %v1617 = vmul.f32 %v1616, %v1576
    %v1618 = vand.u32 2147483647, %v1576
    %vm1619 = vcmp.lt.f32.partialorder %v1618, 0.0004427343
    %v1620 = vsel %vm1619, %v1617, %v1614
    %v1621 = vadd.f32 %v1578, 1.0
    %v1622 = vlog2.pop %v1621
    %v1623 = vmul.f32 %v1622, 0.6931472
    %v1624 = vmul.f32 -0.5, %v1578
    %v1625 = vadd.f32 %v1624, 1.0
    %v1626 = vmul.f32 %v1625, %v1578
    %v1627 = vand.u32 2147483647, %v1578
    %vm1628 = vcmp.lt.f32.partialorder %v1627, 0.0004427343
    %v1629 = vsel %vm1628, %v1626, %v1623
    %v1630 = vadd.f32 %v1580, 1.0
    %v1631 = vlog2.pop %v1630
    %v1632 = vmul.f32 %v1631, 0.6931472
    %v1633 = vmul.f32 -0.5, %v1580
    %v1634 = vadd.f32 %v1633, 1.0
    %v1635 = vmul.f32 %v1634, %v1580
    %v1636 = vand.u32 2147483647, %v1580
    %vm1637 = vcmp.lt.f32.partialorder %v1636, 0.0004427343
    %v1638 = vsel %vm1637, %v1635, %v1632
    %v1639 = vadd.f32 %v1582, 1.0
    %v1640 = vlog2.pop %v1639
    %v1641 = vmul.f32 %v1640, 0.6931472
    %v1642 = vmul.f32 -0.5, %v1582
    %v1643 = vadd.f32 %v1642, 1.0
    %v1644 = vmul.f32 %v1643, %v1582
    %v1645 = vand.u32 2147483647, %v1582
    %vm1646 = vcmp.lt.f32.partialorder %v1645, 0.0004427343
    %v1647 = vsel %vm1646, %v1644, %v1641
    %v1648 = vadd.f32 %v1584, 1.0
    %v1649 = vlog2.pop %v1648
    %v1650 = vmul.f32 %v1649, 0.6931472
    %v1651 = vmul.f32 -0.5, %v1584
    %v1652 = vadd.f32 %v1651, 1.0
    %v1653 = vmul.f32 %v1652, %v1584
    %v1654 = vand.u32 2147483647, %v1584
    %vm1655 = vcmp.lt.f32.partialorder %v1654, 0.0004427343
    %v1656 = vsel %vm1655, %v1653, %v1650
    %v1657 = vsel %vm1553, %v1271, %v1593
    %v1658 = vsel %vm1554, %v1311, %v1602
    %v1659 = vsel %vm1555, %v1351, %v1611
    %v1660 = vsel %vm1556, %v1391, %v1620
    %v1661 = vsel %vm1557, %v1431, %v1629
    %v1662 = vsel %vm1558, %v1471, %v1638
    %v1663 = vsel %vm1559, %v1511, %v1647
    %v1664 = vsel %vm1560, %v1551, %v1656
    %v1665 = vtanh.pop %v1657
    %v1666 = vtanh.pop %v1658
    %v1667 = vtanh.pop %v1659
    %v1668 = vtanh.pop %v1660
    %v1669 = vtanh.pop %v1661
    %v1670 = vtanh.pop %v1662
    %v1671 = vtanh.pop %v1663
    %v1672 = vtanh.pop %v1664
    %v1673 = vmul.f32 %v1271, %v1665
    %v1674 = vmul.f32 %v1311, %v1666
    %v1675 = vmul.f32 %v1351, %v1667
    %v1676 = vmul.f32 %v1391, %v1668
    %v1677 = vmul.f32 %v1431, %v1669
    %v1678 = vmul.f32 %v1471, %v1670
    %v1679 = vmul.f32 %v1511, %v1671
    %v1680 = vmul.f32 %v1551, %v1672
    %v1681 = vld [vmem:[#allocation23] sm:$0xff]
    %v1682 = vld [vmem:[#allocation23 + $0x8] sm:$0xff]
    %v1683 = vld [vmem:[#allocation23 + $0x10] sm:$0xff]
    %v1684 = vld [vmem:[#allocation23 + $0x18] sm:$0xff]
    %v1685 = vld [vmem:[#allocation23 + $0x20] sm:$0xff]
    %v1686 = vld [vmem:[#allocation23 + $0x28] sm:$0xff]
    %v1687 = vld [vmem:[#allocation23 + $0x30] sm:$0xff]
    %v1688 = vld [vmem:[#allocation23 + $0x38] sm:$0xff]
    %v1689 = vld [vmem:[#allocation23 + $0x40] sm:$0xff]
    %v1690 = vld [vmem:[#allocation23 + $0x48] sm:$0xff]
    %v1691 = vld [vmem:[#allocation23 + $0x50] sm:$0xff]
    %v1692 = vld [vmem:[#allocation23 + $0x58] sm:$0xff]
    %v1693 = vld [vmem:[#allocation23 + $0x60] sm:$0xff]
    %v1694 = vld [vmem:[#allocation23 + $0x68] sm:$0xff]
    %v1695 = vld [vmem:[#allocation23 + $0x70] sm:$0xff]
    %v1696 = vld [vmem:[#allocation23 + $0x78] sm:$0xff]
    %v1697 = vld [vmem:[#allocation23 + $0x80] sm:$0xff]
    %v1698 = vld [vmem:[#allocation23 + $0x88] sm:$0xff]
    %v1699 = vld [vmem:[#allocation23 + $0x90] sm:$0xff]
    %v1700 = vld [vmem:[#allocation23 + $0x98] sm:$0xff]
    %v1701 = vld [vmem:[#allocation23 + $0xa0] sm:$0xff]
    %v1702 = vld [vmem:[#allocation23 + $0xa8] sm:$0xff]
    %v1703 = vld [vmem:[#allocation23 + $0xb0] sm:$0xff]
    %v1704 = vld [vmem:[#allocation23 + $0xb8] sm:$0xff]
    %v1705 = vld [vmem:[#allocation23 + $0xc0] sm:$0xff]
    %v1706 = vld [vmem:[#allocation23 + $0xc8] sm:$0xff]
    %v1707 = vld [vmem:[#allocation23 + $0xd0] sm:$0xff]
    %v1708 = vld [vmem:[#allocation23 + $0xd8] sm:$0xff]
    %v1709 = vld [vmem:[#allocation23 + $0xe0] sm:$0xff]
    %v1710 = vld [vmem:[#allocation23 + $0xe8] sm:$0xff]
    %v1711 = vld [vmem:[#allocation23 + $0xf0] sm:$0xff]
    %v1712 = vld [vmem:[#allocation23 + $0xf8] sm:$0xff]
    %v1713 = vld [vmem:[#allocation23 + $0x100] sm:$0xff]
    %v1714 = vld [vmem:[#allocation23 + $0x108] sm:$0xff]
    %v1715 = vld [vmem:[#allocation23 + $0x110] sm:$0xff]
    %v1716 = vld [vmem:[#allocation23 + $0x118] sm:$0xff]
    %v1717 = vld [vmem:[#allocation23 + $0x120] sm:$0xff]
    %v1718 = vld [vmem:[#allocation23 + $0x128] sm:$0xff]
    %v1719 = vld [vmem:[#allocation23 + $0x130] sm:$0xff]
    %v1720 = vld [vmem:[#allocation23 + $0x138] sm:$0xff]
    %v1721 = vld [vmem:[#allocation23 + $0x140] sm:$0xff]
    %v1722 = vld [vmem:[#allocation23 + $0x148] sm:$0xff]
    %v1723 = vld [vmem:[#allocation23 + $0x150] sm:$0xff]
    %v1724 = vld [vmem:[#allocation23 + $0x158] sm:$0xff]
    %v1725 = vld [vmem:[#allocation23 + $0x160] sm:$0xff]
    %v1726 = vld [vmem:[#allocation23 + $0x168] sm:$0xff]
    %v1727 = vld [vmem:[#allocation23 + $0x170] sm:$0xff]
    %v1728 = vld [vmem:[#allocation23 + $0x178] sm:$0xff]
    %v1729 = vld [vmem:[#allocation23 + $0x180] sm:$0xff]
    %v1730 = vld [vmem:[#allocation23 + $0x188] sm:$0xff]
    %v1731 = vld [vmem:[#allocation23 + $0x190] sm:$0xff]
    %v1732 = vld [vmem:[#allocation23 + $0x198] sm:$0xff]
    %v1733 = vld [vmem:[#allocation23 + $0x1a0] sm:$0xff]
    %v1734 = vld [vmem:[#allocation23 + $0x1a8] sm:$0xff]
    %v1735 = vld [vmem:[#allocation23 + $0x1b0] sm:$0xff]
    %v1736 = vld [vmem:[#allocation23 + $0x1b8] sm:$0xff]
    %v1737 = vld [vmem:[#allocation23 + $0x1c0] sm:$0xff]
    %v1738 = vld [vmem:[#allocation23 + $0x1c8] sm:$0xff]
    %v1739 = vld [vmem:[#allocation23 + $0x1d0] sm:$0xff]
    %v1740 = vld [vmem:[#allocation23 + $0x1d8] sm:$0xff]
    %v1741 = vld [vmem:[#allocation23 + $0x1e0] sm:$0xff]
    %v1742 = vld [vmem:[#allocation23 + $0x1e8] sm:$0xff]
    %v1743 = vld [vmem:[#allocation23 + $0x1f0] sm:$0xff]
    %v1744 = vld [vmem:[#allocation23 + $0x1f8] sm:$0xff]
    %v1745 = vld [vmem:[#allocation23 + $0x200] sm:$0xff]
    %v1746 = vld [vmem:[#allocation23 + $0x208] sm:$0xff]
    %v1747 = vld [vmem:[#allocation23 + $0x210] sm:$0xff]
    %v1748 = vld [vmem:[#allocation23 + $0x218] sm:$0xff]
    %v1749 = vld [vmem:[#allocation23 + $0x220] sm:$0xff]
    %v1750 = vld [vmem:[#allocation23 + $0x228] sm:$0xff]
    %v1751 = vld [vmem:[#allocation23 + $0x230] sm:$0xff]
    %v1752 = vld [vmem:[#allocation23 + $0x238] sm:$0xff]
    %v1753 = vld [vmem:[#allocation23 + $0x240] sm:$0xff]
    %v1754 = vld [vmem:[#allocation23 + $0x248] sm:$0xff]
    %v1755 = vld [vmem:[#allocation23 + $0x250] sm:$0xff]
    %v1756 = vld [vmem:[#allocation23 + $0x258] sm:$0xff]
    %v1757 = vld [vmem:[#allocation23 + $0x260] sm:$0xff]
    %v1758 = vld [vmem:[#allocation23 + $0x268] sm:$0xff]
    %v1759 = vld [vmem:[#allocation23 + $0x270] sm:$0xff]
    %v1760 = vld [vmem:[#allocation23 + $0x278] sm:$0xff]
    %v1761 = vld [vmem:[#allocation23 + $0x280] sm:$0xff]
    %v1762 = vld [vmem:[#allocation23 + $0x288] sm:$0xff]
    %v1763 = vld [vmem:[#allocation23 + $0x290] sm:$0xff]
    %v1764 = vld [vmem:[#allocation23 + $0x298] sm:$0xff]
    %v1765 = vld [vmem:[#allocation23 + $0x2a0] sm:$0xff]
    %v1766 = vld [vmem:[#allocation23 + $0x2a8] sm:$0xff]
    %v1767 = vld [vmem:[#allocation23 + $0x2b0] sm:$0xff]
    %v1768 = vld [vmem:[#allocation23 + $0x2b8] sm:$0xff]
    %v1769 = vld [vmem:[#allocation23 + $0x2c0] sm:$0xff]
    %v1770 = vld [vmem:[#allocation23 + $0x2c8] sm:$0xff]
    %v1771 = vld [vmem:[#allocation23 + $0x2d0] sm:$0xff]
    %v1772 = vld [vmem:[#allocation23 + $0x2d8] sm:$0xff]
    %v1773 = vld [vmem:[#allocation23 + $0x2e0] sm:$0xff]
    %v1774 = vld [vmem:[#allocation23 + $0x2e8] sm:$0xff]
    %v1775 = vld [vmem:[#allocation23 + $0x2f0] sm:$0xff]
    %v1776 = vld [vmem:[#allocation23 + $0x2f8] sm:$0xff]
    %v1777 = vld [vmem:[#allocation23 + $0x300] sm:$0xff]
    %v1778 = vld [vmem:[#allocation23 + $0x308] sm:$0xff]
    %v1779 = vld [vmem:[#allocation23 + $0x310] sm:$0xff]
    %v1780 = vld [vmem:[#allocation23 + $0x318] sm:$0xff]
    %v1781 = vld [vmem:[#allocation23 + $0x320] sm:$0xff]
    %v1782 = vld [vmem:[#allocation23 + $0x328] sm:$0xff]
    %v1783 = vld [vmem:[#allocation23 + $0x330] sm:$0xff]
    %v1784 = vld [vmem:[#allocation23 + $0x338] sm:$0xff]
    %v1785 = vld [vmem:[#allocation23 + $0x340] sm:$0xff]
    %v1786 = vld [vmem:[#allocation23 + $0x348] sm:$0xff]
    %v1787 = vld [vmem:[#allocation23 + $0x350] sm:$0xff]
    %v1788 = vld [vmem:[#allocation23 + $0x358] sm:$0xff]
    %v1789 = vld [vmem:[#allocation23 + $0x360] sm:$0xff]
    %v1790 = vld [vmem:[#allocation23 + $0x368] sm:$0xff]
    %v1791 = vld [vmem:[#allocation23 + $0x370] sm:$0xff]
    %v1792 = vld [vmem:[#allocation23 + $0x378] sm:$0xff]
    %v1793 = vld [vmem:[#allocation23 + $0x380] sm:$0xff]
    %v1794 = vld [vmem:[#allocation23 + $0x388] sm:$0xff]
    %v1795 = vld [vmem:[#allocation23 + $0x390] sm:$0xff]
    %v1796 = vld [vmem:[#allocation23 + $0x398] sm:$0xff]
    %v1797 = vld [vmem:[#allocation23 + $0x3a0] sm:$0xff]
    %v1798 = vld [vmem:[#allocation23 + $0x3a8] sm:$0xff]
    %v1799 = vld [vmem:[#allocation23 + $0x3b0] sm:$0xff]
    %v1800 = vld [vmem:[#allocation23 + $0x3b8] sm:$0xff]
    %v1801 = vld [vmem:[#allocation23 + $0x3c0] sm:$0xff]
    %v1802 = vld [vmem:[#allocation23 + $0x3c8] sm:$0xff]
    %v1803 = vld [vmem:[#allocation23 + $0x3d0] sm:$0xff]
    %v1804 = vld [vmem:[#allocation23 + $0x3d8] sm:$0xff]
    %v1805 = vld [vmem:[#allocation23 + $0x3e0] sm:$0xff]
    %v1806 = vld [vmem:[#allocation23 + $0x3e8] sm:$0xff]
    %v1807 = vld [vmem:[#allocation23 + $0x3f0] sm:$0xff]
    %v1808 = vld [vmem:[#allocation23 + $0x3f8] sm:$0xff]
    %v1809 = vld [vmem:[#allocation23 + $0x400] sm:$0xff]
    %v1810 = vld [vmem:[#allocation23 + $0x408] sm:$0xff]
    %v1811 = vld [vmem:[#allocation23 + $0x410] sm:$0xff]
    %v1812 = vld [vmem:[#allocation23 + $0x418] sm:$0xff]
    %v1813 = vld [vmem:[#allocation23 + $0x420] sm:$0xff]
    %v1814 = vld [vmem:[#allocation23 + $0x428] sm:$0xff]
    %v1815 = vld [vmem:[#allocation23 + $0x430] sm:$0xff]
    %v1816 = vld [vmem:[#allocation23 + $0x438] sm:$0xff]
    %v1817 = vld [vmem:[#allocation23 + $0x440] sm:$0xff]
    %v1818 = vld [vmem:[#allocation23 + $0x448] sm:$0xff]
    %v1819 = vld [vmem:[#allocation23 + $0x450] sm:$0xff]
    %v1820 = vld [vmem:[#allocation23 + $0x458] sm:$0xff]
    %v1821 = vld [vmem:[#allocation23 + $0x460] sm:$0xff]
    %v1822 = vld [vmem:[#allocation23 + $0x468] sm:$0xff]
    %v1823 = vld [vmem:[#allocation23 + $0x470] sm:$0xff]
    %v1824 = vld [vmem:[#allocation23 + $0x478] sm:$0xff]
    %v1825 = vld [vmem:[#allocation23 + $0x480] sm:$0xff]
    %v1826 = vld [vmem:[#allocation23 + $0x488] sm:$0xff]
    %v1827 = vld [vmem:[#allocation23 + $0x490] sm:$0xff]
    %v1828 = vld [vmem:[#allocation23 + $0x498] sm:$0xff]
    %v1829 = vld [vmem:[#allocation23 + $0x4a0] sm:$0xff]
    %v1830 = vld [vmem:[#allocation23 + $0x4a8] sm:$0xff]
    %v1831 = vld [vmem:[#allocation23 + $0x4b0] sm:$0xff]
    %v1832 = vld [vmem:[#allocation23 + $0x4b8] sm:$0xff]
    %v1833 = vld [vmem:[#allocation23 + $0x4c0] sm:$0xff]
    %v1834 = vld [vmem:[#allocation23 + $0x4c8] sm:$0xff]
    %v1835 = vld [vmem:[#allocation23 + $0x4d0] sm:$0xff]
    %v1836 = vld [vmem:[#allocation23 + $0x4d8] sm:$0xff]
    %v1837 = vld [vmem:[#allocation23 + $0x4e0] sm:$0xff]
    %v1838 = vld [vmem:[#allocation23 + $0x4e8] sm:$0xff]
    %v1839 = vld [vmem:[#allocation23 + $0x4f0] sm:$0xff]
    %v1840 = vld [vmem:[#allocation23 + $0x4f8] sm:$0xff]
    %v1841 = vld [vmem:[#allocation23 + $0x500] sm:$0xff]
    %v1842 = vld [vmem:[#allocation23 + $0x508] sm:$0xff]
    %v1843 = vld [vmem:[#allocation23 + $0x510] sm:$0xff]
    %v1844 = vld [vmem:[#allocation23 + $0x518] sm:$0xff]
    %v1845 = vld [vmem:[#allocation23 + $0x520] sm:$0xff]
    %v1846 = vld [vmem:[#allocation23 + $0x528] sm:$0xff]
    %v1847 = vld [vmem:[#allocation23 + $0x530] sm:$0xff]
    %v1848 = vld [vmem:[#allocation23 + $0x538] sm:$0xff]
    %v1849 = vld [vmem:[#allocation23 + $0x540] sm:$0xff]
    %v1850 = vld [vmem:[#allocation23 + $0x548] sm:$0xff]
    %v1851 = vld [vmem:[#allocation23 + $0x550] sm:$0xff]
    %v1852 = vld [vmem:[#allocation23 + $0x558] sm:$0xff]
    %v1853 = vld [vmem:[#allocation23 + $0x560] sm:$0xff]
    %v1854 = vld [vmem:[#allocation23 + $0x568] sm:$0xff]
    %v1855 = vld [vmem:[#allocation23 + $0x570] sm:$0xff]
    %v1856 = vld [vmem:[#allocation23 + $0x578] sm:$0xff]
    %v1857 = vld [vmem:[#allocation23 + $0x580] sm:$0xff]
    %v1858 = vld [vmem:[#allocation23 + $0x588] sm:$0xff]
    %v1859 = vld [vmem:[#allocation23 + $0x590] sm:$0xff]
    %v1860 = vld [vmem:[#allocation23 + $0x598] sm:$0xff]
    %v1861 = vld [vmem:[#allocation23 + $0x5a0] sm:$0xff]
    %v1862 = vld [vmem:[#allocation23 + $0x5a8] sm:$0xff]
    %v1863 = vld [vmem:[#allocation23 + $0x5b0] sm:$0xff]
    %v1864 = vld [vmem:[#allocation23 + $0x5b8] sm:$0xff]
    %v1865 = vld [vmem:[#allocation23 + $0x5c0] sm:$0xff]
    %v1866 = vld [vmem:[#allocation23 + $0x5c8] sm:$0xff]
    %v1867 = vld [vmem:[#allocation23 + $0x5d0] sm:$0xff]
    %v1868 = vld [vmem:[#allocation23 + $0x5d8] sm:$0xff]
    %v1869 = vld [vmem:[#allocation23 + $0x5e0] sm:$0xff]
    %v1870 = vld [vmem:[#allocation23 + $0x5e8] sm:$0xff]
    %v1871 = vld [vmem:[#allocation23 + $0x5f0] sm:$0xff]
    %v1872 = vld [vmem:[#allocation23 + $0x5f8] sm:$0xff]
    %v1873 = vld [vmem:[#allocation23 + $0x600] sm:$0xff]
    %v1874 = vld [vmem:[#allocation23 + $0x608] sm:$0xff]
    %v1875 = vld [vmem:[#allocation23 + $0x610] sm:$0xff]
    %v1876 = vld [vmem:[#allocation23 + $0x618] sm:$0xff]
    %v1877 = vld [vmem:[#allocation23 + $0x620] sm:$0xff]
    %v1878 = vld [vmem:[#allocation23 + $0x628] sm:$0xff]
    %v1879 = vld [vmem:[#allocation23 + $0x630] sm:$0xff]
    %v1880 = vld [vmem:[#allocation23 + $0x638] sm:$0xff]
    %v1881 = vld [vmem:[#allocation23 + $0x640] sm:$0xff]
    %v1882 = vld [vmem:[#allocation23 + $0x648] sm:$0xff]
    %v1883 = vld [vmem:[#allocation23 + $0x650] sm:$0xff]
    %v1884 = vld [vmem:[#allocation23 + $0x658] sm:$0xff]
    %v1885 = vld [vmem:[#allocation23 + $0x660] sm:$0xff]
    %v1886 = vld [vmem:[#allocation23 + $0x668] sm:$0xff]
    %v1887 = vld [vmem:[#allocation23 + $0x670] sm:$0xff]
    %v1888 = vld [vmem:[#allocation23 + $0x678] sm:$0xff]
    %v1889 = vld [vmem:[#allocation23 + $0x680] sm:$0xff]
    %v1890 = vld [vmem:[#allocation23 + $0x688] sm:$0xff]
    %v1891 = vld [vmem:[#allocation23 + $0x690] sm:$0xff]
    %v1892 = vld [vmem:[#allocation23 + $0x698] sm:$0xff]
    %v1893 = vld [vmem:[#allocation23 + $0x6a0] sm:$0xff]
    %v1894 = vld [vmem:[#allocation23 + $0x6a8] sm:$0xff]
    %v1895 = vld [vmem:[#allocation23 + $0x6b0] sm:$0xff]
    %v1896 = vld [vmem:[#allocation23 + $0x6b8] sm:$0xff]
    %v1897 = vld [vmem:[#allocation23 + $0x6c0] sm:$0xff]
    %v1898 = vld [vmem:[#allocation23 + $0x6c8] sm:$0xff]
    %v1899 = vld [vmem:[#allocation23 + $0x6d0] sm:$0xff]
    %v1900 = vld [vmem:[#allocation23 + $0x6d8] sm:$0xff]
    %v1901 = vld [vmem:[#allocation23 + $0x6e0] sm:$0xff]
    %v1902 = vld [vmem:[#allocation23 + $0x6e8] sm:$0xff]
    %v1903 = vld [vmem:[#allocation23 + $0x6f0] sm:$0xff]
    %v1904 = vld [vmem:[#allocation23 + $0x6f8] sm:$0xff]
    %v1905 = vld [vmem:[#allocation23 + $0x700] sm:$0xff]
    %v1906 = vld [vmem:[#allocation23 + $0x708] sm:$0xff]
    %v1907 = vld [vmem:[#allocation23 + $0x710] sm:$0xff]
    %v1908 = vld [vmem:[#allocation23 + $0x718] sm:$0xff]
    %v1909 = vld [vmem:[#allocation23 + $0x720] sm:$0xff]
    %v1910 = vld [vmem:[#allocation23 + $0x728] sm:$0xff]
    %v1911 = vld [vmem:[#allocation23 + $0x730] sm:$0xff]
    %v1912 = vld [vmem:[#allocation23 + $0x738] sm:$0xff]
    %v1913 = vld [vmem:[#allocation23 + $0x740] sm:$0xff]
    %v1914 = vld [vmem:[#allocation23 + $0x748] sm:$0xff]
    %v1915 = vld [vmem:[#allocation23 + $0x750] sm:$0xff]
    %v1916 = vld [vmem:[#allocation23 + $0x758] sm:$0xff]
    %v1917 = vld [vmem:[#allocation23 + $0x760] sm:$0xff]
    %v1918 = vld [vmem:[#allocation23 + $0x768] sm:$0xff]
    %v1919 = vld [vmem:[#allocation23 + $0x770] sm:$0xff]
    %v1920 = vld [vmem:[#allocation23 + $0x778] sm:$0xff]
    %v1921 = vld [vmem:[#allocation23 + $0x780] sm:$0xff]
    %v1922 = vld [vmem:[#allocation23 + $0x788] sm:$0xff]
    %v1923 = vld [vmem:[#allocation23 + $0x790] sm:$0xff]
    %v1924 = vld [vmem:[#allocation23 + $0x798] sm:$0xff]
    %v1925 = vld [vmem:[#allocation23 + $0x7a0] sm:$0xff]
    %v1926 = vld [vmem:[#allocation23 + $0x7a8] sm:$0xff]
    %v1927 = vld [vmem:[#allocation23 + $0x7b0] sm:$0xff]
    %v1928 = vld [vmem:[#allocation23 + $0x7b8] sm:$0xff]
    %v1929 = vld [vmem:[#allocation23 + $0x7c0] sm:$0xff]
    %v1930 = vld [vmem:[#allocation23 + $0x7c8] sm:$0xff]
    %v1931 = vld [vmem:[#allocation23 + $0x7d0] sm:$0xff]
    %v1932 = vld [vmem:[#allocation23 + $0x7d8] sm:$0xff]
    %v1933 = vld [vmem:[#allocation23 + $0x7e0] sm:$0xff]
    %v1934 = vld [vmem:[#allocation23 + $0x7e8] sm:$0xff]
    %v1935 = vld [vmem:[#allocation23 + $0x7f0] sm:$0xff]
    %v1936 = vld [vmem:[#allocation23 + $0x7f8] sm:$0xff]
    %v1937 = vld [vmem:[#allocation25] sm:$0x3]
    %v1939 = vperm.slane %v1937, 0
    %v1940 = vperm.slane %v1937, 1
    %1943 = vmatpush.msra.mxu0 %v1711
    %1944 = vmatpush.msra.mxu0 %v1709
    %1945 = vmatpush.msra.mxu0 %v1707
    %1946 = vmatpush.msra.mxu0 %v1705
    %1947 = vmatpush.msra.mxu0 %v1703
    %1948 = vmatpush.msra.mxu0 %v1701
    %1949 = vmatpush.msra.mxu0 %v1699
    %1950 = vmatpush.msra.mxu0 %v1697
    %1951 = vmatpush.msra.mxu0 %v1695
    %1952 = vmatpush.msra.mxu0 %v1693
    %1953 = vmatpush.msra.mxu0 %v1691
    %1954 = vmatpush.msra.mxu0 %v1689
    %1955 = vmatpush.msra.mxu0 %v1687
    %1956 = vmatpush.msra.mxu0 %v1685
    %1957 = vmatpush.msra.mxu0 %v1683
    %1958 = vmatpush.msra.mxu0 %v1681
    %1959 = vmatmul.f32.gmra.mxu0 %v1673
    %v1960 = vpop.f32.mrf.mxu0
    %v1961 = vadd.f32 %v1939, %v1960
    %1962 = vdwg.mxu0
    %1963 = vmatpush.msra.mxu0 %v1743
    %1964 = vmatpush.msra.mxu0 %v1741
    %1965 = vmatpush.msra.mxu0 %v1739
    %1966 = vmatpush.msra.mxu0 %v1737
    %1967 = vmatpush.msra.mxu0 %v1735
    %1968 = vmatpush.msra.mxu0 %v1733
    %1969 = vmatpush.msra.mxu0 %v1731
    %1970 = vmatpush.msra.mxu0 %v1729
    %1971 = vmatpush.msra.mxu0 %v1727
    %1972 = vmatpush.msra.mxu0 %v1725
    %1973 = vmatpush.msra.mxu0 %v1723
    %1974 = vmatpush.msra.mxu0 %v1721
    %1975 = vmatpush.msra.mxu0 %v1719
    %1976 = vmatpush.msra.mxu0 %v1717
    %1977 = vmatpush.msra.mxu0 %v1715
    %1978 = vmatpush.msra.mxu0 %v1713
    %1979 = vmatmul.f32.gmra.mxu0 %v1674
    %v1980 = vpop.f32.mrf.mxu0
    %v1981 = vadd.f32 %v1961, %v1980
    %1982 = vdwg.mxu0
    %1983 = vmatpush.msra.mxu0 %v1775
    %1984 = vmatpush.msra.mxu0 %v1773
    %1985 = vmatpush.msra.mxu0 %v1771
    %1986 = vmatpush.msra.mxu0 %v1769
    %1987 = vmatpush.msra.mxu0 %v1767
    %1988 = vmatpush.msra.mxu0 %v1765
    %1989 = vmatpush.msra.mxu0 %v1763
    %1990 = vmatpush.msra.mxu0 %v1761
    %1991 = vmatpush.msra.mxu0 %v1759
    %1992 = vmatpush.msra.mxu0 %v1757
    %1993 = vmatpush.msra.mxu0 %v1755
    %1994 = vmatpush.msra.mxu0 %v1753
    %1995 = vmatpush.msra.mxu0 %v1751
    %1996 = vmatpush.msra.mxu0 %v1749
    %1997 = vmatpush.msra.mxu0 %v1747
    %1998 = vmatpush.msra.mxu0 %v1745
    %1999 = vmatmul.f32.gmra.mxu0 %v1675
    %v2000 = vpop.f32.mrf.mxu0
    %v2001 = vadd.f32 %v1981, %v2000
    %2002 = vdwg.mxu0
    %2003 = vmatpush.msra.mxu0 %v1807
    %2004 = vmatpush.msra.mxu0 %v1805
    %2005 = vmatpush.msra.mxu0 %v1803
    %2006 = vmatpush.msra.mxu0 %v1801
    %2007 = vmatpush.msra.mxu0 %v1799
    %2008 = vmatpush.msra.mxu0 %v1797
    %2009 = vmatpush.msra.mxu0 %v1795
    %2010 = vmatpush.msra.mxu0 %v1793
    %2011 = vmatpush.msra.mxu0 %v1791
    %2012 = vmatpush.msra.mxu0 %v1789
    %2013 = vmatpush.msra.mxu0 %v1787
    %2014 = vmatpush.msra.mxu0 %v1785
    %2015 = vmatpush.msra.mxu0 %v1783
    %2016 = vmatpush.msra.mxu0 %v1781
    %2017 = vmatpush.msra.mxu0 %v1779
    %2018 = vmatpush.msra.mxu0 %v1777
    %2019 = vmatmul.f32.gmra.mxu0 %v1676
    %v2020 = vpop.f32.mrf.mxu0
    %v2021 = vadd.f32 %v2001, %v2020
    %2022 = vdwg.mxu0
    %2023 = vmatpush.msra.mxu0 %v1839
    %2024 = vmatpush.msra.mxu0 %v1837
    %2025 = vmatpush.msra.mxu0 %v1835
    %2026 = vmatpush.msra.mxu0 %v1833
    %2027 = vmatpush.msra.mxu0 %v1831
    %2028 = vmatpush.msra.mxu0 %v1829
    %2029 = vmatpush.msra.mxu0 %v1827
    %2030 = vmatpush.msra.mxu0 %v1825
    %2031 = vmatpush.msra.mxu0 %v1823
    %2032 = vmatpush.msra.mxu0 %v1821
    %2033 = vmatpush.msra.mxu0 %v1819
    %2034 = vmatpush.msra.mxu0 %v1817
    %2035 = vmatpush.msra.mxu0 %v1815
    %2036 = vmatpush.msra.mxu0 %v1813
    %2037 = vmatpush.msra.mxu0 %v1811
    %2038 = vmatpush.msra.mxu0 %v1809
    %2039 = vmatmul.f32.gmra.mxu0 %v1677
    %v2040 = vpop.f32.mrf.mxu0
    %v2041 = vadd.f32 %v2021, %v2040
    %2042 = vdwg.mxu0
    %2043 = vmatpush.msra.mxu0 %v1871
    %2044 = vmatpush.msra.mxu0 %v1869
    %2045 = vmatpush.msra.mxu0 %v1867
    %2046 = vmatpush.msra.mxu0 %v1865
    %2047 = vmatpush.msra.mxu0 %v1863
    %2048 = vmatpush.msra.mxu0 %v1861
    %2049 = vmatpush.msra.mxu0 %v1859
    %2050 = vmatpush.msra.mxu0 %v1857
    %2051 = vmatpush.msra.mxu0 %v1855
    %2052 = vmatpush.msra.mxu0 %v1853
    %2053 = vmatpush.msra.mxu0 %v1851
    %2054 = vmatpush.msra.mxu0 %v1849
    %2055 = vmatpush.msra.mxu0 %v1847
    %2056 = vmatpush.msra.mxu0 %v1845
    %2057 = vmatpush.msra.mxu0 %v1843
    %2058 = vmatpush.msra.mxu0 %v1841
    %2059 = vmatmul.f32.gmra.mxu0 %v1678
    %v2060 = vpop.f32.mrf.mxu0
    %v2061 = vadd.f32 %v2041, %v2060
    %2062 = vdwg.mxu0
    %2063 = vmatpush.msra.mxu0 %v1903
    %2064 = vmatpush.msra.mxu0 %v1901
    %2065 = vmatpush.msra.mxu0 %v1899
    %2066 = vmatpush.msra.mxu0 %v1897
    %2067 = vmatpush.msra.mxu0 %v1895
    %2068 = vmatpush.msra.mxu0 %v1893
    %2069 = vmatpush.msra.mxu0 %v1891
    %2070 = vmatpush.msra.mxu0 %v1889
    %2071 = vmatpush.msra.mxu0 %v1887
    %2072 = vmatpush.msra.mxu0 %v1885
    %2073 = vmatpush.msra.mxu0 %v1883
    %2074 = vmatpush.msra.mxu0 %v1881
    %2075 = vmatpush.msra.mxu0 %v1879
    %2076 = vmatpush.msra.mxu0 %v1877
    %2077 = vmatpush.msra.mxu0 %v1875
    %2078 = vmatpush.msra.mxu0 %v1873
    %2079 = vmatmul.f32.gmra.mxu0 %v1679
    %v2080 = vpop.f32.mrf.mxu0
    %v2081 = vadd.f32 %v2061, %v2080
    %2082 = vdwg.mxu0
    %2083 = vmatpush.msra.mxu0 %v1935
    %2084 = vmatpush.msra.mxu0 %v1933
    %2085 = vmatpush.msra.mxu0 %v1931
    %2086 = vmatpush.msra.mxu0 %v1929
    %2087 = vmatpush.msra.mxu0 %v1927
    %2088 = vmatpush.msra.mxu0 %v1925
    %2089 = vmatpush.msra.mxu0 %v1923
    %2090 = vmatpush.msra.mxu0 %v1921
    %2091 = vmatpush.msra.mxu0 %v1919
    %2092 = vmatpush.msra.mxu0 %v1917
    %2093 = vmatpush.msra.mxu0 %v1915
    %2094 = vmatpush.msra.mxu0 %v1913
    %2095 = vmatpush.msra.mxu0 %v1911
    %2096 = vmatpush.msra.mxu0 %v1909
    %2097 = vmatpush.msra.mxu0 %v1907
    %2098 = vmatpush.msra.mxu0 %v1905
    %2099 = vmatmul.f32.gmra.mxu0 %v1680
    %v2100 = vpop.f32.mrf.mxu0
    %v2101 = vadd.f32 %v2081, %v2100
    %2102 = vdwg.mxu0
    %2103 = vmatpush.msra.mxu0 %v1712
    %2104 = vmatpush.msra.mxu0 %v1710
    %2105 = vmatpush.msra.mxu0 %v1708
    %2106 = vmatpush.msra.mxu0 %v1706
    %2107 = vmatpush.msra.mxu0 %v1704
    %2108 = vmatpush.msra.mxu0 %v1702
    %2109 = vmatpush.msra.mxu0 %v1700
    %2110 = vmatpush.msra.mxu0 %v1698
    %2111 = vmatpush.msra.mxu0 %v1696
    %2112 = vmatpush.msra.mxu0 %v1694
    %2113 = vmatpush.msra.mxu0 %v1692
    %2114 = vmatpush.msra.mxu0 %v1690
    %2115 = vmatpush.msra.mxu0 %v1688
    %2116 = vmatpush.msra.mxu0 %v1686
    %2117 = vmatpush.msra.mxu0 %v1684
    %2118 = vmatpush.msra.mxu0 %v1682
    %2119 = vmatmul.f32.gmra.mxu0 %v1673
    %v2120 = vpop.f32.mrf.mxu0
    %v2121 = vadd.f32 %v1940, %v2120
    %2122 = vdwg.mxu0
    %2123 = vmatpush.msra.mxu0 %v1744
    %2124 = vmatpush.msra.mxu0 %v1742
    %2125 = vmatpush.msra.mxu0 %v1740
    %2126 = vmatpush.msra.mxu0 %v1738
    %2127 = vmatpush.msra.mxu0 %v1736
    %2128 = vmatpush.msra.mxu0 %v1734
    %2129 = vmatpush.msra.mxu0 %v1732
    %2130 = vmatpush.msra.mxu0 %v1730
    %2131 = vmatpush.msra.mxu0 %v1728
    %2132 = vmatpush.msra.mxu0 %v1726
    %2133 = vmatpush.msra.mxu0 %v1724
    %2134 = vmatpush.msra.mxu0 %v1722
    %2135 = vmatpush.msra.mxu0 %v1720
    %2136 = vmatpush.msra.mxu0 %v1718
    %2137 = vmatpush.msra.mxu0 %v1716
    %2138 = vmatpush.msra.mxu0 %v1714
    %2139 = vmatmul.f32.gmra.mxu0 %v1674
    %v2140 = vpop.f32.mrf.mxu0
    %v2141 = vadd.f32 %v2121, %v2140
    %2142 = vdwg.mxu0
    %2143 = vmatpush.msra.mxu0 %v1776
    %2144 = vmatpush.msra.mxu0 %v1774
    %2145 = vmatpush.msra.mxu0 %v1772
    %2146 = vmatpush.msra.mxu0 %v1770
    %2147 = vmatpush.msra.mxu0 %v1768
    %2148 = vmatpush.msra.mxu0 %v1766
    %2149 = vmatpush.msra.mxu0 %v1764
    %2150 = vmatpush.msra.mxu0 %v1762
    %2151 = vmatpush.msra.mxu0 %v1760
    %2152 = vmatpush.msra.mxu0 %v1758
    %2153 = vmatpush.msra.mxu0 %v1756
    %2154 = vmatpush.msra.mxu0 %v1754
    %2155 = vmatpush.msra.mxu0 %v1752
    %2156 = vmatpush.msra.mxu0 %v1750
    %2157 = vmatpush.msra.mxu0 %v1748
    %2158 = vmatpush.msra.mxu0 %v1746
    %2159 = vmatmul.f32.gmra.mxu0 %v1675
    %v2160 = vpop.f32.mrf.mxu0
    %v2161 = vadd.f32 %v2141, %v2160
    %2162 = vdwg.mxu0
    %2163 = vmatpush.msra.mxu0 %v1808
    %2164 = vmatpush.msra.mxu0 %v1806
    %2165 = vmatpush.msra.mxu0 %v1804
    %2166 = vmatpush.msra.mxu0 %v1802
    %2167 = vmatpush.msra.mxu0 %v1800
    %2168 = vmatpush.msra.mxu0 %v1798
    %2169 = vmatpush.msra.mxu0 %v1796
    %2170 = vmatpush.msra.mxu0 %v1794
    %2171 = vmatpush.msra.mxu0 %v1792
    %2172 = vmatpush.msra.mxu0 %v1790
    %2173 = vmatpush.msra.mxu0 %v1788
    %2174 = vmatpush.msra.mxu0 %v1786
    %2175 = vmatpush.msra.mxu0 %v1784
    %2176 = vmatpush.msra.mxu0 %v1782
    %2177 = vmatpush.msra.mxu0 %v1780
    %2178 = vmatpush.msra.mxu0 %v1778
    %2179 = vmatmul.f32.gmra.mxu0 %v1676
    %v2180 = vpop.f32.mrf.mxu0
    %v2181 = vadd.f32 %v2161, %v2180
    %2182 = vdwg.mxu0
    %2183 = vmatpush.msra.mxu0 %v1840
    %2184 = vmatpush.msra.mxu0 %v1838
    %2185 = vmatpush.msra.mxu0 %v1836
    %2186 = vmatpush.msra.mxu0 %v1834
    %2187 = vmatpush.msra.mxu0 %v1832
    %2188 = vmatpush.msra.mxu0 %v1830
    %2189 = vmatpush.msra.mxu0 %v1828
    %2190 = vmatpush.msra.mxu0 %v1826
    %2191 = vmatpush.msra.mxu0 %v1824
    %2192 = vmatpush.msra.mxu0 %v1822
    %2193 = vmatpush.msra.mxu0 %v1820
    %2194 = vmatpush.msra.mxu0 %v1818
    %2195 = vmatpush.msra.mxu0 %v1816
    %2196 = vmatpush.msra.mxu0 %v1814
    %2197 = vmatpush.msra.mxu0 %v1812
    %2198 = vmatpush.msra.mxu0 %v1810
    %2199 = vmatmul.f32.gmra.mxu0 %v1677
    %v2200 = vpop.f32.mrf.mxu0
    %v2201 = vadd.f32 %v2181, %v2200
    %2202 = vdwg.mxu0
    %2203 = vmatpush.msra.mxu0 %v1872
    %2204 = vmatpush.msra.mxu0 %v1870
    %2205 = vmatpush.msra.mxu0 %v1868
    %2206 = vmatpush.msra.mxu0 %v1866
    %2207 = vmatpush.msra.mxu0 %v1864
    %2208 = vmatpush.msra.mxu0 %v1862
    %2209 = vmatpush.msra.mxu0 %v1860
    %2210 = vmatpush.msra.mxu0 %v1858
    %2211 = vmatpush.msra.mxu0 %v1856
    %2212 = vmatpush.msra.mxu0 %v1854
    %2213 = vmatpush.msra.mxu0 %v1852
    %2214 = vmatpush.msra.mxu0 %v1850
    %2215 = vmatpush.msra.mxu0 %v1848
    %2216 = vmatpush.msra.mxu0 %v1846
    %2217 = vmatpush.msra.mxu0 %v1844
    %2218 = vmatpush.msra.mxu0 %v1842
    %2219 = vmatmul.f32.gmra.mxu0 %v1678
    %v2220 = vpop.f32.mrf.mxu0
    %v2221 = vadd.f32 %v2201, %v2220
    %2222 = vdwg.mxu0
    %2223 = vmatpush.msra.mxu0 %v1904
    %2224 = vmatpush.msra.mxu0 %v1902
    %2225 = vmatpush.msra.mxu0 %v1900
    %2226 = vmatpush.msra.mxu0 %v1898
    %2227 = vmatpush.msra.mxu0 %v1896
    %2228 = vmatpush.msra.mxu0 %v1894
    %2229 = vmatpush.msra.mxu0 %v1892
    %2230 = vmatpush.msra.mxu0 %v1890
    %2231 = vmatpush.msra.mxu0 %v1888
    %2232 = vmatpush.msra.mxu0 %v1886
    %2233 = vmatpush.msra.mxu0 %v1884
    %2234 = vmatpush.msra.mxu0 %v1882
    %2235 = vmatpush.msra.mxu0 %v1880
    %2236 = vmatpush.msra.mxu0 %v1878
    %2237 = vmatpush.msra.mxu0 %v1876
    %2238 = vmatpush.msra.mxu0 %v1874
    %2239 = vmatmul.f32.gmra.mxu0 %v1679
    %v2240 = vpop.f32.mrf.mxu0
    %v2241 = vadd.f32 %v2221, %v2240
    %2242 = vdwg.mxu0
    %2243 = vmatpush.msra.mxu0 %v1936
    %2244 = vmatpush.msra.mxu0 %v1934
    %2245 = vmatpush.msra.mxu0 %v1932
    %2246 = vmatpush.msra.mxu0 %v1930
    %2247 = vmatpush.msra.mxu0 %v1928
    %2248 = vmatpush.msra.mxu0 %v1926
    %2249 = vmatpush.msra.mxu0 %v1924
    %2250 = vmatpush.msra.mxu0 %v1922
    %2251 = vmatpush.msra.mxu0 %v1920
    %2252 = vmatpush.msra.mxu0 %v1918
    %2253 = vmatpush.msra.mxu0 %v1916
    %2254 = vmatpush.msra.mxu0 %v1914
    %2255 = vmatpush.msra.mxu0 %v1912
    %2256 = vmatpush.msra.mxu0 %v1910
    %2257 = vmatpush.msra.mxu0 %v1908
    %2258 = vmatpush.msra.mxu0 %v1906
    %2259 = vmatmul.f32.gmra.mxu0 %v1680
    %v2260 = vpop.f32.mrf.mxu0
    %v2261 = vadd.f32 %v2241, %v2260
    %2262 = vdwg.mxu0
    %v2263 = vadd.f32 %v904, %v2101
    %v2264 = vadd.f32 %v905, %v2261
    %v2265 = vsel %vm906, %v2263, 0.0
    %v2266 = vsel %vm906, %v2264, 0.0
    %v2267 = vadd.f32 %v2265, %v2266
    %2268 = vadd.xlane.f32.xlu0 %v2267
    %v2269 = vpop.xlane.xlu0 %2268
    %v2270 = vmul.f32 %v2269, %v918
    %v2271 = vsub.f32 %v2263, %v2270
    %v2272 = vsub.f32 %v2264, %v2270
    %v2273 = vmul.f32 %v2271, %v2271
    %v2274 = vmul.f32 %v2272, %v2272
    %v2275 = vsel %vm906, %v2273, 0.0
    %v2276 = vsel %vm906, %v2274, 0.0
    %v2277 = vadd.f32 %v2275, %v2276
    %2278 = vadd.xlane.f32.xlu0 %v2277
    %v2279 = vpop.xlane.xlu0 %2278
    %v2280 = vmul.f32 %v2279, %v918
    %v2281 = vadd.f32 %v2280, 1e-05
    %v2282 = vrsqrt.pop %v2281
    %v2283 = vmul.f32 %v2282, %v2281
    %v2284 = vmul.f32 %v2283, %v2282
    %v2285 = vmul.f32 0.5, %v2284
    %v2286 = vsub.f32 1.5, %v2285
    %v2287 = vmul.f32 %v2282, %v2286
    %vm2288 = vweird.f32 %v2281
    %vm2289 = vweird.f32 %v2282
    %vm2290 = vmor %vm2288, %vm2289
    %v2291 = vsel %vm2290, %v2282, %v2287
    %v2292 = vmul.f32 %v2271, %v2291
    %v2293 = vmul.f32 %v2272, %v2291
    %s2294 = scalar_lea.vmem [#allocation17], 2
    %v2295 = vld [vmem:[%s2294] sm:$0x3]
    %v2297 = vperm.slane %v2295, 0
    %v2298 = vperm.slane %v2295, 1
    %v2301 = vmul.f32 %v2292, %v2297
    %v2302 = vmul.f32 %v2293, %v2298
    %s2303 = scalar_lea.vmem [#allocation19], 2
    %v2304 = vld [vmem:[%s2303] sm:$0x3]
    %v2306 = vperm.slane %v2304, 0
    %v2307 = vperm.slane %v2304, 1
    %v2310 = vadd.f32 %v2301, %v2306
    %v2311 = vadd.f32 %v2302, %v2307
    %s2312 = scalar_lea.vmem [#allocation20], 2048
    %v2313 = vld [vmem:[%s2312] sm:$0xff]
    %v2314 = vld [vmem:[%s2312 + $0x8] sm:$0xff]
    %v2315 = vld [vmem:[%s2312 + $0x10] sm:$0xff]
    %v2316 = vld [vmem:[%s2312 + $0x18] sm:$0xff]
    %v2317 = vld [vmem:[%s2312 + $0x20] sm:$0xff]
    %v2318 = vld [vmem:[%s2312 + $0x28] sm:$0xff]
    %v2319 = vld [vmem:[%s2312 + $0x30] sm:$0xff]
    %v2320 = vld [vmem:[%s2312 + $0x38] sm:$0xff]
    %v2321 = vld [vmem:[%s2312 + $0x40] sm:$0xff]
    %v2322 = vld [vmem:[%s2312 + $0x48] sm:$0xff]
    %v2323 = vld [vmem:[%s2312 + $0x50] sm:$0xff]
    %v2324 = vld [vmem:[%s2312 + $0x58] sm:$0xff]
    %v2325 = vld [vmem:[%s2312 + $0x60] sm:$0xff]
    %v2326 = vld [vmem:[%s2312 + $0x68] sm:$0xff]
    %v2327 = vld [vmem:[%s2312 + $0x70] sm:$0xff]
    %v2328 = vld [vmem:[%s2312 + $0x78] sm:$0xff]
    %v2329 = vld [vmem:[%s2312 + $0x80] sm:$0xff]
    %v2330 = vld [vmem:[%s2312 + $0x88] sm:$0xff]
    %v2331 = vld [vmem:[%s2312 + $0x90] sm:$0xff]
    %v2332 = vld [vmem:[%s2312 + $0x98] sm:$0xff]
    %v2333 = vld [vmem:[%s2312 + $0xa0] sm:$0xff]
    %v2334 = vld [vmem:[%s2312 + $0xa8] sm:$0xff]
    %v2335 = vld [vmem:[%s2312 + $0xb0] sm:$0xff]
    %v2336 = vld [vmem:[%s2312 + $0xb8] sm:$0xff]
    %v2337 = vld [vmem:[%s2312 + $0xc0] sm:$0xff]
    %v2338 = vld [vmem:[%s2312 + $0xc8] sm:$0xff]
    %v2339 = vld [vmem:[%s2312 + $0xd0] sm:$0xff]
    %v2340 = vld [vmem:[%s2312 + $0xd8] sm:$0xff]
    %v2341 = vld [vmem:[%s2312 + $0xe0] sm:$0xff]
    %v2342 = vld [vmem:[%s2312 + $0xe8] sm:$0xff]
    %v2343 = vld [vmem:[%s2312 + $0xf0] sm:$0xff]
    %v2344 = vld [vmem:[%s2312 + $0xf8] sm:$0xff]
    %v2345 = vld [vmem:[%s2312 + $0x100] sm:$0xff]
    %v2346 = vld [vmem:[%s2312 + $0x108] sm:$0xff]
    %v2347 = vld [vmem:[%s2312 + $0x110] sm:$0xff]
    %v2348 = vld [vmem:[%s2312 + $0x118] sm:$0xff]
    %v2349 = vld [vmem:[%s2312 + $0x120] sm:$0xff]
    %v2350 = vld [vmem:[%s2312 + $0x128] sm:$0xff]
    %v2351 = vld [vmem:[%s2312 + $0x130] sm:$0xff]
    %v2352 = vld [vmem:[%s2312 + $0x138] sm:$0xff]
    %v2353 = vld [vmem:[%s2312 + $0x140] sm:$0xff]
    %v2354 = vld [vmem:[%s2312 + $0x148] sm:$0xff]
    %v2355 = vld [vmem:[%s2312 + $0x150] sm:$0xff]
    %v2356 = vld [vmem:[%s2312 + $0x158] sm:$0xff]
    %v2357 = vld [vmem:[%s2312 + $0x160] sm:$0xff]
    %v2358 = vld [vmem:[%s2312 + $0x168] sm:$0xff]
    %v2359 = vld [vmem:[%s2312 + $0x170] sm:$0xff]
    %v2360 = vld [vmem:[%s2312 + $0x178] sm:$0xff]
    %v2361 = vld [vmem:[%s2312 + $0x180] sm:$0xff]
    %v2362 = vld [vmem:[%s2312 + $0x188] sm:$0xff]
    %v2363 = vld [vmem:[%s2312 + $0x190] sm:$0xff]
    %v2364 = vld [vmem:[%s2312 + $0x198] sm:$0xff]
    %v2365 = vld [vmem:[%s2312 + $0x1a0] sm:$0xff]
    %v2366 = vld [vmem:[%s2312 + $0x1a8] sm:$0xff]
    %v2367 = vld [vmem:[%s2312 + $0x1b0] sm:$0xff]
    %v2368 = vld [vmem:[%s2312 + $0x1b8] sm:$0xff]
    %v2369 = vld [vmem:[%s2312 + $0x1c0] sm:$0xff]
    %v2370 = vld [vmem:[%s2312 + $0x1c8] sm:$0xff]
    %v2371 = vld [vmem:[%s2312 + $0x1d0] sm:$0xff]
    %v2372 = vld [vmem:[%s2312 + $0x1d8] sm:$0xff]
    %v2373 = vld [vmem:[%s2312 + $0x1e0] sm:$0xff]
    %v2374 = vld [vmem:[%s2312 + $0x1e8] sm:$0xff]
    %v2375 = vld [vmem:[%s2312 + $0x1f0] sm:$0xff]
    %v2376 = vld [vmem:[%s2312 + $0x1f8] sm:$0xff]
    %v2377 = vld [vmem:[%s2312 + $0x200] sm:$0xff]
    %v2378 = vld [vmem:[%s2312 + $0x208] sm:$0xff]
    %v2379 = vld [vmem:[%s2312 + $0x210] sm:$0xff]
    %v2380 = vld [vmem:[%s2312 + $0x218] sm:$0xff]
    %v2381 = vld [vmem:[%s2312 + $0x220] sm:$0xff]
    %v2382 = vld [vmem:[%s2312 + $0x228] sm:$0xff]
    %v2383 = vld [vmem:[%s2312 + $0x230] sm:$0xff]
    %v2384 = vld [vmem:[%s2312 + $0x238] sm:$0xff]
    %v2385 = vld [vmem:[%s2312 + $0x240] sm:$0xff]
    %v2386 = vld [vmem:[%s2312 + $0x248] sm:$0xff]
    %v2387 = vld [vmem:[%s2312 + $0x250] sm:$0xff]
    %v2388 = vld [vmem:[%s2312 + $0x258] sm:$0xff]
    %v2389 = vld [vmem:[%s2312 + $0x260] sm:$0xff]
    %v2390 = vld [vmem:[%s2312 + $0x268] sm:$0xff]
    %v2391 = vld [vmem:[%s2312 + $0x270] sm:$0xff]
    %v2392 = vld [vmem:[%s2312 + $0x278] sm:$0xff]
    %v2393 = vld [vmem:[%s2312 + $0x280] sm:$0xff]
    %v2394 = vld [vmem:[%s2312 + $0x288] sm:$0xff]
    %v2395 = vld [vmem:[%s2312 + $0x290] sm:$0xff]
    %v2396 = vld [vmem:[%s2312 + $0x298] sm:$0xff]
    %v2397 = vld [vmem:[%s2312 + $0x2a0] sm:$0xff]
    %v2398 = vld [vmem:[%s2312 + $0x2a8] sm:$0xff]
    %v2399 = vld [vmem:[%s2312 + $0x2b0] sm:$0xff]
    %v2400 = vld [vmem:[%s2312 + $0x2b8] sm:$0xff]
    %v2401 = vld [vmem:[%s2312 + $0x2c0] sm:$0xff]
    %v2402 = vld [vmem:[%s2312 + $0x2c8] sm:$0xff]
    %v2403 = vld [vmem:[%s2312 + $0x2d0] sm:$0xff]
    %v2404 = vld [vmem:[%s2312 + $0x2d8] sm:$0xff]
    %v2405 = vld [vmem:[%s2312 + $0x2e0] sm:$0xff]
    %v2406 = vld [vmem:[%s2312 + $0x2e8] sm:$0xff]
    %v2407 = vld [vmem:[%s2312 + $0x2f0] sm:$0xff]
    %v2408 = vld [vmem:[%s2312 + $0x2f8] sm:$0xff]
    %v2409 = vld [vmem:[%s2312 + $0x300] sm:$0xff]
    %v2410 = vld [vmem:[%s2312 + $0x308] sm:$0xff]
    %v2411 = vld [vmem:[%s2312 + $0x310] sm:$0xff]
    %v2412 = vld [vmem:[%s2312 + $0x318] sm:$0xff]
    %v2413 = vld [vmem:[%s2312 + $0x320] sm:$0xff]
    %v2414 = vld [vmem:[%s2312 + $0x328] sm:$0xff]
    %v2415 = vld [vmem:[%s2312 + $0x330] sm:$0xff]
    %v2416 = vld [vmem:[%s2312 + $0x338] sm:$0xff]
    %v2417 = vld [vmem:[%s2312 + $0x340] sm:$0xff]
    %v2418 = vld [vmem:[%s2312 + $0x348] sm:$0xff]
    %v2419 = vld [vmem:[%s2312 + $0x350] sm:$0xff]
    %v2420 = vld [vmem:[%s2312 + $0x358] sm:$0xff]
    %v2421 = vld [vmem:[%s2312 + $0x360] sm:$0xff]
    %v2422 = vld [vmem:[%s2312 + $0x368] sm:$0xff]
    %v2423 = vld [vmem:[%s2312 + $0x370] sm:$0xff]
    %v2424 = vld [vmem:[%s2312 + $0x378] sm:$0xff]
    %v2425 = vld [vmem:[%s2312 + $0x380] sm:$0xff]
    %v2426 = vld [vmem:[%s2312 + $0x388] sm:$0xff]
    %v2427 = vld [vmem:[%s2312 + $0x390] sm:$0xff]
    %v2428 = vld [vmem:[%s2312 + $0x398] sm:$0xff]
    %v2429 = vld [vmem:[%s2312 + $0x3a0] sm:$0xff]
    %v2430 = vld [vmem:[%s2312 + $0x3a8] sm:$0xff]
    %v2431 = vld [vmem:[%s2312 + $0x3b0] sm:$0xff]
    %v2432 = vld [vmem:[%s2312 + $0x3b8] sm:$0xff]
    %v2433 = vld [vmem:[%s2312 + $0x3c0] sm:$0xff]
    %v2434 = vld [vmem:[%s2312 + $0x3c8] sm:$0xff]
    %v2435 = vld [vmem:[%s2312 + $0x3d0] sm:$0xff]
    %v2436 = vld [vmem:[%s2312 + $0x3d8] sm:$0xff]
    %v2437 = vld [vmem:[%s2312 + $0x3e0] sm:$0xff]
    %v2438 = vld [vmem:[%s2312 + $0x3e8] sm:$0xff]
    %v2439 = vld [vmem:[%s2312 + $0x3f0] sm:$0xff]
    %v2440 = vld [vmem:[%s2312 + $0x3f8] sm:$0xff]
    %v2441 = vld [vmem:[%s2312 + $0x400] sm:$0xff]
    %v2442 = vld [vmem:[%s2312 + $0x408] sm:$0xff]
    %v2443 = vld [vmem:[%s2312 + $0x410] sm:$0xff]
    %v2444 = vld [vmem:[%s2312 + $0x418] sm:$0xff]
    %v2445 = vld [vmem:[%s2312 + $0x420] sm:$0xff]
    %v2446 = vld [vmem:[%s2312 + $0x428] sm:$0xff]
    %v2447 = vld [vmem:[%s2312 + $0x430] sm:$0xff]
    %v2448 = vld [vmem:[%s2312 + $0x438] sm:$0xff]
    %v2449 = vld [vmem:[%s2312 + $0x440] sm:$0xff]
    %v2450 = vld [vmem:[%s2312 + $0x448] sm:$0xff]
    %v2451 = vld [vmem:[%s2312 + $0x450] sm:$0xff]
    %v2452 = vld [vmem:[%s2312 + $0x458] sm:$0xff]
    %v2453 = vld [vmem:[%s2312 + $0x460] sm:$0xff]
    %v2454 = vld [vmem:[%s2312 + $0x468] sm:$0xff]
    %v2455 = vld [vmem:[%s2312 + $0x470] sm:$0xff]
    %v2456 = vld [vmem:[%s2312 + $0x478] sm:$0xff]
    %v2457 = vld [vmem:[%s2312 + $0x480] sm:$0xff]
    %v2458 = vld [vmem:[%s2312 + $0x488] sm:$0xff]
    %v2459 = vld [vmem:[%s2312 + $0x490] sm:$0xff]
    %v2460 = vld [vmem:[%s2312 + $0x498] sm:$0xff]
    %v2461 = vld [vmem:[%s2312 + $0x4a0] sm:$0xff]
    %v2462 = vld [vmem:[%s2312 + $0x4a8] sm:$0xff]
    %v2463 = vld [vmem:[%s2312 + $0x4b0] sm:$0xff]
    %v2464 = vld [vmem:[%s2312 + $0x4b8] sm:$0xff]
    %v2465 = vld [vmem:[%s2312 + $0x4c0] sm:$0xff]
    %v2466 = vld [vmem:[%s2312 + $0x4c8] sm:$0xff]
    %v2467 = vld [vmem:[%s2312 + $0x4d0] sm:$0xff]
    %v2468 = vld [vmem:[%s2312 + $0x4d8] sm:$0xff]
    %v2469 = vld [vmem:[%s2312 + $0x4e0] sm:$0xff]
    %v2470 = vld [vmem:[%s2312 + $0x4e8] sm:$0xff]
    %v2471 = vld [vmem:[%s2312 + $0x4f0] sm:$0xff]
    %v2472 = vld [vmem:[%s2312 + $0x4f8] sm:$0xff]
    %v2473 = vld [vmem:[%s2312 + $0x500] sm:$0xff]
    %v2474 = vld [vmem:[%s2312 + $0x508] sm:$0xff]
    %v2475 = vld [vmem:[%s2312 + $0x510] sm:$0xff]
    %v2476 = vld [vmem:[%s2312 + $0x518] sm:$0xff]
    %v2477 = vld [vmem:[%s2312 + $0x520] sm:$0xff]
    %v2478 = vld [vmem:[%s2312 + $0x528] sm:$0xff]
    %v2479 = vld [vmem:[%s2312 + $0x530] sm:$0xff]
    %v2480 = vld [vmem:[%s2312 + $0x538] sm:$0xff]
    %v2481 = vld [vmem:[%s2312 + $0x540] sm:$0xff]
    %v2482 = vld [vmem:[%s2312 + $0x548] sm:$0xff]
    %v2483 = vld [vmem:[%s2312 + $0x550] sm:$0xff]
    %v2484 = vld [vmem:[%s2312 + $0x558] sm:$0xff]
    %v2485 = vld [vmem:[%s2312 + $0x560] sm:$0xff]
    %v2486 = vld [vmem:[%s2312 + $0x568] sm:$0xff]
    %v2487 = vld [vmem:[%s2312 + $0x570] sm:$0xff]
    %v2488 = vld [vmem:[%s2312 + $0x578] sm:$0xff]
    %v2489 = vld [vmem:[%s2312 + $0x580] sm:$0xff]
    %v2490 = vld [vmem:[%s2312 + $0x588] sm:$0xff]
    %v2491 = vld [vmem:[%s2312 + $0x590] sm:$0xff]
    %v2492 = vld [vmem:[%s2312 + $0x598] sm:$0xff]
    %v2493 = vld [vmem:[%s2312 + $0x5a0] sm:$0xff]
    %v2494 = vld [vmem:[%s2312 + $0x5a8] sm:$0xff]
    %v2495 = vld [vmem:[%s2312 + $0x5b0] sm:$0xff]
    %v2496 = vld [vmem:[%s2312 + $0x5b8] sm:$0xff]
    %v2497 = vld [vmem:[%s2312 + $0x5c0] sm:$0xff]
    %v2498 = vld [vmem:[%s2312 + $0x5c8] sm:$0xff]
    %v2499 = vld [vmem:[%s2312 + $0x5d0] sm:$0xff]
    %v2500 = vld [vmem:[%s2312 + $0x5d8] sm:$0xff]
    %v2501 = vld [vmem:[%s2312 + $0x5e0] sm:$0xff]
    %v2502 = vld [vmem:[%s2312 + $0x5e8] sm:$0xff]
    %v2503 = vld [vmem:[%s2312 + $0x5f0] sm:$0xff]
    %v2504 = vld [vmem:[%s2312 + $0x5f8] sm:$0xff]
    %v2505 = vld [vmem:[%s2312 + $0x600] sm:$0xff]
    %v2506 = vld [vmem:[%s2312 + $0x608] sm:$0xff]
    %v2507 = vld [vmem:[%s2312 + $0x610] sm:$0xff]
    %v2508 = vld [vmem:[%s2312 + $0x618] sm:$0xff]
    %v2509 = vld [vmem:[%s2312 + $0x620] sm:$0xff]
    %v2510 = vld [vmem:[%s2312 + $0x628] sm:$0xff]
    %v2511 = vld [vmem:[%s2312 + $0x630] sm:$0xff]
    %v2512 = vld [vmem:[%s2312 + $0x638] sm:$0xff]
    %v2513 = vld [vmem:[%s2312 + $0x640] sm:$0xff]
    %v2514 = vld [vmem:[%s2312 + $0x648] sm:$0xff]
    %v2515 = vld [vmem:[%s2312 + $0x650] sm:$0xff]
    %v2516 = vld [vmem:[%s2312 + $0x658] sm:$0xff]
    %v2517 = vld [vmem:[%s2312 + $0x660] sm:$0xff]
    %v2518 = vld [vmem:[%s2312 + $0x668] sm:$0xff]
    %v2519 = vld [vmem:[%s2312 + $0x670] sm:$0xff]
    %v2520 = vld [vmem:[%s2312 + $0x678] sm:$0xff]
    %v2521 = vld [vmem:[%s2312 + $0x680] sm:$0xff]
    %v2522 = vld [vmem:[%s2312 + $0x688] sm:$0xff]
    %v2523 = vld [vmem:[%s2312 + $0x690] sm:$0xff]
    %v2524 = vld [vmem:[%s2312 + $0x698] sm:$0xff]
    %v2525 = vld [vmem:[%s2312 + $0x6a0] sm:$0xff]
    %v2526 = vld [vmem:[%s2312 + $0x6a8] sm:$0xff]
    %v2527 = vld [vmem:[%s2312 + $0x6b0] sm:$0xff]
    %v2528 = vld [vmem:[%s2312 + $0x6b8] sm:$0xff]
    %v2529 = vld [vmem:[%s2312 + $0x6c0] sm:$0xff]
    %v2530 = vld [vmem:[%s2312 + $0x6c8] sm:$0xff]
    %v2531 = vld [vmem:[%s2312 + $0x6d0] sm:$0xff]
    %v2532 = vld [vmem:[%s2312 + $0x6d8] sm:$0xff]
    %v2533 = vld [vmem:[%s2312 + $0x6e0] sm:$0xff]
    %v2534 = vld [vmem:[%s2312 + $0x6e8] sm:$0xff]
    %v2535 = vld [vmem:[%s2312 + $0x6f0] sm:$0xff]
    %v2536 = vld [vmem:[%s2312 + $0x6f8] sm:$0xff]
    %v2537 = vld [vmem:[%s2312 + $0x700] sm:$0xff]
    %v2538 = vld [vmem:[%s2312 + $0x708] sm:$0xff]
    %v2539 = vld [vmem:[%s2312 + $0x710] sm:$0xff]
    %v2540 = vld [vmem:[%s2312 + $0x718] sm:$0xff]
    %v2541 = vld [vmem:[%s2312 + $0x720] sm:$0xff]
    %v2542 = vld [vmem:[%s2312 + $0x728] sm:$0xff]
    %v2543 = vld [vmem:[%s2312 + $0x730] sm:$0xff]
    %v2544 = vld [vmem:[%s2312 + $0x738] sm:$0xff]
    %v2545 = vld [vmem:[%s2312 + $0x740] sm:$0xff]
    %v2546 = vld [vmem:[%s2312 + $0x748] sm:$0xff]
    %v2547 = vld [vmem:[%s2312 + $0x750] sm:$0xff]
    %v2548 = vld [vmem:[%s2312 + $0x758] sm:$0xff]
    %v2549 = vld [vmem:[%s2312 + $0x760] sm:$0xff]
    %v2550 = vld [vmem:[%s2312 + $0x768] sm:$0xff]
    %v2551 = vld [vmem:[%s2312 + $0x770] sm:$0xff]
    %v2552 = vld [vmem:[%s2312 + $0x778] sm:$0xff]
    %v2553 = vld [vmem:[%s2312 + $0x780] sm:$0xff]
    %v2554 = vld [vmem:[%s2312 + $0x788] sm:$0xff]
    %v2555 = vld [vmem:[%s2312 + $0x790] sm:$0xff]
    %v2556 = vld [vmem:[%s2312 + $0x798] sm:$0xff]
    %v2557 = vld [vmem:[%s2312 + $0x7a0] sm:$0xff]
    %v2558 = vld [vmem:[%s2312 + $0x7a8] sm:$0xff]
    %v2559 = vld [vmem:[%s2312 + $0x7b0] sm:$0xff]
    %v2560 = vld [vmem:[%s2312 + $0x7b8] sm:$0xff]
    %v2561 = vld [vmem:[%s2312 + $0x7c0] sm:$0xff]
    %v2562 = vld [vmem:[%s2312 + $0x7c8] sm:$0xff]
    %v2563 = vld [vmem:[%s2312 + $0x7d0] sm:$0xff]
    %v2564 = vld [vmem:[%s2312 + $0x7d8] sm:$0xff]
    %v2565 = vld [vmem:[%s2312 + $0x7e0] sm:$0xff]
    %v2566 = vld [vmem:[%s2312 + $0x7e8] sm:$0xff]
    %v2567 = vld [vmem:[%s2312 + $0x7f0] sm:$0xff]
    %v2568 = vld [vmem:[%s2312 + $0x7f8] sm:$0xff]
    %s2569 = scalar_lea.vmem [#allocation22], 8
    %v2570 = vld [vmem:[%s2569] sm:$0xff]
    %v2572 = vperm.slane %v2570, 0
    %v2573 = vperm.slane %v2570, 1
    %v2574 = vperm.slane %v2570, 2
    %v2575 = vperm.slane %v2570, 3
    %v2576 = vperm.slane %v2570, 4
    %v2577 = vperm.slane %v2570, 5
    %v2578 = vperm.slane %v2570, 6
    %v2579 = vperm.slane %v2570, 7
    %2588 = vmatpush.msra.mxu0 %v2433
    %2589 = vmatpush.msra.mxu0 %v2425
    %2590 = vmatpush.msra.mxu0 %v2417
    %2591 = vmatpush.msra.mxu0 %v2409
    %2592 = vmatpush.msra.mxu0 %v2401
    %2593 = vmatpush.msra.mxu0 %v2393
    %2594 = vmatpush.msra.mxu0 %v2385
    %2595 = vmatpush.msra.mxu0 %v2377
    %2596 = vmatpush.msra.mxu0 %v2369
    %2597 = vmatpush.msra.mxu0 %v2361
    %2598 = vmatpush.msra.mxu0 %v2353
    %2599 = vmatpush.msra.mxu0 %v2345
    %2600 = vmatpush.msra.mxu0 %v2337
    %2601 = vmatpush.msra.mxu0 %v2329
    %2602 = vmatpush.msra.mxu0 %v2321
    %2603 = vmatpush.msra.mxu0 %v2313
    %2604 = vmatmul.f32.gmra.mxu0 %v2310
    %v2605 = vpop.f32.mrf.mxu0
    %v2606 = vadd.f32 %v2572, %v2605
    %2607 = vdwg.mxu0
    %2608 = vmatpush.msra.mxu0 %v2561
    %2609 = vmatpush.msra.mxu0 %v2553
    %2610 = vmatpush.msra.mxu0 %v2545
    %2611 = vmatpush.msra.mxu0 %v2537
    %2612 = vmatpush.msra.mxu0 %v2529
    %2613 = vmatpush.msra.mxu0 %v2521
    %2614 = vmatpush.msra.mxu0 %v2513
    %2615 = vmatpush.msra.mxu0 %v2505
    %2616 = vmatpush.msra.mxu0 %v2497
    %2617 = vmatpush.msra.mxu0 %v2489
    %2618 = vmatpush.msra.mxu0 %v2481
    %2619 = vmatpush.msra.mxu0 %v2473
    %2620 = vmatpush.msra.mxu0 %v2465
    %2621 = vmatpush.msra.mxu0 %v2457
    %2622 = vmatpush.msra.mxu0 %v2449
    %2623 = vmatpush.msra.mxu0 %v2441
    %2624 = vmatmul.f32.gmra.mxu0 %v2311
    %v2625 = vpop.f32.mrf.mxu0
    %v2626 = vadd.f32 %v2606, %v2625
    %2627 = vdwg.mxu0
    %2628 = vmatpush.msra.mxu0 %v2434
    %2629 = vmatpush.msra.mxu0 %v2426
    %2630 = vmatpush.msra.mxu0 %v2418
    %2631 = vmatpush.msra.mxu0 %v2410
    %2632 = vmatpush.msra.mxu0 %v2402
    %2633 = vmatpush.msra.mxu0 %v2394
    %2634 = vmatpush.msra.mxu0 %v2386
    %2635 = vmatpush.msra.mxu0 %v2378
    %2636 = vmatpush.msra.mxu0 %v2370
    %2637 = vmatpush.msra.mxu0 %v2362
    %2638 = vmatpush.msra.mxu0 %v2354
    %2639 = vmatpush.msra.mxu0 %v2346
    %2640 = vmatpush.msra.mxu0 %v2338
    %2641 = vmatpush.msra.mxu0 %v2330
    %2642 = vmatpush.msra.mxu0 %v2322
    %2643 = vmatpush.msra.mxu0 %v2314
    %2644 = vmatmul.f32.gmra.mxu0 %v2310
    %v2645 = vpop.f32.mrf.mxu0
    %v2646 = vadd.f32 %v2573, %v2645
    %2647 = vdwg.mxu0
    %2648 = vmatpush.msra.mxu0 %v2562
    %2649 = vmatpush.msra.mxu0 %v2554
    %2650 = vmatpush.msra.mxu0 %v2546
    %2651 = vmatpush.msra.mxu0 %v2538
    %2652 = vmatpush.msra.mxu0 %v2530
    %2653 = vmatpush.msra.mxu0 %v2522
    %2654 = vmatpush.msra.mxu0 %v2514
    %2655 = vmatpush.msra.mxu0 %v2506
    %2656 = vmatpush.msra.mxu0 %v2498
    %2657 = vmatpush.msra.mxu0 %v2490
    %2658 = vmatpush.msra.mxu0 %v2482
    %2659 = vmatpush.msra.mxu0 %v2474
    %2660 = vmatpush.msra.mxu0 %v2466
    %2661 = vmatpush.msra.mxu0 %v2458
    %2662 = vmatpush.msra.mxu0 %v2450
    %2663 = vmatpush.msra.mxu0 %v2442
    %2664 = vmatmul.f32.gmra.mxu0 %v2311
    %v2665 = vpop.f32.mrf.mxu0
    %v2666 = vadd.f32 %v2646, %v2665
    %2667 = vdwg.mxu0
    %2668 = vmatpush.msra.mxu0 %v2435
    %2669 = vmatpush.msra.mxu0 %v2427
    %2670 = vmatpush.msra.mxu0 %v2419
    %2671 = vmatpush.msra.mxu0 %v2411
    %2672 = vmatpush.msra.mxu0 %v2403
    %2673 = vmatpush.msra.mxu0 %v2395
    %2674 = vmatpush.msra.mxu0 %v2387
    %2675 = vmatpush.msra.mxu0 %v2379
    %2676 = vmatpush.msra.mxu0 %v2371
    %2677 = vmatpush.msra.mxu0 %v2363
    %2678 = vmatpush.msra.mxu0 %v2355
    %2679 = vmatpush.msra.mxu0 %v2347
    %2680 = vmatpush.msra.mxu0 %v2339
    %2681 = vmatpush.msra.mxu0 %v2331
    %2682 = vmatpush.msra.mxu0 %v2323
    %2683 = vmatpush.msra.mxu0 %v2315
    %2684 = vmatmul.f32.gmra.mxu0 %v2310
    %v2685 = vpop.f32.mrf.mxu0
    %v2686 = vadd.f32 %v2574, %v2685
    %2687 = vdwg.mxu0
    %2688 = vmatpush.msra.mxu0 %v2563
    %2689 = vmatpush.msra.mxu0 %v2555
    %2690 = vmatpush.msra.mxu0 %v2547
    %2691 = vmatpush.msra.mxu0 %v2539
    %2692 = vmatpush.msra.mxu0 %v2531
    %2693 = vmatpush.msra.mxu0 %v2523
    %2694 = vmatpush.msra.mxu0 %v2515
    %2695 = vmatpush.msra.mxu0 %v2507
    %2696 = vmatpush.msra.mxu0 %v2499
    %2697 = vmatpush.msra.mxu0 %v2491
    %2698 = vmatpush.msra.mxu0 %v2483
    %2699 = vmatpush.msra.mxu0 %v2475
    %2700 = vmatpush.msra.mxu0 %v2467
    %2701 = vmatpush.msra.mxu0 %v2459
    %2702 = vmatpush.msra.mxu0 %v2451
    %2703 = vmatpush.msra.mxu0 %v2443
    %2704 = vmatmul.f32.gmra.mxu0 %v2311
    %v2705 = vpop.f32.mrf.mxu0
    %v2706 = vadd.f32 %v2686, %v2705
    %2707 = vdwg.mxu0
    %2708 = vmatpush.msra.mxu0 %v2436
    %2709 = vmatpush.msra.mxu0 %v2428
    %2710 = vmatpush.msra.mxu0 %v2420
    %2711 = vmatpush.msra.mxu0 %v2412
    %2712 = vmatpush.msra.mxu0 %v2404
    %2713 = vmatpush.msra.mxu0 %v2396
    %2714 = vmatpush.msra.mxu0 %v2388
    %2715 = vmatpush.msra.mxu0 %v2380
    %2716 = vmatpush.msra.mxu0 %v2372
    %2717 = vmatpush.msra.mxu0 %v2364
    %2718 = vmatpush.msra.mxu0 %v2356
    %2719 = vmatpush.msra.mxu0 %v2348
    %2720 = vmatpush.msra.mxu0 %v2340
    %2721 = vmatpush.msra.mxu0 %v2332
    %2722 = vmatpush.msra.mxu0 %v2324
    %2723 = vmatpush.msra.mxu0 %v2316
    %2724 = vmatmul.f32.gmra.mxu0 %v2310
    %v2725 = vpop.f32.mrf.mxu0
    %v2726 = vadd.f32 %v2575, %v2725
    %2727 = vdwg.mxu0
    %2728 = vmatpush.msra.mxu0 %v2564
    %2729 = vmatpush.msra.mxu0 %v2556
    %2730 = vmatpush.msra.mxu0 %v2548
    %2731 = vmatpush.msra.mxu0 %v2540
    %2732 = vmatpush.msra.mxu0 %v2532
    %2733 = vmatpush.msra.mxu0 %v2524
    %2734 = vmatpush.msra.mxu0 %v2516
    %2735 = vmatpush.msra.mxu0 %v2508
    %2736 = vmatpush.msra.mxu0 %v2500
    %2737 = vmatpush.msra.mxu0 %v2492
    %2738 = vmatpush.msra.mxu0 %v2484
    %2739 = vmatpush.msra.mxu0 %v2476
    %2740 = vmatpush.msra.mxu0 %v2468
    %2741 = vmatpush.msra.mxu0 %v2460
    %2742 = vmatpush.msra.mxu0 %v2452
    %2743 = vmatpush.msra.mxu0 %v2444
    %2744 = vmatmul.f32.gmra.mxu0 %v2311
    %v2745 = vpop.f32.mrf.mxu0
    %v2746 = vadd.f32 %v2726, %v2745
    %2747 = vdwg.mxu0
    %2748 = vmatpush.msra.mxu0 %v2437
    %2749 = vmatpush.msra.mxu0 %v2429
    %2750 = vmatpush.msra.mxu0 %v2421
    %2751 = vmatpush.msra.mxu0 %v2413
    %2752 = vmatpush.msra.mxu0 %v2405
    %2753 = vmatpush.msra.mxu0 %v2397
    %2754 = vmatpush.msra.mxu0 %v2389
    %2755 = vmatpush.msra.mxu0 %v2381
    %2756 = vmatpush.msra.mxu0 %v2373
    %2757 = vmatpush.msra.mxu0 %v2365
    %2758 = vmatpush.msra.mxu0 %v2357
    %2759 = vmatpush.msra.mxu0 %v2349
    %2760 = vmatpush.msra.mxu0 %v2341
    %2761 = vmatpush.msra.mxu0 %v2333
    %2762 = vmatpush.msra.mxu0 %v2325
    %2763 = vmatpush.msra.mxu0 %v2317
    %2764 = vmatmul.f32.gmra.mxu0 %v2310
    %v2765 = vpop.f32.mrf.mxu0
    %v2766 = vadd.f32 %v2576, %v2765
    %2767 = vdwg.mxu0
    %2768 = vmatpush.msra.mxu0 %v2565
    %2769 = vmatpush.msra.mxu0 %v2557
    %2770 = vmatpush.msra.mxu0 %v2549
    %2771 = vmatpush.msra.mxu0 %v2541
    %2772 = vmatpush.msra.mxu0 %v2533
    %2773 = vmatpush.msra.mxu0 %v2525
    %2774 = vmatpush.msra.mxu0 %v2517
    %2775 = vmatpush.msra.mxu0 %v2509
    %2776 = vmatpush.msra.mxu0 %v2501
    %2777 = vmatpush.msra.mxu0 %v2493
    %2778 = vmatpush.msra.mxu0 %v2485
    %2779 = vmatpush.msra.mxu0 %v2477
    %2780 = vmatpush.msra.mxu0 %v2469
    %2781 = vmatpush.msra.mxu0 %v2461
    %2782 = vmatpush.msra.mxu0 %v2453
    %2783 = vmatpush.msra.mxu0 %v2445
    %2784 = vmatmul.f32.gmra.mxu0 %v2311
    %v2785 = vpop.f32.mrf.mxu0
    %v2786 = vadd.f32 %v2766, %v2785
    %2787 = vdwg.mxu0
    %2788 = vmatpush.msra.mxu0 %v2438
    %2789 = vmatpush.msra.mxu0 %v2430
    %2790 = vmatpush.msra.mxu0 %v2422
    %2791 = vmatpush.msra.mxu0 %v2414
    %2792 = vmatpush.msra.mxu0 %v2406
    %2793 = vmatpush.msra.mxu0 %v2398
    %2794 = vmatpush.msra.mxu0 %v2390
    %2795 = vmatpush.msra.mxu0 %v2382
    %2796 = vmatpush.msra.mxu0 %v2374
    %2797 = vmatpush.msra.mxu0 %v2366
    %2798 = vmatpush.msra.mxu0 %v2358
    %2799 = vmatpush.msra.mxu0 %v2350
    %2800 = vmatpush.msra.mxu0 %v2342
    %2801 = vmatpush.msra.mxu0 %v2334
    %2802 = vmatpush.msra.mxu0 %v2326
    %2803 = vmatpush.msra.mxu0 %v2318
    %2804 = vmatmul.f32.gmra.mxu0 %v2310
    %v2805 = vpop.f32.mrf.mxu0
    %v2806 = vadd.f32 %v2577, %v2805
    %2807 = vdwg.mxu0
    %2808 = vmatpush.msra.mxu0 %v2566
    %2809 = vmatpush.msra.mxu0 %v2558
    %2810 = vmatpush.msra.mxu0 %v2550
    %2811 = vmatpush.msra.mxu0 %v2542
    %2812 = vmatpush.msra.mxu0 %v2534
    %2813 = vmatpush.msra.mxu0 %v2526
    %2814 = vmatpush.msra.mxu0 %v2518
    %2815 = vmatpush.msra.mxu0 %v2510
    %2816 = vmatpush.msra.mxu0 %v2502
    %2817 = vmatpush.msra.mxu0 %v2494
    %2818 = vmatpush.msra.mxu0 %v2486
    %2819 = vmatpush.msra.mxu0 %v2478
    %2820 = vmatpush.msra.mxu0 %v2470
    %2821 = vmatpush.msra.mxu0 %v2462
    %2822 = vmatpush.msra.mxu0 %v2454
    %2823 = vmatpush.msra.mxu0 %v2446
    %2824 = vmatmul.f32.gmra.mxu0 %v2311
    %v2825 = vpop.f32.mrf.mxu0
    %v2826 = vadd.f32 %v2806, %v2825
    %2827 = vdwg.mxu0
    %2828 = vmatpush.msra.mxu0 %v2439
    %2829 = vmatpush.msra.mxu0 %v2431
    %2830 = vmatpush.msra.mxu0 %v2423
    %2831 = vmatpush.msra.mxu0 %v2415
    %2832 = vmatpush.msra.mxu0 %v2407
    %2833 = vmatpush.msra.mxu0 %v2399
    %2834 = vmatpush.msra.mxu0 %v2391
    %2835 = vmatpush.msra.mxu0 %v2383
    %2836 = vmatpush.msra.mxu0 %v2375
    %2837 = vmatpush.msra.mxu0 %v2367
    %2838 = vmatpush.msra.mxu0 %v2359
    %2839 = vmatpush.msra.mxu0 %v2351
    %2840 = vmatpush.msra.mxu0 %v2343
    %2841 = vmatpush.msra.mxu0 %v2335
    %2842 = vmatpush.msra.mxu0 %v2327
    %2843 = vmatpush.msra.mxu0 %v2319
    %2844 = vmatmul.f32.gmra.mxu0 %v2310
    %v2845 = vpop.f32.mrf.mxu0
    %v2846 = vadd.f32 %v2578, %v2845
    %2847 = vdwg.mxu0
    %2848 = vmatpush.msra.mxu0 %v2567
    %2849 = vmatpush.msra.mxu0 %v2559
    %2850 = vmatpush.msra.mxu0 %v2551
    %2851 = vmatpush.msra.mxu0 %v2543
    %2852 = vmatpush.msra.mxu0 %v2535
    %2853 = vmatpush.msra.mxu0 %v2527
    %2854 = vmatpush.msra.mxu0 %v2519
    %2855 = vmatpush.msra.mxu0 %v2511
    %2856 = vmatpush.msra.mxu0 %v2503
    %2857 = vmatpush.msra.mxu0 %v2495
    %2858 = vmatpush.msra.mxu0 %v2487
    %2859 = vmatpush.msra.mxu0 %v2479
    %2860 = vmatpush.msra.mxu0 %v2471
    %2861 = vmatpush.msra.mxu0 %v2463
    %2862 = vmatpush.msra.mxu0 %v2455
    %2863 = vmatpush.msra.mxu0 %v2447
    %2864 = vmatmul.f32.gmra.mxu0 %v2311
    %v2865 = vpop.f32.mrf.mxu0
    %v2866 = vadd.f32 %v2846, %v2865
    %2867 = vdwg.mxu0
    %2868 = vmatpush.msra.mxu0 %v2440
    %2869 = vmatpush.msra.mxu0 %v2432
    %2870 = vmatpush.msra.mxu0 %v2424
    %2871 = vmatpush.msra.mxu0 %v2416
    %2872 = vmatpush.msra.mxu0 %v2408
    %2873 = vmatpush.msra.mxu0 %v2400
    %2874 = vmatpush.msra.mxu0 %v2392
    %2875 = vmatpush.msra.mxu0 %v2384
    %2876 = vmatpush.msra.mxu0 %v2376
    %2877 = vmatpush.msra.mxu0 %v2368
    %2878 = vmatpush.msra.mxu0 %v2360
    %2879 = vmatpush.msra.mxu0 %v2352
    %2880 = vmatpush.msra.mxu0 %v2344
    %2881 = vmatpush.msra.mxu0 %v2336
    %2882 = vmatpush.msra.mxu0 %v2328
    %2883 = vmatpush.msra.mxu0 %v2320
    %2884 = vmatmul.f32.gmra.mxu0 %v2310
    %v2885 = vpop.f32.mrf.mxu0
    %v2886 = vadd.f32 %v2579, %v2885
    %2887 = vdwg.mxu0
    %2888 = vmatpush.msra.mxu0 %v2568
    %2889 = vmatpush.msra.mxu0 %v2560
    %2890 = vmatpush.msra.mxu0 %v2552
    %2891 = vmatpush.msra.mxu0 %v2544
    %2892 = vmatpush.msra.mxu0 %v2536
    %2893 = vmatpush.msra.mxu0 %v2528
    %2894 = vmatpush.msra.mxu0 %v2520
    %2895 = vmatpush.msra.mxu0 %v2512
    %2896 = vmatpush.msra.mxu0 %v2504
    %2897 = vmatpush.msra.mxu0 %v2496
    %2898 = vmatpush.msra.mxu0 %v2488
    %2899 = vmatpush.msra.mxu0 %v2480
    %2900 = vmatpush.msra.mxu0 %v2472
    %2901 = vmatpush.msra.mxu0 %v2464
    %2902 = vmatpush.msra.mxu0 %v2456
    %2903 = vmatpush.msra.mxu0 %v2448
    %2904 = vmatmul.f32.gmra.mxu0 %v2311
    %v2905 = vpop.f32.mrf.mxu0
    %v2906 = vadd.f32 %v2886, %v2905
    %2907 = vdwg.mxu0
    %vm2908 = vcmp.gt.f32.partialorder %v2626, 20.0
    %vm2909 = vcmp.gt.f32.partialorder %v2666, 20.0
    %vm2910 = vcmp.gt.f32.partialorder %v2706, 20.0
    %vm2911 = vcmp.gt.f32.partialorder %v2746, 20.0
    %vm2912 = vcmp.gt.f32.partialorder %v2786, 20.0
    %vm2913 = vcmp.gt.f32.partialorder %v2826, 20.0
    %vm2914 = vcmp.gt.f32.partialorder %v2866, 20.0
    %vm2915 = vcmp.gt.f32.partialorder %v2906, 20.0
    %v2916 = vmin.f32 %v2626, 20.0
    %v2917 = vmin.f32 %v2666, 20.0
    %v2918 = vmin.f32 %v2706, 20.0
    %v2919 = vmin.f32 %v2746, 20.0
    %v2920 = vmin.f32 %v2786, 20.0
    %v2921 = vmin.f32 %v2826, 20.0
    %v2922 = vmin.f32 %v2866, 20.0
    %v2923 = vmin.f32 %v2906, 20.0
    %v2924 = vmul.f32 %v2916, 1.442695
    %v2925 = vpow.pop %v2924
    %v2926 = vmul.f32 %v2917, 1.442695
    %v2927 = vpow.pop %v2926
    %v2928 = vmul.f32 %v2918, 1.442695
    %v2929 = vpow.pop %v2928
    %v2930 = vmul.f32 %v2919, 1.442695
    %v2931 = vpow.pop %v2930
    %v2932 = vmul.f32 %v2920, 1.442695
    %v2933 = vpow.pop %v2932
    %v2934 = vmul.f32 %v2921, 1.442695
    %v2935 = vpow.pop %v2934
    %v2936 = vmul.f32 %v2922, 1.442695
    %v2937 = vpow.pop %v2936
    %v2938 = vmul.f32 %v2923, 1.442695
    %v2939 = vpow.pop %v2938
    %v2940 = vadd.f32 %v2925, 1.0
    %v2941 = vlog2.pop %v2940
    %v2942 = vmul.f32 %v2941, 0.6931472
    %v2943 = vmul.f32 -0.5, %v2925
    %v2944 = vadd.f32 %v2943, 1.0
    %v2945 = vmul.f32 %v2944, %v2925
    %v2946 = vand.u32 2147483647, %v2925
    %vm2947 = vcmp.lt.f32.partialorder %v2946, 0.0004427343
    %v2948 = vsel %vm2947, %v2945, %v2942
    %v2949 = vadd.f32 %v2927, 1.0
    %v2950 = vlog2.pop %v2949
    %v2951 = vmul.f32 %v2950, 0.6931472
    %v2952 = vmul.f32 -0.5, %v2927
    %v2953 = vadd.f32 %v2952, 1.0
    %v2954 = vmul.f32 %v2953, %v2927
    %v2955 = vand.u32 2147483647, %v2927
    %vm2956 = vcmp.lt.f32.partialorder %v2955, 0.0004427343
    %v2957 = vsel %vm2956, %v2954, %v2951
    %v2958 = vadd.f32 %v2929, 1.0
    %v2959 = vlog2.pop %v2958
    %v2960 = vmul.f32 %v2959, 0.6931472
    %v2961 = vmul.f32 -0.5, %v2929
    %v2962 = vadd.f32 %v2961, 1.0
    %v2963 = vmul.f32 %v2962, %v2929
    %v2964 = vand.u32 2147483647, %v2929
    %vm2965 = vcmp.lt.f32.partialorder %v2964, 0.0004427343
    %v2966 = vsel %vm2965, %v2963, %v2960
    %v2967 = vadd.f32 %v2931, 1.0
    %v2968 = vlog2.pop %v2967
    %v2969 = vmul.f32 %v2968, 0.6931472
    %v2970 = vmul.f32 -0.5, %v2931
    %v2971 = vadd.f32 %v2970, 1.0
    %v2972 = vmul.f32 %v2971, %v2931
    %v2973 = vand.u32 2147483647, %v2931
    %vm2974 = vcmp.lt.f32.partialorder %v2973, 0.0004427343
    %v2975 = vsel %vm2974, %v2972, %v2969
    %v2976 = vadd.f32 %v2933, 1.0
    %v2977 = vlog2.pop %v2976
    %v2978 = vmul.f32 %v2977, 0.6931472
    %v2979 = vmul.f32 -0.5, %v2933
    %v2980 = vadd.f32 %v2979, 1.0
    %v2981 = vmul.f32 %v2980, %v2933
    %v2982 = vand.u32 2147483647, %v2933
    %vm2983 = vcmp.lt.f32.partialorder %v2982, 0.0004427343
    %v2984 = vsel %vm2983, %v2981, %v2978
    %v2985 = vadd.f32 %v2935, 1.0
    %v2986 = vlog2.pop %v2985
    %v2987 = vmul.f32 %v2986, 0.6931472
    %v2988 = vmul.f32 -0.5, %v2935
    %v2989 = vadd.f32 %v2988, 1.0
    %v2990 = vmul.f32 %v2989, %v2935
    %v2991 = vand.u32 2147483647, %v2935
    %vm2992 = vcmp.lt.f32.partialorder %v2991, 0.0004427343
    %v2993 = vsel %vm2992, %v2990, %v2987
    %v2994 = vadd.f32 %v2937, 1.0
    %v2995 = vlog2.pop %v2994
    %v2996 = vmul.f32 %v2995, 0.6931472
    %v2997 = vmul.f32 -0.5, %v2937
    %v2998 = vadd.f32 %v2997, 1.0
    %v2999 = vmul.f32 %v2998, %v2937
    %v3000 = vand.u32 2147483647, %v2937
    %vm3001 = vcmp.lt.f32.partialorder %v3000, 0.0004427343
    %v3002 = vsel %vm3001, %v2999, %v2996
    %v3003 = vadd.f32 %v2939, 1.0
    %v3004 = vlog2.pop %v3003
    %v3005 = vmul.f32 %v3004, 0.6931472
    %v3006 = vmul.f32 -0.5, %v2939
    %v3007 = vadd.f32 %v3006, 1.0
    %v3008 = vmul.f32 %v3007, %v2939
    %v3009 = vand.u32 2147483647, %v2939
    %vm3010 = vcmp.lt.f32.partialorder %v3009, 0.0004427343
    %v3011 = vsel %vm3010, %v3008, %v3005
    %v3012 = vsel %vm2908, %v2626, %v2948
    %v3013 = vsel %vm2909, %v2666, %v2957
    %v3014 = vsel %vm2910, %v2706, %v2966
    %v3015 = vsel %vm2911, %v2746, %v2975
    %v3016 = vsel %vm2912, %v2786, %v2984
    %v3017 = vsel %vm2913, %v2826, %v2993
    %v3018 = vsel %vm2914, %v2866, %v3002
    %v3019 = vsel %vm2915, %v2906, %v3011
    %v3020 = vtanh.pop %v3012
    %v3021 = vtanh.pop %v3013
    %v3022 = vtanh.pop %v3014
    %v3023 = vtanh.pop %v3015
    %v3024 = vtanh.pop %v3016
    %v3025 = vtanh.pop %v3017
    %v3026 = vtanh.pop %v3018
    %v3027 = vtanh.pop %v3019
    %v3028 = vmul.f32 %v2626, %v3020
    %v3029 = vmul.f32 %v2666, %v3021
    %v3030 = vmul.f32 %v2706, %v3022
    %v3031 = vmul.f32 %v2746, %v3023
    %v3032 = vmul.f32 %v2786, %v3024
    %v3033 = vmul.f32 %v2826, %v3025
    %v3034 = vmul.f32 %v2866, %v3026
    %v3035 = vmul.f32 %v2906, %v3027
    %s3036 = scalar_lea.vmem [#allocation23], 2048
    %v3037 = vld [vmem:[%s3036] sm:$0xff]
    %v3038 = vld [vmem:[%s3036 + $0x8] sm:$0xff]
    %v3039 = vld [vmem:[%s3036 + $0x10] sm:$0xff]
    %v3040 = vld [vmem:[%s3036 + $0x18] sm:$0xff]
    %v3041 = vld [vmem:[%s3036 + $0x20] sm:$0xff]
    %v3042 = vld [vmem:[%s3036 + $0x28] sm:$0xff]
    %v3043 = vld [vmem:[%s3036 + $0x30] sm:$0xff]
    %v3044 = vld [vmem:[%s3036 + $0x38] sm:$0xff]
    %v3045 = vld [vmem:[%s3036 + $0x40] sm:$0xff]
    %v3046 = vld [vmem:[%s3036 + $0x48] sm:$0xff]
    %v3047 = vld [vmem:[%s3036 + $0x50] sm:$0xff]
    %v3048 = vld [vmem:[%s3036 + $0x58] sm:$0xff]
    %v3049 = vld [vmem:[%s3036 + $0x60] sm:$0xff]
    %v3050 = vld [vmem:[%s3036 + $0x68] sm:$0xff]
    %v3051 = vld [vmem:[%s3036 + $0x70] sm:$0xff]
    %v3052 = vld [vmem:[%s3036 + $0x78] sm:$0xff]
    %v3053 = vld [vmem:[%s3036 + $0x80] sm:$0xff]
    %v3054 = vld [vmem:[%s3036 + $0x88] sm:$0xff]
    %v3055 = vld [vmem:[%s3036 + $0x90] sm:$0xff]
    %v3056 = vld [vmem:[%s3036 + $0x98] sm:$0xff]
    %v3057 = vld [vmem:[%s3036 + $0xa0] sm:$0xff]
    %v3058 = vld [vmem:[%s3036 + $0xa8] sm:$0xff]
    %v3059 = vld [vmem:[%s3036 + $0xb0] sm:$0xff]
    %v3060 = vld [vmem:[%s3036 + $0xb8] sm:$0xff]
    %v3061 = vld [vmem:[%s3036 + $0xc0] sm:$0xff]
    %v3062 = vld [vmem:[%s3036 + $0xc8] sm:$0xff]
    %v3063 = vld [vmem:[%s3036 + $0xd0] sm:$0xff]
    %v3064 = vld [vmem:[%s3036 + $0xd8] sm:$0xff]
    %v3065 = vld [vmem:[%s3036 + $0xe0] sm:$0xff]
    %v3066 = vld [vmem:[%s3036 + $0xe8] sm:$0xff]
    %v3067 = vld [vmem:[%s3036 + $0xf0] sm:$0xff]
    %v3068 = vld [vmem:[%s3036 + $0xf8] sm:$0xff]
    %v3069 = vld [vmem:[%s3036 + $0x100] sm:$0xff]
    %v3070 = vld [vmem:[%s3036 + $0x108] sm:$0xff]
    %v3071 = vld [vmem:[%s3036 + $0x110] sm:$0xff]
    %v3072 = vld [vmem:[%s3036 + $0x118] sm:$0xff]
    %v3073 = vld [vmem:[%s3036 + $0x120] sm:$0xff]
    %v3074 = vld [vmem:[%s3036 + $0x128] sm:$0xff]
    %v3075 = vld [vmem:[%s3036 + $0x130] sm:$0xff]
    %v3076 = vld [vmem:[%s3036 + $0x138] sm:$0xff]
    %v3077 = vld [vmem:[%s3036 + $0x140] sm:$0xff]
    %v3078 = vld [vmem:[%s3036 + $0x148] sm:$0xff]
    %v3079 = vld [vmem:[%s3036 + $0x150] sm:$0xff]
    %v3080 = vld [vmem:[%s3036 + $0x158] sm:$0xff]
    %v3081 = vld [vmem:[%s3036 + $0x160] sm:$0xff]
    %v3082 = vld [vmem:[%s3036 + $0x168] sm:$0xff]
    %v3083 = vld [vmem:[%s3036 + $0x170] sm:$0xff]
    %v3084 = vld [vmem:[%s3036 + $0x178] sm:$0xff]
    %v3085 = vld [vmem:[%s3036 + $0x180] sm:$0xff]
    %v3086 = vld [vmem:[%s3036 + $0x188] sm:$0xff]
    %v3087 = vld [vmem:[%s3036 + $0x190] sm:$0xff]
    %v3088 = vld [vmem:[%s3036 + $0x198] sm:$0xff]
    %v3089 = vld [vmem:[%s3036 + $0x1a0] sm:$0xff]
    %v3090 = vld [vmem:[%s3036 + $0x1a8] sm:$0xff]
    %v3091 = vld [vmem:[%s3036 + $0x1b0] sm:$0xff]
    %v3092 = vld [vmem:[%s3036 + $0x1b8] sm:$0xff]
    %v3093 = vld [vmem:[%s3036 + $0x1c0] sm:$0xff]
    %v3094 = vld [vmem:[%s3036 + $0x1c8] sm:$0xff]
    %v3095 = vld [vmem:[%s3036 + $0x1d0] sm:$0xff]
    %v3096 = vld [vmem:[%s3036 + $0x1d8] sm:$0xff]
    %v3097 = vld [vmem:[%s3036 + $0x1e0] sm:$0xff]
    %v3098 = vld [vmem:[%s3036 + $0x1e8] sm:$0xff]
    %v3099 = vld [vmem:[%s3036 + $0x1f0] sm:$0xff]
    %v3100 = vld [vmem:[%s3036 + $0x1f8] sm:$0xff]
    %v3101 = vld [vmem:[%s3036 + $0x200] sm:$0xff]
    %v3102 = vld [vmem:[%s3036 + $0x208] sm:$0xff]
    %v3103 = vld [vmem:[%s3036 + $0x210] sm:$0xff]
    %v3104 = vld [vmem:[%s3036 + $0x218] sm:$0xff]
    %v3105 = vld [vmem:[%s3036 + $0x220] sm:$0xff]
    %v3106 = vld [vmem:[%s3036 + $0x228] sm:$0xff]
    %v3107 = vld [vmem:[%s3036 + $0x230] sm:$0xff]
    %v3108 = vld [vmem:[%s3036 + $0x238] sm:$0xff]
    %v3109 = vld [vmem:[%s3036 + $0x240] sm:$0xff]
    %v3110 = vld [vmem:[%s3036 + $0x248] sm:$0xff]
    %v3111 = vld [vmem:[%s3036 + $0x250] sm:$0xff]
    %v3112 = vld [vmem:[%s3036 + $0x258] sm:$0xff]
    %v3113 = vld [vmem:[%s3036 + $0x260] sm:$0xff]
    %v3114 = vld [vmem:[%s3036 + $0x268] sm:$0xff]
    %v3115 = vld [vmem:[%s3036 + $0x270] sm:$0xff]
    %v3116 = vld [vmem:[%s3036 + $0x278] sm:$0xff]
    %v3117 = vld [vmem:[%s3036 + $0x280] sm:$0xff]
    %v3118 = vld [vmem:[%s3036 + $0x288] sm:$0xff]
    %v3119 = vld [vmem:[%s3036 + $0x290] sm:$0xff]
    %v3120 = vld [vmem:[%s3036 + $0x298] sm:$0xff]
    %v3121 = vld [vmem:[%s3036 + $0x2a0] sm:$0xff]
    %v3122 = vld [vmem:[%s3036 + $0x2a8] sm:$0xff]
    %v3123 = vld [vmem:[%s3036 + $0x2b0] sm:$0xff]
    %v3124 = vld [vmem:[%s3036 + $0x2b8] sm:$0xff]
    %v3125 = vld [vmem:[%s3036 + $0x2c0] sm:$0xff]
    %v3126 = vld [vmem:[%s3036 + $0x2c8] sm:$0xff]
    %v3127 = vld [vmem:[%s3036 + $0x2d0] sm:$0xff]
    %v3128 = vld [vmem:[%s3036 + $0x2d8] sm:$0xff]
    %v3129 = vld [vmem:[%s3036 + $0x2e0] sm:$0xff]
    %v3130 = vld [vmem:[%s3036 + $0x2e8] sm:$0xff]
    %v3131 = vld [vmem:[%s3036 + $0x2f0] sm:$0xff]
    %v3132 = vld [vmem:[%s3036 + $0x2f8] sm:$0xff]
    %v3133 = vld [vmem:[%s3036 + $0x300] sm:$0xff]
    %v3134 = vld [vmem:[%s3036 + $0x308] sm:$0xff]
    %v3135 = vld [vmem:[%s3036 + $0x310] sm:$0xff]
    %v3136 = vld [vmem:[%s3036 + $0x318] sm:$0xff]
    %v3137 = vld [vmem:[%s3036 + $0x320] sm:$0xff]
    %v3138 = vld [vmem:[%s3036 + $0x328] sm:$0xff]
    %v3139 = vld [vmem:[%s3036 + $0x330] sm:$0xff]
    %v3140 = vld [vmem:[%s3036 + $0x338] sm:$0xff]
    %v3141 = vld [vmem:[%s3036 + $0x340] sm:$0xff]
    %v3142 = vld [vmem:[%s3036 + $0x348] sm:$0xff]
    %v3143 = vld [vmem:[%s3036 + $0x350] sm:$0xff]
    %v3144 = vld [vmem:[%s3036 + $0x358] sm:$0xff]
    %v3145 = vld [vmem:[%s3036 + $0x360] sm:$0xff]
    %v3146 = vld [vmem:[%s3036 + $0x368] sm:$0xff]
    %v3147 = vld [vmem:[%s3036 + $0x370] sm:$0xff]
    %v3148 = vld [vmem:[%s3036 + $0x378] sm:$0xff]
    %v3149 = vld [vmem:[%s3036 + $0x380] sm:$0xff]
    %v3150 = vld [vmem:[%s3036 + $0x388] sm:$0xff]
    %v3151 = vld [vmem:[%s3036 + $0x390] sm:$0xff]
    %v3152 = vld [vmem:[%s3036 + $0x398] sm:$0xff]
    %v3153 = vld [vmem:[%s3036 + $0x3a0] sm:$0xff]
    %v3154 = vld [vmem:[%s3036 + $0x3a8] sm:$0xff]
    %v3155 = vld [vmem:[%s3036 + $0x3b0] sm:$0xff]
    %v3156 = vld [vmem:[%s3036 + $0x3b8] sm:$0xff]
    %v3157 = vld [vmem:[%s3036 + $0x3c0] sm:$0xff]
    %v3158 = vld [vmem:[%s3036 + $0x3c8] sm:$0xff]
    %v3159 = vld [vmem:[%s3036 + $0x3d0] sm:$0xff]
    %v3160 = vld [vmem:[%s3036 + $0x3d8] sm:$0xff]
    %v3161 = vld [vmem:[%s3036 + $0x3e0] sm:$0xff]
    %v3162 = vld [vmem:[%s3036 + $0x3e8] sm:$0xff]
    %v3163 = vld [vmem:[%s3036 + $0x3f0] sm:$0xff]
    %v3164 = vld [vmem:[%s3036 + $0x3f8] sm:$0xff]
    %v3165 = vld [vmem:[%s3036 + $0x400] sm:$0xff]
    %v3166 = vld [vmem:[%s3036 + $0x408] sm:$0xff]
    %v3167 = vld [vmem:[%s3036 + $0x410] sm:$0xff]
    %v3168 = vld [vmem:[%s3036 + $0x418] sm:$0xff]
    %v3169 = vld [vmem:[%s3036 + $0x420] sm:$0xff]
    %v3170 = vld [vmem:[%s3036 + $0x428] sm:$0xff]
    %v3171 = vld [vmem:[%s3036 + $0x430] sm:$0xff]
    %v3172 = vld [vmem:[%s3036 + $0x438] sm:$0xff]
    %v3173 = vld [vmem:[%s3036 + $0x440] sm:$0xff]
    %v3174 = vld [vmem:[%s3036 + $0x448] sm:$0xff]
    %v3175 = vld [vmem:[%s3036 + $0x450] sm:$0xff]
    %v3176 = vld [vmem:[%s3036 + $0x458] sm:$0xff]
    %v3177 = vld [vmem:[%s3036 + $0x460] sm:$0xff]
    %v3178 = vld [vmem:[%s3036 + $0x468] sm:$0xff]
    %v3179 = vld [vmem:[%s3036 + $0x470] sm:$0xff]
    %v3180 = vld [vmem:[%s3036 + $0x478] sm:$0xff]
    %v3181 = vld [vmem:[%s3036 + $0x480] sm:$0xff]
    %v3182 = vld [vmem:[%s3036 + $0x488] sm:$0xff]
    %v3183 = vld [vmem:[%s3036 + $0x490] sm:$0xff]
    %v3184 = vld [vmem:[%s3036 + $0x498] sm:$0xff]
    %v3185 = vld [vmem:[%s3036 + $0x4a0] sm:$0xff]
    %v3186 = vld [vmem:[%s3036 + $0x4a8] sm:$0xff]
    %v3187 = vld [vmem:[%s3036 + $0x4b0] sm:$0xff]
    %v3188 = vld [vmem:[%s3036 + $0x4b8] sm:$0xff]
    %v3189 = vld [vmem:[%s3036 + $0x4c0] sm:$0xff]
    %v3190 = vld [vmem:[%s3036 + $0x4c8] sm:$0xff]
    %v3191 = vld [vmem:[%s3036 + $0x4d0] sm:$0xff]
    %v3192 = vld [vmem:[%s3036 + $0x4d8] sm:$0xff]
    %v3193 = vld [vmem:[%s3036 + $0x4e0] sm:$0xff]
    %v3194 = vld [vmem:[%s3036 + $0x4e8] sm:$0xff]
    %v3195 = vld [vmem:[%s3036 + $0x4f0] sm:$0xff]
    %v3196 = vld [vmem:[%s3036 + $0x4f8] sm:$0xff]
    %v3197 = vld [vmem:[%s3036 + $0x500] sm:$0xff]
    %v3198 = vld [vmem:[%s3036 + $0x508] sm:$0xff]
    %v3199 = vld [vmem:[%s3036 + $0x510] sm:$0xff]
    %v3200 = vld [vmem:[%s3036 + $0x518] sm:$0xff]
    %v3201 = vld [vmem:[%s3036 + $0x520] sm:$0xff]
    %v3202 = vld [vmem:[%s3036 + $0x528] sm:$0xff]
    %v3203 = vld [vmem:[%s3036 + $0x530] sm:$0xff]
    %v3204 = vld [vmem:[%s3036 + $0x538] sm:$0xff]
    %v3205 = vld [vmem:[%s3036 + $0x540] sm:$0xff]
    %v3206 = vld [vmem:[%s3036 + $0x548] sm:$0xff]
    %v3207 = vld [vmem:[%s3036 + $0x550] sm:$0xff]
    %v3208 = vld [vmem:[%s3036 + $0x558] sm:$0xff]
    %v3209 = vld [vmem:[%s3036 + $0x560] sm:$0xff]
    %v3210 = vld [vmem:[%s3036 + $0x568] sm:$0xff]
    %v3211 = vld [vmem:[%s3036 + $0x570] sm:$0xff]
    %v3212 = vld [vmem:[%s3036 + $0x578] sm:$0xff]
    %v3213 = vld [vmem:[%s3036 + $0x580] sm:$0xff]
    %v3214 = vld [vmem:[%s3036 + $0x588] sm:$0xff]
    %v3215 = vld [vmem:[%s3036 + $0x590] sm:$0xff]
    %v3216 = vld [vmem:[%s3036 + $0x598] sm:$0xff]
    %v3217 = vld [vmem:[%s3036 + $0x5a0] sm:$0xff]
    %v3218 = vld [vmem:[%s3036 + $0x5a8] sm:$0xff]
    %v3219 = vld [vmem:[%s3036 + $0x5b0] sm:$0xff]
    %v3220 = vld [vmem:[%s3036 + $0x5b8] sm:$0xff]
    %v3221 = vld [vmem:[%s3036 + $0x5c0] sm:$0xff]
    %v3222 = vld [vmem:[%s3036 + $0x5c8] sm:$0xff]
    %v3223 = vld [vmem:[%s3036 + $0x5d0] sm:$0xff]
    %v3224 = vld [vmem:[%s3036 + $0x5d8] sm:$0xff]
    %v3225 = vld [vmem:[%s3036 + $0x5e0] sm:$0xff]
    %v3226 = vld [vmem:[%s3036 + $0x5e8] sm:$0xff]
    %v3227 = vld [vmem:[%s3036 + $0x5f0] sm:$0xff]
    %v3228 = vld [vmem:[%s3036 + $0x5f8] sm:$0xff]
    %v3229 = vld [vmem:[%s3036 + $0x600] sm:$0xff]
    %v3230 = vld [vmem:[%s3036 + $0x608] sm:$0xff]
    %v3231 = vld [vmem:[%s3036 + $0x610] sm:$0xff]
    %v3232 = vld [vmem:[%s3036 + $0x618] sm:$0xff]
    %v3233 = vld [vmem:[%s3036 + $0x620] sm:$0xff]
    %v3234 = vld [vmem:[%s3036 + $0x628] sm:$0xff]
    %v3235 = vld [vmem:[%s3036 + $0x630] sm:$0xff]
    %v3236 = vld [vmem:[%s3036 + $0x638] sm:$0xff]
    %v3237 = vld [vmem:[%s3036 + $0x640] sm:$0xff]
    %v3238 = vld [vmem:[%s3036 + $0x648] sm:$0xff]
    %v3239 = vld [vmem:[%s3036 + $0x650] sm:$0xff]
    %v3240 = vld [vmem:[%s3036 + $0x658] sm:$0xff]
    %v3241 = vld [vmem:[%s3036 + $0x660] sm:$0xff]
    %v3242 = vld [vmem:[%s3036 + $0x668] sm:$0xff]
    %v3243 = vld [vmem:[%s3036 + $0x670] sm:$0xff]
    %v3244 = vld [vmem:[%s3036 + $0x678] sm:$0xff]
    %v3245 = vld [vmem:[%s3036 + $0x680] sm:$0xff]
    %v3246 = vld [vmem:[%s3036 + $0x688] sm:$0xff]
    %v3247 = vld [vmem:[%s3036 + $0x690] sm:$0xff]
    %v3248 = vld [vmem:[%s3036 + $0x698] sm:$0xff]
    %v3249 = vld [vmem:[%s3036 + $0x6a0] sm:$0xff]
    %v3250 = vld [vmem:[%s3036 + $0x6a8] sm:$0xff]
    %v3251 = vld [vmem:[%s3036 + $0x6b0] sm:$0xff]
    %v3252 = vld [vmem:[%s3036 + $0x6b8] sm:$0xff]
    %v3253 = vld [vmem:[%s3036 + $0x6c0] sm:$0xff]
    %v3254 = vld [vmem:[%s3036 + $0x6c8] sm:$0xff]
    %v3255 = vld [vmem:[%s3036 + $0x6d0] sm:$0xff]
    %v3256 = vld [vmem:[%s3036 + $0x6d8] sm:$0xff]
    %v3257 = vld [vmem:[%s3036 + $0x6e0] sm:$0xff]
    %v3258 = vld [vmem:[%s3036 + $0x6e8] sm:$0xff]
    %v3259 = vld [vmem:[%s3036 + $0x6f0] sm:$0xff]
    %v3260 = vld [vmem:[%s3036 + $0x6f8] sm:$0xff]
    %v3261 = vld [vmem:[%s3036 + $0x700] sm:$0xff]
    %v3262 = vld [vmem:[%s3036 + $0x708] sm:$0xff]
    %v3263 = vld [vmem:[%s3036 + $0x710] sm:$0xff]
    %v3264 = vld [vmem:[%s3036 + $0x718] sm:$0xff]
    %v3265 = vld [vmem:[%s3036 + $0x720] sm:$0xff]
    %v3266 = vld [vmem:[%s3036 + $0x728] sm:$0xff]
    %v3267 = vld [vmem:[%s3036 + $0x730] sm:$0xff]
    %v3268 = vld [vmem:[%s3036 + $0x738] sm:$0xff]
    %v3269 = vld [vmem:[%s3036 + $0x740] sm:$0xff]
    %v3270 = vld [vmem:[%s3036 + $0x748] sm:$0xff]
    %v3271 = vld [vmem:[%s3036 + $0x750] sm:$0xff]
    %v3272 = vld [vmem:[%s3036 + $0x758] sm:$0xff]
    %v3273 = vld [vmem:[%s3036 + $0x760] sm:$0xff]
    %v3274 = vld [vmem:[%s3036 + $0x768] sm:$0xff]
    %v3275 = vld [vmem:[%s3036 + $0x770] sm:$0xff]
    %v3276 = vld [vmem:[%s3036 + $0x778] sm:$0xff]
    %v3277 = vld [vmem:[%s3036 + $0x780] sm:$0xff]
    %v3278 = vld [vmem:[%s3036 + $0x788] sm:$0xff]
    %v3279 = vld [vmem:[%s3036 + $0x790] sm:$0xff]
    %v3280 = vld [vmem:[%s3036 + $0x798] sm:$0xff]
    %v3281 = vld [vmem:[%s3036 + $0x7a0] sm:$0xff]
    %v3282 = vld [vmem:[%s3036 + $0x7a8] sm:$0xff]
    %v3283 = vld [vmem:[%s3036 + $0x7b0] sm:$0xff]
    %v3284 = vld [vmem:[%s3036 + $0x7b8] sm:$0xff]
    %v3285 = vld [vmem:[%s3036 + $0x7c0] sm:$0xff]
    %v3286 = vld [vmem:[%s3036 + $0x7c8] sm:$0xff]
    %v3287 = vld [vmem:[%s3036 + $0x7d0] sm:$0xff]
    %v3288 = vld [vmem:[%s3036 + $0x7d8] sm:$0xff]
    %v3289 = vld [vmem:[%s3036 + $0x7e0] sm:$0xff]
    %v3290 = vld [vmem:[%s3036 + $0x7e8] sm:$0xff]
    %v3291 = vld [vmem:[%s3036 + $0x7f0] sm:$0xff]
    %v3292 = vld [vmem:[%s3036 + $0x7f8] sm:$0xff]
    %s3293 = scalar_lea.vmem [#allocation25], 2
    %v3294 = vld [vmem:[%s3293] sm:$0x3]
    %v3296 = vperm.slane %v3294, 0
    %v3297 = vperm.slane %v3294, 1
    %3300 = vmatpush.msra.mxu0 %v3067
    %3301 = vmatpush.msra.mxu0 %v3065
    %3302 = vmatpush.msra.mxu0 %v3063
    %3303 = vmatpush.msra.mxu0 %v3061
    %3304 = vmatpush.msra.mxu0 %v3059
    %3305 = vmatpush.msra.mxu0 %v3057
    %3306 = vmatpush.msra.mxu0 %v3055
    %3307 = vmatpush.msra.mxu0 %v3053
    %3308 = vmatpush.msra.mxu0 %v3051
    %3309 = vmatpush.msra.mxu0 %v3049
    %3310 = vmatpush.msra.mxu0 %v3047
    %3311 = vmatpush.msra.mxu0 %v3045
    %3312 = vmatpush.msra.mxu0 %v3043
    %3313 = vmatpush.msra.mxu0 %v3041
    %3314 = vmatpush.msra.mxu0 %v3039
    %3315 = vmatpush.msra.mxu0 %v3037
    %3316 = vmatmul.f32.gmra.mxu0 %v3028
    %v3317 = vpop.f32.mrf.mxu0
    %v3318 = vadd.f32 %v3296, %v3317
    %3319 = vdwg.mxu0
    %3320 = vmatpush.msra.mxu0 %v3099
    %3321 = vmatpush.msra.mxu0 %v3097
    %3322 = vmatpush.msra.mxu0 %v3095
    %3323 = vmatpush.msra.mxu0 %v3093
    %3324 = vmatpush.msra.mxu0 %v3091
    %3325 = vmatpush.msra.mxu0 %v3089
    %3326 = vmatpush.msra.mxu0 %v3087
    %3327 = vmatpush.msra.mxu0 %v3085
    %3328 = vmatpush.msra.mxu0 %v3083
    %3329 = vmatpush.msra.mxu0 %v3081
    %3330 = vmatpush.msra.mxu0 %v3079
    %3331 = vmatpush.msra.mxu0 %v3077
    %3332 = vmatpush.msra.mxu0 %v3075
    %3333 = vmatpush.msra.mxu0 %v3073
    %3334 = vmatpush.msra.mxu0 %v3071
    %3335 = vmatpush.msra.mxu0 %v3069
    %3336 = vmatmul.f32.gmra.mxu0 %v3029
    %v3337 = vpop.f32.mrf.mxu0
    %v3338 = vadd.f32 %v3318, %v3337
    %3339 = vdwg.mxu0
    %3340 = vmatpush.msra.mxu0 %v3131
    %3341 = vmatpush.msra.mxu0 %v3129
    %3342 = vmatpush.msra.mxu0 %v3127
    %3343 = vmatpush.msra.mxu0 %v3125
    %3344 = vmatpush.msra.mxu0 %v3123
    %3345 = vmatpush.msra.mxu0 %v3121
    %3346 = vmatpush.msra.mxu0 %v3119
    %3347 = vmatpush.msra.mxu0 %v3117
    %3348 = vmatpush.msra.mxu0 %v3115
    %3349 = vmatpush.msra.mxu0 %v3113
    %3350 = vmatpush.msra.mxu0 %v3111
    %3351 = vmatpush.msra.mxu0 %v3109
    %3352 = vmatpush.msra.mxu0 %v3107
    %3353 = vmatpush.msra.mxu0 %v3105
    %3354 = vmatpush.msra.mxu0 %v3103
    %3355 = vmatpush.msra.mxu0 %v3101
    %3356 = vmatmul.f32.gmra.mxu0 %v3030
    %v3357 = vpop.f32.mrf.mxu0
    %v3358 = vadd.f32 %v3338, %v3357
    %3359 = vdwg.mxu0
    %3360 = vmatpush.msra.mxu0 %v3163
    %3361 = vmatpush.msra.mxu0 %v3161
    %3362 = vmatpush.msra.mxu0 %v3159
    %3363 = vmatpush.msra.mxu0 %v3157
    %3364 = vmatpush.msra.mxu0 %v3155
    %3365 = vmatpush.msra.mxu0 %v3153
    %3366 = vmatpush.msra.mxu0 %v3151
    %3367 = vmatpush.msra.mxu0 %v3149
    %3368 = vmatpush.msra.mxu0 %v3147
    %3369 = vmatpush.msra.mxu0 %v3145
    %3370 = vmatpush.msra.mxu0 %v3143
    %3371 = vmatpush.msra.mxu0 %v3141
    %3372 = vmatpush.msra.mxu0 %v3139
    %3373 = vmatpush.msra.mxu0 %v3137
    %3374 = vmatpush.msra.mxu0 %v3135
    %3375 = vmatpush.msra.mxu0 %v3133
    %3376 = vmatmul.f32.gmra.mxu0 %v3031
    %v3377 = vpop.f32.mrf.mxu0
    %v3378 = vadd.f32 %v3358, %v3377
    %3379 = vdwg.mxu0
    %3380 = vmatpush.msra.mxu0 %v3195
    %3381 = vmatpush.msra.mxu0 %v3193
    %3382 = vmatpush.msra.mxu0 %v3191
    %3383 = vmatpush.msra.mxu0 %v3189
    %3384 = vmatpush.msra.mxu0 %v3187
    %3385 = vmatpush.msra.mxu0 %v3185
    %3386 = vmatpush.msra.mxu0 %v3183
    %3387 = vmatpush.msra.mxu0 %v3181
    %3388 = vmatpush.msra.mxu0 %v3179
    %3389 = vmatpush.msra.mxu0 %v3177
    %3390 = vmatpush.msra.mxu0 %v3175
    %3391 = vmatpush.msra.mxu0 %v3173
    %3392 = vmatpush.msra.mxu0 %v3171
    %3393 = vmatpush.msra.mxu0 %v3169
    %3394 = vmatpush.msra.mxu0 %v3167
    %3395 = vmatpush.msra.mxu0 %v3165
    %3396 = vmatmul.f32.gmra.mxu0 %v3032
    %v3397 = vpop.f32.mrf.mxu0
    %v3398 = vadd.f32 %v3378, %v3397
    %3399 = vdwg.mxu0
    %3400 = vmatpush.msra.mxu0 %v3227
    %3401 = vmatpush.msra.mxu0 %v3225
    %3402 = vmatpush.msra.mxu0 %v3223
    %3403 = vmatpush.msra.mxu0 %v3221
    %3404 = vmatpush.msra.mxu0 %v3219
    %3405 = vmatpush.msra.mxu0 %v3217
    %3406 = vmatpush.msra.mxu0 %v3215
    %3407 = vmatpush.msra.mxu0 %v3213
    %3408 = vmatpush.msra.mxu0 %v3211
    %3409 = vmatpush.msra.mxu0 %v3209
    %3410 = vmatpush.msra.mxu0 %v3207
    %3411 = vmatpush.msra.mxu0 %v3205
    %3412 = vmatpush.msra.mxu0 %v3203
    %3413 = vmatpush.msra.mxu0 %v3201
    %3414 = vmatpush.msra.mxu0 %v3199
    %3415 = vmatpush.msra.mxu0 %v3197
    %3416 = vmatmul.f32.gmra.mxu0 %v3033
    %v3417 = vpop.f32.mrf.mxu0
    %v3418 = vadd.f32 %v3398, %v3417
    %3419 = vdwg.mxu0
    %3420 = vmatpush.msra.mxu0 %v3259
    %3421 = vmatpush.msra.mxu0 %v3257
    %3422 = vmatpush.msra.mxu0 %v3255
    %3423 = vmatpush.msra.mxu0 %v3253
    %3424 = vmatpush.msra.mxu0 %v3251
    %3425 = vmatpush.msra.mxu0 %v3249
    %3426 = vmatpush.msra.mxu0 %v3247
    %3427 = vmatpush.msra.mxu0 %v3245
    %3428 = vmatpush.msra.mxu0 %v3243
    %3429 = vmatpush.msra.mxu0 %v3241
    %3430 = vmatpush.msra.mxu0 %v3239
    %3431 = vmatpush.msra.mxu0 %v3237
    %3432 = vmatpush.msra.mxu0 %v3235
    %3433 = vmatpush.msra.mxu0 %v3233
    %3434 = vmatpush.msra.mxu0 %v3231
    %3435 = vmatpush.msra.mxu0 %v3229
    %3436 = vmatmul.f32.gmra.mxu0 %v3034
    %v3437 = vpop.f32.mrf.mxu0
    %v3438 = vadd.f32 %v3418, %v3437
    %3439 = vdwg.mxu0
    %3440 = vmatpush.msra.mxu0 %v3291
    %3441 = vmatpush.msra.mxu0 %v3289
    %3442 = vmatpush.msra.mxu0 %v3287
    %3443 = vmatpush.msra.mxu0 %v3285
    %3444 = vmatpush.msra.mxu0 %v3283
    %3445 = vmatpush.msra.mxu0 %v3281
    %3446 = vmatpush.msra.mxu0 %v3279
    %3447 = vmatpush.msra.mxu0 %v3277
    %3448 = vmatpush.msra.mxu0 %v3275
    %3449 = vmatpush.msra.mxu0 %v3273
    %3450 = vmatpush.msra.mxu0 %v3271
    %3451 = vmatpush.msra.mxu0 %v3269
    %3452 = vmatpush.msra.mxu0 %v3267
    %3453 = vmatpush.msra.mxu0 %v3265
    %3454 = vmatpush.msra.mxu0 %v3263
    %3455 = vmatpush.msra.mxu0 %v3261
    %3456 = vmatmul.f32.gmra.mxu0 %v3035
    %v3457 = vpop.f32.mrf.mxu0
    %v3458 = vadd.f32 %v3438, %v3457
    %3459 = vdwg.mxu0
    %3460 = vmatpush.msra.mxu0 %v3068
    %3461 = vmatpush.msra.mxu0 %v3066
    %3462 = vmatpush.msra.mxu0 %v3064
    %3463 = vmatpush.msra.mxu0 %v3062
    %3464 = vmatpush.msra.mxu0 %v3060
    %3465 = vmatpush.msra.mxu0 %v3058
    %3466 = vmatpush.msra.mxu0 %v3056
    %3467 = vmatpush.msra.mxu0 %v3054
    %3468 = vmatpush.msra.mxu0 %v3052
    %3469 = vmatpush.msra.mxu0 %v3050
    %3470 = vmatpush.msra.mxu0 %v3048
    %3471 = vmatpush.msra.mxu0 %v3046
    %3472 = vmatpush.msra.mxu0 %v3044
    %3473 = vmatpush.msra.mxu0 %v3042
    %3474 = vmatpush.msra.mxu0 %v3040
    %3475 = vmatpush.msra.mxu0 %v3038
    %3476 = vmatmul.f32.gmra.mxu0 %v3028
    %v3477 = vpop.f32.mrf.mxu0
    %v3478 = vadd.f32 %v3297, %v3477
    %3479 = vdwg.mxu0
    %3480 = vmatpush.msra.mxu0 %v3100
    %3481 = vmatpush.msra.mxu0 %v3098
    %3482 = vmatpush.msra.mxu0 %v3096
    %3483 = vmatpush.msra.mxu0 %v3094
    %3484 = vmatpush.msra.mxu0 %v3092
    %3485 = vmatpush.msra.mxu0 %v3090
    %3486 = vmatpush.msra.mxu0 %v3088
    %3487 = vmatpush.msra.mxu0 %v3086
    %3488 = vmatpush.msra.mxu0 %v3084
    %3489 = vmatpush.msra.mxu0 %v3082
    %3490 = vmatpush.msra.mxu0 %v3080
    %3491 = vmatpush.msra.mxu0 %v3078
    %3492 = vmatpush.msra.mxu0 %v3076
    %3493 = vmatpush.msra.mxu0 %v3074
    %3494 = vmatpush.msra.mxu0 %v3072
    %3495 = vmatpush.msra.mxu0 %v3070
    %3496 = vmatmul.f32.gmra.mxu0 %v3029
    %v3497 = vpop.f32.mrf.mxu0
    %v3498 = vadd.f32 %v3478, %v3497
    %3499 = vdwg.mxu0
    %3500 = vmatpush.msra.mxu0 %v3132
    %3501 = vmatpush.msra.mxu0 %v3130
    %3502 = vmatpush.msra.mxu0 %v3128
    %3503 = vmatpush.msra.mxu0 %v3126
    %3504 = vmatpush.msra.mxu0 %v3124
    %3505 = vmatpush.msra.mxu0 %v3122
    %3506 = vmatpush.msra.mxu0 %v3120
    %3507 = vmatpush.msra.mxu0 %v3118
    %3508 = vmatpush.msra.mxu0 %v3116
    %3509 = vmatpush.msra.mxu0 %v3114
    %3510 = vmatpush.msra.mxu0 %v3112
    %3511 = vmatpush.msra.mxu0 %v3110
    %3512 = vmatpush.msra.mxu0 %v3108
    %3513 = vmatpush.msra.mxu0 %v3106
    %3514 = vmatpush.msra.mxu0 %v3104
    %3515 = vmatpush.msra.mxu0 %v3102
    %3516 = vmatmul.f32.gmra.mxu0 %v3030
    %v3517 = vpop.f32.mrf.mxu0
    %v3518 = vadd.f32 %v3498, %v3517
    %3519 = vdwg.mxu0
    %3520 = vmatpush.msra.mxu0 %v3164
    %3521 = vmatpush.msra.mxu0 %v3162
    %3522 = vmatpush.msra.mxu0 %v3160
    %3523 = vmatpush.msra.mxu0 %v3158
    %3524 = vmatpush.msra.mxu0 %v3156
    %3525 = vmatpush.msra.mxu0 %v3154
    %3526 = vmatpush.msra.mxu0 %v3152
    %3527 = vmatpush.msra.mxu0 %v3150
    %3528 = vmatpush.msra.mxu0 %v3148
    %3529 = vmatpush.msra.mxu0 %v3146
    %3530 = vmatpush.msra.mxu0 %v3144
    %3531 = vmatpush.msra.mxu0 %v3142
    %3532 = vmatpush.msra.mxu0 %v3140
    %3533 = vmatpush.msra.mxu0 %v3138
    %3534 = vmatpush.msra.mxu0 %v3136
    %3535 = vmatpush.msra.mxu0 %v3134
    %3536 = vmatmul.f32.gmra.mxu0 %v3031
    %v3537 = vpop.f32.mrf.mxu0
    %v3538 = vadd.f32 %v3518, %v3537
    %3539 = vdwg.mxu0
    %3540 = vmatpush.msra.mxu0 %v3196
    %3541 = vmatpush.msra.mxu0 %v3194
    %3542 = vmatpush.msra.mxu0 %v3192
    %3543 = vmatpush.msra.mxu0 %v3190
    %3544 = vmatpush.msra.mxu0 %v3188
    %3545 = vmatpush.msra.mxu0 %v3186
    %3546 = vmatpush.msra.mxu0 %v3184
    %3547 = vmatpush.msra.mxu0 %v3182
    %3548 = vmatpush.msra.mxu0 %v3180
    %3549 = vmatpush.msra.mxu0 %v3178
    %3550 = vmatpush.msra.mxu0 %v3176
    %3551 = vmatpush.msra.mxu0 %v3174
    %3552 = vmatpush.msra.mxu0 %v3172
    %3553 = vmatpush.msra.mxu0 %v3170
    %3554 = vmatpush.msra.mxu0 %v3168
    %3555 = vmatpush.msra.mxu0 %v3166
    %3556 = vmatmul.f32.gmra.mxu0 %v3032
    %v3557 = vpop.f32.mrf.mxu0
    %v3558 = vadd.f32 %v3538, %v3557
    %3559 = vdwg.mxu0
    %3560 = vmatpush.msra.mxu0 %v3228
    %3561 = vmatpush.msra.mxu0 %v3226
    %3562 = vmatpush.msra.mxu0 %v3224
    %3563 = vmatpush.msra.mxu0 %v3222
    %3564 = vmatpush.msra.mxu0 %v3220
    %3565 = vmatpush.msra.mxu0 %v3218
    %3566 = vmatpush.msra.mxu0 %v3216
    %3567 = vmatpush.msra.mxu0 %v3214
    %3568 = vmatpush.msra.mxu0 %v3212
    %3569 = vmatpush.msra.mxu0 %v3210
    %3570 = vmatpush.msra.mxu0 %v3208
    %3571 = vmatpush.msra.mxu0 %v3206
    %3572 = vmatpush.msra.mxu0 %v3204
    %3573 = vmatpush.msra.mxu0 %v3202
    %3574 = vmatpush.msra.mxu0 %v3200
    %3575 = vmatpush.msra.mxu0 %v3198
    %3576 = vmatmul.f32.gmra.mxu0 %v3033
    %v3577 = vpop.f32.mrf.mxu0
    %v3578 = vadd.f32 %v3558, %v3577
    %3579 = vdwg.mxu0
    %3580 = vmatpush.msra.mxu0 %v3260
    %3581 = vmatpush.msra.mxu0 %v3258
    %3582 = vmatpush.msra.mxu0 %v3256
    %3583 = vmatpush.msra.mxu0 %v3254
    %3584 = vmatpush.msra.mxu0 %v3252
    %3585 = vmatpush.msra.mxu0 %v3250
    %3586 = vmatpush.msra.mxu0 %v3248
    %3587 = vmatpush.msra.mxu0 %v3246
    %3588 = vmatpush.msra.mxu0 %v3244
    %3589 = vmatpush.msra.mxu0 %v3242
    %3590 = vmatpush.msra.mxu0 %v3240
    %3591 = vmatpush.msra.mxu0 %v3238
    %3592 = vmatpush.msra.mxu0 %v3236
    %3593 = vmatpush.msra.mxu0 %v3234
    %3594 = vmatpush.msra.mxu0 %v3232
    %3595 = vmatpush.msra.mxu0 %v3230
    %3596 = vmatmul.f32.gmra.mxu0 %v3034
    %v3597 = vpop.f32.mrf.mxu0
    %v3598 = vadd.f32 %v3578, %v3597
    %3599 = vdwg.mxu0
    %3600 = vmatpush.msra.mxu0 %v3292
    %3601 = vmatpush.msra.mxu0 %v3290
    %3602 = vmatpush.msra.mxu0 %v3288
    %3603 = vmatpush.msra.mxu0 %v3286
    %3604 = vmatpush.msra.mxu0 %v3284
    %3605 = vmatpush.msra.mxu0 %v3282
    %3606 = vmatpush.msra.mxu0 %v3280
    %3607 = vmatpush.msra.mxu0 %v3278
    %3608 = vmatpush.msra.mxu0 %v3276
    %3609 = vmatpush.msra.mxu0 %v3274
    %3610 = vmatpush.msra.mxu0 %v3272
    %3611 = vmatpush.msra.mxu0 %v3270
    %3612 = vmatpush.msra.mxu0 %v3268
    %3613 = vmatpush.msra.mxu0 %v3266
    %3614 = vmatpush.msra.mxu0 %v3264
    %3615 = vmatpush.msra.mxu0 %v3262
    %3616 = vmatmul.f32.gmra.mxu0 %v3035
    %v3617 = vpop.f32.mrf.mxu0
    %v3618 = vadd.f32 %v3598, %v3617
    %3619 = vdwg.mxu0
    %v3620 = vadd.f32 %v2263, %v3458
    %v3621 = vadd.f32 %v2264, %v3618
    %v3622 = vsel %vm906, %v3620, 0.0
    %v3623 = vsel %vm906, %v3621, 0.0
    %v3624 = vadd.f32 %v3622, %v3623
    %3625 = vadd.xlane.f32.xlu0 %v3624
    %v3626 = vpop.xlane.xlu0 %3625
    %v3627 = vmul.f32 %v3626, %v918
    %v3628 = vsub.f32 %v3620, %v3627
    %v3629 = vsub.f32 %v3621, %v3627
    %v3630 = vmul.f32 %v3628, %v3628
    %v3631 = vmul.f32 %v3629, %v3629
    %v3632 = vsel %vm906, %v3630, 0.0
    %v3633 = vsel %vm906, %v3631, 0.0
    %v3634 = vadd.f32 %v3632, %v3633
    %3635 = vadd.xlane.f32.xlu0 %v3634
    %v3636 = vpop.xlane.xlu0 %3635
    %v3637 = vmul.f32 %v3636, %v918
    %v3638 = vadd.f32 %v3637, 1e-05
    %v3639 = vrsqrt.pop %v3638
    %v3640 = vmul.f32 %v3639, %v3638
    %v3641 = vmul.f32 %v3640, %v3639
    %v3642 = vmul.f32 0.5, %v3641
    %v3643 = vsub.f32 1.5, %v3642
    %v3644 = vmul.f32 %v3639, %v3643
    %vm3645 = vweird.f32 %v3638
    %vm3646 = vweird.f32 %v3639
    %vm3647 = vmor %vm3645, %vm3646
    %v3648 = vsel %vm3647, %v3639, %v3644
    %v3649 = vmul.f32 %v3628, %v3648
    %v3650 = vmul.f32 %v3629, %v3648
    %s3651 = scalar_lea.vmem [#allocation17], 4
    %v3652 = vld [vmem:[%s3651] sm:$0x3]
    %v3654 = vperm.slane %v3652, 0
    %v3655 = vperm.slane %v3652, 1
    %v3658 = vmul.f32 %v3649, %v3654
    %v3659 = vmul.f32 %v3650, %v3655
    %s3660 = scalar_lea.vmem [#allocation19], 4
    %v3661 = vld [vmem:[%s3660] sm:$0x3]
    %v3663 = vperm.slane %v3661, 0
    %v3664 = vperm.slane %v3661, 1
    %v3667 = vadd.f32 %v3658, %v3663
    %v3668 = vadd.f32 %v3659, %v3664
    %s3669 = scalar_lea.vmem [#allocation20], 4096
    %v3670 = vld [vmem:[%s3669] sm:$0xff]
    %v3671 = vld [vmem:[%s3669 + $0x8] sm:$0xff]
    %v3672 = vld [vmem:[%s3669 + $0x10] sm:$0xff]
    %v3673 = vld [vmem:[%s3669 + $0x18] sm:$0xff]
    %v3674 = vld [vmem:[%s3669 + $0x20] sm:$0xff]
    %v3675 = vld [vmem:[%s3669 + $0x28] sm:$0xff]
    %v3676 = vld [vmem:[%s3669 + $0x30] sm:$0xff]
    %v3677 = vld [vmem:[%s3669 + $0x38] sm:$0xff]
    %v3678 = vld [vmem:[%s3669 + $0x40] sm:$0xff]
    %v3679 = vld [vmem:[%s3669 + $0x48] sm:$0xff]
    %v3680 = vld [vmem:[%s3669 + $0x50] sm:$0xff]
    %v3681 = vld [vmem:[%s3669 + $0x58] sm:$0xff]
    %v3682 = vld [vmem:[%s3669 + $0x60] sm:$0xff]
    %v3683 = vld [vmem:[%s3669 + $0x68] sm:$0xff]
    %v3684 = vld [vmem:[%s3669 + $0x70] sm:$0xff]
    %v3685 = vld [vmem:[%s3669 + $0x78] sm:$0xff]
    %v3686 = vld [vmem:[%s3669 + $0x80] sm:$0xff]
    %v3687 = vld [vmem:[%s3669 + $0x88] sm:$0xff]
    %v3688 = vld [vmem:[%s3669 + $0x90] sm:$0xff]
    %v3689 = vld [vmem:[%s3669 + $0x98] sm:$0xff]
    %v3690 = vld [vmem:[%s3669 + $0xa0] sm:$0xff]
    %v3691 = vld [vmem:[%s3669 + $0xa8] sm:$0xff]
    %v3692 = vld [vmem:[%s3669 + $0xb0] sm:$0xff]
    %v3693 = vld [vmem:[%s3669 + $0xb8] sm:$0xff]
    %v3694 = vld [vmem:[%s3669 + $0xc0] sm:$0xff]
    %v3695 = vld [vmem:[%s3669 + $0xc8] sm:$0xff]
    %v3696 = vld [vmem:[%s3669 + $0xd0] sm:$0xff]
    %v3697 = vld [vmem:[%s3669 + $0xd8] sm:$0xff]
    %v3698 = vld [vmem:[%s3669 + $0xe0] sm:$0xff]
    %v3699 = vld [vmem:[%s3669 + $0xe8] sm:$0xff]
    %v3700 = vld [vmem:[%s3669 + $0xf0] sm:$0xff]
    %v3701 = vld [vmem:[%s3669 + $0xf8] sm:$0xff]
    %v3702 = vld [vmem:[%s3669 + $0x100] sm:$0xff]
    %v3703 = vld [vmem:[%s3669 + $0x108] sm:$0xff]
    %v3704 = vld [vmem:[%s3669 + $0x110] sm:$0xff]
    %v3705 = vld [vmem:[%s3669 + $0x118] sm:$0xff]
    %v3706 = vld [vmem:[%s3669 + $0x120] sm:$0xff]
    %v3707 = vld [vmem:[%s3669 + $0x128] sm:$0xff]
    %v3708 = vld [vmem:[%s3669 + $0x130] sm:$0xff]
    %v3709 = vld [vmem:[%s3669 + $0x138] sm:$0xff]
    %v3710 = vld [vmem:[%s3669 + $0x140] sm:$0xff]
    %v3711 = vld [vmem:[%s3669 + $0x148] sm:$0xff]
    %v3712 = vld [vmem:[%s3669 + $0x150] sm:$0xff]
    %v3713 = vld [vmem:[%s3669 + $0x158] sm:$0xff]
    %v3714 = vld [vmem:[%s3669 + $0x160] sm:$0xff]
    %v3715 = vld [vmem:[%s3669 + $0x168] sm:$0xff]
    %v3716 = vld [vmem:[%s3669 + $0x170] sm:$0xff]
    %v3717 = vld [vmem:[%s3669 + $0x178] sm:$0xff]
    %v3718 = vld [vmem:[%s3669 + $0x180] sm:$0xff]
    %v3719 = vld [vmem:[%s3669 + $0x188] sm:$0xff]
    %v3720 = vld [vmem:[%s3669 + $0x190] sm:$0xff]
    %v3721 = vld [vmem:[%s3669 + $0x198] sm:$0xff]
    %v3722 = vld [vmem:[%s3669 + $0x1a0] sm:$0xff]
    %v3723 = vld [vmem:[%s3669 + $0x1a8] sm:$0xff]
    %v3724 = vld [vmem:[%s3669 + $0x1b0] sm:$0xff]
    %v3725 = vld [vmem:[%s3669 + $0x1b8] sm:$0xff]
    %v3726 = vld [vmem:[%s3669 + $0x1c0] sm:$0xff]
    %v3727 = vld [vmem:[%s3669 + $0x1c8] sm:$0xff]
    %v3728 = vld [vmem:[%s3669 + $0x1d0] sm:$0xff]
    %v3729 = vld [vmem:[%s3669 + $0x1d8] sm:$0xff]
    %v3730 = vld [vmem:[%s3669 + $0x1e0] sm:$0xff]
    %v3731 = vld [vmem:[%s3669 + $0x1e8] sm:$0xff]
    %v3732 = vld [vmem:[%s3669 + $0x1f0] sm:$0xff]
    %v3733 = vld [vmem:[%s3669 + $0x1f8] sm:$0xff]
    %v3734 = vld [vmem:[%s3669 + $0x200] sm:$0xff]
    %v3735 = vld [vmem:[%s3669 + $0x208] sm:$0xff]
    %v3736 = vld [vmem:[%s3669 + $0x210] sm:$0xff]
    %v3737 = vld [vmem:[%s3669 + $0x218] sm:$0xff]
    %v3738 = vld [vmem:[%s3669 + $0x220] sm:$0xff]
    %v3739 = vld [vmem:[%s3669 + $0x228] sm:$0xff]
    %v3740 = vld [vmem:[%s3669 + $0x230] sm:$0xff]
    %v3741 = vld [vmem:[%s3669 + $0x238] sm:$0xff]
    %v3742 = vld [vmem:[%s3669 + $0x240] sm:$0xff]
    %v3743 = vld [vmem:[%s3669 + $0x248] sm:$0xff]
    %v3744 = vld [vmem:[%s3669 + $0x250] sm:$0xff]
    %v3745 = vld [vmem:[%s3669 + $0x258] sm:$0xff]
    %v3746 = vld [vmem:[%s3669 + $0x260] sm:$0xff]
    %v3747 = vld [vmem:[%s3669 + $0x268] sm:$0xff]
    %v3748 = vld [vmem:[%s3669 + $0x270] sm:$0xff]
    %v3749 = vld [vmem:[%s3669 + $0x278] sm:$0xff]
    %v3750 = vld [vmem:[%s3669 + $0x280] sm:$0xff]
    %v3751 = vld [vmem:[%s3669 + $0x288] sm:$0xff]
    %v3752 = vld [vmem:[%s3669 + $0x290] sm:$0xff]
    %v3753 = vld [vmem:[%s3669 + $0x298] sm:$0xff]
    %v3754 = vld [vmem:[%s3669 + $0x2a0] sm:$0xff]
    %v3755 = vld [vmem:[%s3669 + $0x2a8] sm:$0xff]
    %v3756 = vld [vmem:[%s3669 + $0x2b0] sm:$0xff]
    %v3757 = vld [vmem:[%s3669 + $0x2b8] sm:$0xff]
    %v3758 = vld [vmem:[%s3669 + $0x2c0] sm:$0xff]
    %v3759 = vld [vmem:[%s3669 + $0x2c8] sm:$0xff]
    %v3760 = vld [vmem:[%s3669 + $0x2d0] sm:$0xff]
    %v3761 = vld [vmem:[%s3669 + $0x2d8] sm:$0xff]
    %v3762 = vld [vmem:[%s3669 + $0x2e0] sm:$0xff]
    %v3763 = vld [vmem:[%s3669 + $0x2e8] sm:$0xff]
    %v3764 = vld [vmem:[%s3669 + $0x2f0] sm:$0xff]
    %v3765 = vld [vmem:[%s3669 + $0x2f8] sm:$0xff]
    %v3766 = vld [vmem:[%s3669 + $0x300] sm:$0xff]
    %v3767 = vld [vmem:[%s3669 + $0x308] sm:$0xff]
    %v3768 = vld [vmem:[%s3669 + $0x310] sm:$0xff]
    %v3769 = vld [vmem:[%s3669 + $0x318] sm:$0xff]
    %v3770 = vld [vmem:[%s3669 + $0x320] sm:$0xff]
    %v3771 = vld [vmem:[%s3669 + $0x328] sm:$0xff]
    %v3772 = vld [vmem:[%s3669 + $0x330] sm:$0xff]
    %v3773 = vld [vmem:[%s3669 + $0x338] sm:$0xff]
    %v3774 = vld [vmem:[%s3669 + $0x340] sm:$0xff]
    %v3775 = vld [vmem:[%s3669 + $0x348] sm:$0xff]
    %v3776 = vld [vmem:[%s3669 + $0x350] sm:$0xff]
    %v3777 = vld [vmem:[%s3669 + $0x358] sm:$0xff]
    %v3778 = vld [vmem:[%s3669 + $0x360] sm:$0xff]
    %v3779 = vld [vmem:[%s3669 + $0x368] sm:$0xff]
    %v3780 = vld [vmem:[%s3669 + $0x370] sm:$0xff]
    %v3781 = vld [vmem:[%s3669 + $0x378] sm:$0xff]
    %v3782 = vld [vmem:[%s3669 + $0x380] sm:$0xff]
    %v3783 = vld [vmem:[%s3669 + $0x388] sm:$0xff]
    %v3784 = vld [vmem:[%s3669 + $0x390] sm:$0xff]
    %v3785 = vld [vmem:[%s3669 + $0x398] sm:$0xff]
    %v3786 = vld [vmem:[%s3669 + $0x3a0] sm:$0xff]
    %v3787 = vld [vmem:[%s3669 + $0x3a8] sm:$0xff]
    %v3788 = vld [vmem:[%s3669 + $0x3b0] sm:$0xff]
    %v3789 = vld [vmem:[%s3669 + $0x3b8] sm:$0xff]
    %v3790 = vld [vmem:[%s3669 + $0x3c0] sm:$0xff]
    %v3791 = vld [vmem:[%s3669 + $0x3c8] sm:$0xff]
    %v3792 = vld [vmem:[%s3669 + $0x3d0] sm:$0xff]
    %v3793 = vld [vmem:[%s3669 + $0x3d8] sm:$0xff]
    %v3794 = vld [vmem:[%s3669 + $0x3e0] sm:$0xff]
    %v3795 = vld [vmem:[%s3669 + $0x3e8] sm:$0xff]
    %v3796 = vld [vmem:[%s3669 + $0x3f0] sm:$0xff]
    %v3797 = vld [vmem:[%s3669 + $0x3f8] sm:$0xff]
    %v3798 = vld [vmem:[%s3669 + $0x400] sm:$0xff]
    %v3799 = vld [vmem:[%s3669 + $0x408] sm:$0xff]
    %v3800 = vld [vmem:[%s3669 + $0x410] sm:$0xff]
    %v3801 = vld [vmem:[%s3669 + $0x418] sm:$0xff]
    %v3802 = vld [vmem:[%s3669 + $0x420] sm:$0xff]
    %v3803 = vld [vmem:[%s3669 + $0x428] sm:$0xff]
    %v3804 = vld [vmem:[%s3669 + $0x430] sm:$0xff]
    %v3805 = vld [vmem:[%s3669 + $0x438] sm:$0xff]
    %v3806 = vld [vmem:[%s3669 + $0x440] sm:$0xff]
    %v3807 = vld [vmem:[%s3669 + $0x448] sm:$0xff]
    %v3808 = vld [vmem:[%s3669 + $0x450] sm:$0xff]
    %v3809 = vld [vmem:[%s3669 + $0x458] sm:$0xff]
    %v3810 = vld [vmem:[%s3669 + $0x460] sm:$0xff]
    %v3811 = vld [vmem:[%s3669 + $0x468] sm:$0xff]
    %v3812 = vld [vmem:[%s3669 + $0x470] sm:$0xff]
    %v3813 = vld [vmem:[%s3669 + $0x478] sm:$0xff]
    %v3814 = vld [vmem:[%s3669 + $0x480] sm:$0xff]
    %v3815 = vld [vmem:[%s3669 + $0x488] sm:$0xff]
    %v3816 = vld [vmem:[%s3669 + $0x490] sm:$0xff]
    %v3817 = vld [vmem:[%s3669 + $0x498] sm:$0xff]
    %v3818 = vld [vmem:[%s3669 + $0x4a0] sm:$0xff]
    %v3819 = vld [vmem:[%s3669 + $0x4a8] sm:$0xff]
    %v3820 = vld [vmem:[%s3669 + $0x4b0] sm:$0xff]
    %v3821 = vld [vmem:[%s3669 + $0x4b8] sm:$0xff]
    %v3822 = vld [vmem:[%s3669 + $0x4c0] sm:$0xff]
    %v3823 = vld [vmem:[%s3669 + $0x4c8] sm:$0xff]
    %v3824 = vld [vmem:[%s3669 + $0x4d0] sm:$0xff]
    %v3825 = vld [vmem:[%s3669 + $0x4d8] sm:$0xff]
    %v3826 = vld [vmem:[%s3669 + $0x4e0] sm:$0xff]
    %v3827 = vld [vmem:[%s3669 + $0x4e8] sm:$0xff]
    %v3828 = vld [vmem:[%s3669 + $0x4f0] sm:$0xff]
    %v3829 = vld [vmem:[%s3669 + $0x4f8] sm:$0xff]
    %v3830 = vld [vmem:[%s3669 + $0x500] sm:$0xff]
    %v3831 = vld [vmem:[%s3669 + $0x508] sm:$0xff]
    %v3832 = vld [vmem:[%s3669 + $0x510] sm:$0xff]
    %v3833 = vld [vmem:[%s3669 + $0x518] sm:$0xff]
    %v3834 = vld [vmem:[%s3669 + $0x520] sm:$0xff]
    %v3835 = vld [vmem:[%s3669 + $0x528] sm:$0xff]
    %v3836 = vld [vmem:[%s3669 + $0x530] sm:$0xff]
    %v3837 = vld [vmem:[%s3669 + $0x538] sm:$0xff]
    %v3838 = vld [vmem:[%s3669 + $0x540] sm:$0xff]
    %v3839 = vld [vmem:[%s3669 + $0x548] sm:$0xff]
    %v3840 = vld [vmem:[%s3669 + $0x550] sm:$0xff]
    %v3841 = vld [vmem:[%s3669 + $0x558] sm:$0xff]
    %v3842 = vld [vmem:[%s3669 + $0x560] sm:$0xff]
    %v3843 = vld [vmem:[%s3669 + $0x568] sm:$0xff]
    %v3844 = vld [vmem:[%s3669 + $0x570] sm:$0xff]
    %v3845 = vld [vmem:[%s3669 + $0x578] sm:$0xff]
    %v3846 = vld [vmem:[%s3669 + $0x580] sm:$0xff]
    %v3847 = vld [vmem:[%s3669 + $0x588] sm:$0xff]
    %v3848 = vld [vmem:[%s3669 + $0x590] sm:$0xff]
    %v3849 = vld [vmem:[%s3669 + $0x598] sm:$0xff]
    %v3850 = vld [vmem:[%s3669 + $0x5a0] sm:$0xff]
    %v3851 = vld [vmem:[%s3669 + $0x5a8] sm:$0xff]
    %v3852 = vld [vmem:[%s3669 + $0x5b0] sm:$0xff]
    %v3853 = vld [vmem:[%s3669 + $0x5b8] sm:$0xff]
    %v3854 = vld [vmem:[%s3669 + $0x5c0] sm:$0xff]
    %v3855 = vld [vmem:[%s3669 + $0x5c8] sm:$0xff]
    %v3856 = vld [vmem:[%s3669 + $0x5d0] sm:$0xff]
    %v3857 = vld [vmem:[%s3669 + $0x5d8] sm:$0xff]
    %v3858 = vld [vmem:[%s3669 + $0x5e0] sm:$0xff]
    %v3859 = vld [vmem:[%s3669 + $0x5e8] sm:$0xff]
    %v3860 = vld [vmem:[%s3669 + $0x5f0] sm:$0xff]
    %v3861 = vld [vmem:[%s3669 + $0x5f8] sm:$0xff]
    %v3862 = vld [vmem:[%s3669 + $0x600] sm:$0xff]
    %v3863 = vld [vmem:[%s3669 + $0x608] sm:$0xff]
    %v3864 = vld [vmem:[%s3669 + $0x610] sm:$0xff]
    %v3865 = vld [vmem:[%s3669 + $0x618] sm:$0xff]
    %v3866 = vld [vmem:[%s3669 + $0x620] sm:$0xff]
    %v3867 = vld [vmem:[%s3669 + $0x628] sm:$0xff]
    %v3868 = vld [vmem:[%s3669 + $0x630] sm:$0xff]
    %v3869 = vld [vmem:[%s3669 + $0x638] sm:$0xff]
    %v3870 = vld [vmem:[%s3669 + $0x640] sm:$0xff]
    %v3871 = vld [vmem:[%s3669 + $0x648] sm:$0xff]
    %v3872 = vld [vmem:[%s3669 + $0x650] sm:$0xff]
    %v3873 = vld [vmem:[%s3669 + $0x658] sm:$0xff]
    %v3874 = vld [vmem:[%s3669 + $0x660] sm:$0xff]
    %v3875 = vld [vmem:[%s3669 + $0x668] sm:$0xff]
    %v3876 = vld [vmem:[%s3669 + $0x670] sm:$0xff]
    %v3877 = vld [vmem:[%s3669 + $0x678] sm:$0xff]
    %v3878 = vld [vmem:[%s3669 + $0x680] sm:$0xff]
    %v3879 = vld [vmem:[%s3669 + $0x688] sm:$0xff]
    %v3880 = vld [vmem:[%s3669 + $0x690] sm:$0xff]
    %v3881 = vld [vmem:[%s3669 + $0x698] sm:$0xff]
    %v3882 = vld [vmem:[%s3669 + $0x6a0] sm:$0xff]
    %v3883 = vld [vmem:[%s3669 + $0x6a8] sm:$0xff]
    %v3884 = vld [vmem:[%s3669 + $0x6b0] sm:$0xff]
    %v3885 = vld [vmem:[%s3669 + $0x6b8] sm:$0xff]
    %v3886 = vld [vmem:[%s3669 + $0x6c0] sm:$0xff]
    %v3887 = vld [vmem:[%s3669 + $0x6c8] sm:$0xff]
    %v3888 = vld [vmem:[%s3669 + $0x6d0] sm:$0xff]
    %v3889 = vld [vmem:[%s3669 + $0x6d8] sm:$0xff]
    %v3890 = vld [vmem:[%s3669 + $0x6e0] sm:$0xff]
    %v3891 = vld [vmem:[%s3669 + $0x6e8] sm:$0xff]
    %v3892 = vld [vmem:[%s3669 + $0x6f0] sm:$0xff]
    %v3893 = vld [vmem:[%s3669 + $0x6f8] sm:$0xff]
    %v3894 = vld [vmem:[%s3669 + $0x700] sm:$0xff]
    %v3895 = vld [vmem:[%s3669 + $0x708] sm:$0xff]
    %v3896 = vld [vmem:[%s3669 + $0x710] sm:$0xff]
    %v3897 = vld [vmem:[%s3669 + $0x718] sm:$0xff]
    %v3898 = vld [vmem:[%s3669 + $0x720] sm:$0xff]
    %v3899 = vld [vmem:[%s3669 + $0x728] sm:$0xff]
    %v3900 = vld [vmem:[%s3669 + $0x730] sm:$0xff]
    %v3901 = vld [vmem:[%s3669 + $0x738] sm:$0xff]
    %v3902 = vld [vmem:[%s3669 + $0x740] sm:$0xff]
    %v3903 = vld [vmem:[%s3669 + $0x748] sm:$0xff]
    %v3904 = vld [vmem:[%s3669 + $0x750] sm:$0xff]
    %v3905 = vld [vmem:[%s3669 + $0x758] sm:$0xff]
    %v3906 = vld [vmem:[%s3669 + $0x760] sm:$0xff]
    %v3907 = vld [vmem:[%s3669 + $0x768] sm:$0xff]
    %v3908 = vld [vmem:[%s3669 + $0x770] sm:$0xff]
    %v3909 = vld [vmem:[%s3669 + $0x778] sm:$0xff]
    %v3910 = vld [vmem:[%s3669 + $0x780] sm:$0xff]
    %v3911 = vld [vmem:[%s3669 + $0x788] sm:$0xff]
    %v3912 = vld [vmem:[%s3669 + $0x790] sm:$0xff]
    %v3913 = vld [vmem:[%s3669 + $0x798] sm:$0xff]
    %v3914 = vld [vmem:[%s3669 + $0x7a0] sm:$0xff]
    %v3915 = vld [vmem:[%s3669 + $0x7a8] sm:$0xff]
    %v3916 = vld [vmem:[%s3669 + $0x7b0] sm:$0xff]
    %v3917 = vld [vmem:[%s3669 + $0x7b8] sm:$0xff]
    %v3918 = vld [vmem:[%s3669 + $0x7c0] sm:$0xff]
    %v3919 = vld [vmem:[%s3669 + $0x7c8] sm:$0xff]
    %v3920 = vld [vmem:[%s3669 + $0x7d0] sm:$0xff]
    %v3921 = vld [vmem:[%s3669 + $0x7d8] sm:$0xff]
    %v3922 = vld [vmem:[%s3669 + $0x7e0] sm:$0xff]
    %v3923 = vld [vmem:[%s3669 + $0x7e8] sm:$0xff]
    %v3924 = vld [vmem:[%s3669 + $0x7f0] sm:$0xff]
    %v3925 = vld [vmem:[%s3669 + $0x7f8] sm:$0xff]
    %s3926 = scalar_lea.vmem [#allocation22], 16
    %v3927 = vld [vmem:[%s3926] sm:$0xff]
    %v3929 = vperm.slane %v3927, 0
    %v3930 = vperm.slane %v3927, 1
    %v3931 = vperm.slane %v3927, 2
    %v3932 = vperm.slane %v3927, 3
    %v3933 = vperm.slane %v3927, 4
    %v3934 = vperm.slane %v3927, 5
    %v3935 = vperm.slane %v3927, 6
    %v3936 = vperm.slane %v3927, 7
    %3945 = vmatpush.msra.mxu0 %v3790
    %3946 = vmatpush.msra.mxu0 %v3782
    %3947 = vmatpush.msra.mxu0 %v3774
    %3948 = vmatpush.msra.mxu0 %v3766
    %3949 = vmatpush.msra.mxu0 %v3758
    %3950 = vmatpush.msra.mxu0 %v3750
    %3951 = vmatpush.msra.mxu0 %v3742
    %3952 = vmatpush.msra.mxu0 %v3734
    %3953 = vmatpush.msra.mxu0 %v3726
    %3954 = vmatpush.msra.mxu0 %v3718
    %3955 = vmatpush.msra.mxu0 %v3710
    %3956 = vmatpush.msra.mxu0 %v3702
    %3957 = vmatpush.msra.mxu0 %v3694
    %3958 = vmatpush.msra.mxu0 %v3686
    %3959 = vmatpush.msra.mxu0 %v3678
    %3960 = vmatpush.msra.mxu0 %v3670
    %3961 = vmatmul.f32.gmra.mxu0 %v3667
    %v3962 = vpop.f32.mrf.mxu0
    %v3963 = vadd.f32 %v3929, %v3962
    %3964 = vdwg.mxu0
    %3965 = vmatpush.msra.mxu0 %v3918
    %3966 = vmatpush.msra.mxu0 %v3910
    %3967 = vmatpush.msra.mxu0 %v3902
    %3968 = vmatpush.msra.mxu0 %v3894
    %3969 = vmatpush.msra.mxu0 %v3886
    %3970 = vmatpush.msra.mxu0 %v3878
    %3971 = vmatpush.msra.mxu0 %v3870
    %3972 = vmatpush.msra.mxu0 %v3862
    %3973 = vmatpush.msra.mxu0 %v3854
    %3974 = vmatpush.msra.mxu0 %v3846
    %3975 = vmatpush.msra.mxu0 %v3838
    %3976 = vmatpush.msra.mxu0 %v3830
    %3977 = vmatpush.msra.mxu0 %v3822
    %3978 = vmatpush.msra.mxu0 %v3814
    %3979 = vmatpush.msra.mxu0 %v3806
    %3980 = vmatpush.msra.mxu0 %v3798
    %3981 = vmatmul.f32.gmra.mxu0 %v3668
    %v3982 = vpop.f32.mrf.mxu0
    %v3983 = vadd.f32 %v3963, %v3982
    %3984 = vdwg.mxu0
    %3985 = vmatpush.msra.mxu0 %v3791
    %3986 = vmatpush.msra.mxu0 %v3783
    %3987 = vmatpush.msra.mxu0 %v3775
    %3988 = vmatpush.msra.mxu0 %v3767
    %3989 = vmatpush.msra.mxu0 %v3759
    %3990 = vmatpush.msra.mxu0 %v3751
    %3991 = vmatpush.msra.mxu0 %v3743
    %3992 = vmatpush.msra.mxu0 %v3735
    %3993 = vmatpush.msra.mxu0 %v3727
    %3994 = vmatpush.msra.mxu0 %v3719
    %3995 = vmatpush.msra.mxu0 %v3711
    %3996 = vmatpush.msra.mxu0 %v3703
    %3997 = vmatpush.msra.mxu0 %v3695
    %3998 = vmatpush.msra.mxu0 %v3687
    %3999 = vmatpush.msra.mxu0 %v3679
    %4000 = vmatpush.msra.mxu0 %v3671
    %4001 = vmatmul.f32.gmra.mxu0 %v3667
    %v4002 = vpop.f32.mrf.mxu0
    %v4003 = vadd.f32 %v3930, %v4002
    %4004 = vdwg.mxu0
    %4005 = vmatpush.msra.mxu0 %v3919
    %4006 = vmatpush.msra.mxu0 %v3911
    %4007 = vmatpush.msra.mxu0 %v3903
    %4008 = vmatpush.msra.mxu0 %v3895
    %4009 = vmatpush.msra.mxu0 %v3887
    %4010 = vmatpush.msra.mxu0 %v3879
    %4011 = vmatpush.msra.mxu0 %v3871
    %4012 = vmatpush.msra.mxu0 %v3863
    %4013 = vmatpush.msra.mxu0 %v3855
    %4014 = vmatpush.msra.mxu0 %v3847
    %4015 = vmatpush.msra.mxu0 %v3839
    %4016 = vmatpush.msra.mxu0 %v3831
    %4017 = vmatpush.msra.mxu0 %v3823
    %4018 = vmatpush.msra.mxu0 %v3815
    %4019 = vmatpush.msra.mxu0 %v3807
    %4020 = vmatpush.msra.mxu0 %v3799
    %4021 = vmatmul.f32.gmra.mxu0 %v3668
    %v4022 = vpop.f32.mrf.mxu0
    %v4023 = vadd.f32 %v4003, %v4022
    %4024 = vdwg.mxu0
    %4025 = vmatpush.msra.mxu0 %v3792
    %4026 = vmatpush.msra.mxu0 %v3784
    %4027 = vmatpush.msra.mxu0 %v3776
    %4028 = vmatpush.msra.mxu0 %v3768
    %4029 = vmatpush.msra.mxu0 %v3760
    %4030 = vmatpush.msra.mxu0 %v3752
    %4031 = vmatpush.msra.mxu0 %v3744
    %4032 = vmatpush.msra.mxu0 %v3736
    %4033 = vmatpush.msra.mxu0 %v3728
    %4034 = vmatpush.msra.mxu0 %v3720
    %4035 = vmatpush.msra.mxu0 %v3712
    %4036 = vmatpush.msra.mxu0 %v3704
    %4037 = vmatpush.msra.mxu0 %v3696
    %4038 = vmatpush.msra.mxu0 %v3688
    %4039 = vmatpush.msra.mxu0 %v3680
    %4040 = vmatpush.msra.mxu0 %v3672
    %4041 = vmatmul.f32.gmra.mxu0 %v3667
    %v4042 = vpop.f32.mrf.mxu0
    %v4043 = vadd.f32 %v3931, %v4042
    %4044 = vdwg.mxu0
    %4045 = vmatpush.msra.mxu0 %v3920
    %4046 = vmatpush.msra.mxu0 %v3912
    %4047 = vmatpush.msra.mxu0 %v3904
    %4048 = vmatpush.msra.mxu0 %v3896
    %4049 = vmatpush.msra.mxu0 %v3888
    %4050 = vmatpush.msra.mxu0 %v3880
    %4051 = vmatpush.msra.mxu0 %v3872
    %4052 = vmatpush.msra.mxu0 %v3864
    %4053 = vmatpush.msra.mxu0 %v3856
    %4054 = vmatpush.msra.mxu0 %v3848
    %4055 = vmatpush.msra.mxu0 %v3840
    %4056 = vmatpush.msra.mxu0 %v3832
    %4057 = vmatpush.msra.mxu0 %v3824
    %4058 = vmatpush.msra.mxu0 %v3816
    %4059 = vmatpush.msra.mxu0 %v3808
    %4060 = vmatpush.msra.mxu0 %v3800
    %4061 = vmatmul.f32.gmra.mxu0 %v3668
    %v4062 = vpop.f32.mrf.mxu0
    %v4063 = vadd.f32 %v4043, %v4062
    %4064 = vdwg.mxu0
    %4065 = vmatpush.msra.mxu0 %v3793
    %4066 = vmatpush.msra.mxu0 %v3785
    %4067 = vmatpush.msra.mxu0 %v3777
    %4068 = vmatpush.msra.mxu0 %v3769
    %4069 = vmatpush.msra.mxu0 %v3761
    %4070 = vmatpush.msra.mxu0 %v3753
    %4071 = vmatpush.msra.mxu0 %v3745
    %4072 = vmatpush.msra.mxu0 %v3737
    %4073 = vmatpush.msra.mxu0 %v3729
    %4074 = vmatpush.msra.mxu0 %v3721
    %4075 = vmatpush.msra.mxu0 %v3713
    %4076 = vmatpush.msra.mxu0 %v3705
    %4077 = vmatpush.msra.mxu0 %v3697
    %4078 = vmatpush.msra.mxu0 %v3689
    %4079 = vmatpush.msra.mxu0 %v3681
    %4080 = vmatpush.msra.mxu0 %v3673
    %4081 = vmatmul.f32.gmra.mxu0 %v3667
    %v4082 = vpop.f32.mrf.mxu0
    %v4083 = vadd.f32 %v3932, %v4082
    %4084 = vdwg.mxu0
    %4085 = vmatpush.msra.mxu0 %v3921
    %4086 = vmatpush.msra.mxu0 %v3913
    %4087 = vmatpush.msra.mxu0 %v3905
    %4088 = vmatpush.msra.mxu0 %v3897
    %4089 = vmatpush.msra.mxu0 %v3889
    %4090 = vmatpush.msra.mxu0 %v3881
    %4091 = vmatpush.msra.mxu0 %v3873
    %4092 = vmatpush.msra.mxu0 %v3865
    %4093 = vmatpush.msra.mxu0 %v3857
    %4094 = vmatpush.msra.mxu0 %v3849
    %4095 = vmatpush.msra.mxu0 %v3841
    %4096 = vmatpush.msra.mxu0 %v3833
    %4097 = vmatpush.msra.mxu0 %v3825
    %4098 = vmatpush.msra.mxu0 %v3817
    %4099 = vmatpush.msra.mxu0 %v3809
    %4100 = vmatpush.msra.mxu0 %v3801
    %4101 = vmatmul.f32.gmra.mxu0 %v3668
    %v4102 = vpop.f32.mrf.mxu0
    %v4103 = vadd.f32 %v4083, %v4102
    %4104 = vdwg.mxu0
    %4105 = vmatpush.msra.mxu0 %v3794
    %4106 = vmatpush.msra.mxu0 %v3786
    %4107 = vmatpush.msra.mxu0 %v3778
    %4108 = vmatpush.msra.mxu0 %v3770
    %4109 = vmatpush.msra.mxu0 %v3762
    %4110 = vmatpush.msra.mxu0 %v3754
    %4111 = vmatpush.msra.mxu0 %v3746
    %4112 = vmatpush.msra.mxu0 %v3738
    %4113 = vmatpush.msra.mxu0 %v3730
    %4114 = vmatpush.msra.mxu0 %v3722
    %4115 = vmatpush.msra.mxu0 %v3714
    %4116 = vmatpush.msra.mxu0 %v3706
    %4117 = vmatpush.msra.mxu0 %v3698
    %4118 = vmatpush.msra.mxu0 %v3690
    %4119 = vmatpush.msra.mxu0 %v3682
    %4120 = vmatpush.msra.mxu0 %v3674
    %4121 = vmatmul.f32.gmra.mxu0 %v3667
    %v4122 = vpop.f32.mrf.mxu0
    %v4123 = vadd.f32 %v3933, %v4122
    %4124 = vdwg.mxu0
    %4125 = vmatpush.msra.mxu0 %v3922
    %4126 = vmatpush.msra.mxu0 %v3914
    %4127 = vmatpush.msra.mxu0 %v3906
    %4128 = vmatpush.msra.mxu0 %v3898
    %4129 = vmatpush.msra.mxu0 %v3890
    %4130 = vmatpush.msra.mxu0 %v3882
    %4131 = vmatpush.msra.mxu0 %v3874
    %4132 = vmatpush.msra.mxu0 %v3866
    %4133 = vmatpush.msra.mxu0 %v3858
    %4134 = vmatpush.msra.mxu0 %v3850
    %4135 = vmatpush.msra.mxu0 %v3842
    %4136 = vmatpush.msra.mxu0 %v3834
    %4137 = vmatpush.msra.mxu0 %v3826
    %4138 = vmatpush.msra.mxu0 %v3818
    %4139 = vmatpush.msra.mxu0 %v3810
    %4140 = vmatpush.msra.mxu0 %v3802
    %4141 = vmatmul.f32.gmra.mxu0 %v3668
    %v4142 = vpop.f32.mrf.mxu0
    %v4143 = vadd.f32 %v4123, %v4142
    %4144 = vdwg.mxu0
    %4145 = vmatpush.msra.mxu0 %v3795
    %4146 = vmatpush.msra.mxu0 %v3787
    %4147 = vmatpush.msra.mxu0 %v3779
    %4148 = vmatpush.msra.mxu0 %v3771
    %4149 = vmatpush.msra.mxu0 %v3763
    %4150 = vmatpush.msra.mxu0 %v3755
    %4151 = vmatpush.msra.mxu0 %v3747
    %4152 = vmatpush.msra.mxu0 %v3739
    %4153 = vmatpush.msra.mxu0 %v3731
    %4154 = vmatpush.msra.mxu0 %v3723
    %4155 = vmatpush.msra.mxu0 %v3715
    %4156 = vmatpush.msra.mxu0 %v3707
    %4157 = vmatpush.msra.mxu0 %v3699
    %4158 = vmatpush.msra.mxu0 %v3691
    %4159 = vmatpush.msra.mxu0 %v3683
    %4160 = vmatpush.msra.mxu0 %v3675
    %4161 = vmatmul.f32.gmra.mxu0 %v3667
    %v4162 = vpop.f32.mrf.mxu0
    %v4163 = vadd.f32 %v3934, %v4162
    %4164 = vdwg.mxu0
    %4165 = vmatpush.msra.mxu0 %v3923
    %4166 = vmatpush.msra.mxu0 %v3915
    %4167 = vmatpush.msra.mxu0 %v3907
    %4168 = vmatpush.msra.mxu0 %v3899
    %4169 = vmatpush.msra.mxu0 %v3891
    %4170 = vmatpush.msra.mxu0 %v3883
    %4171 = vmatpush.msra.mxu0 %v3875
    %4172 = vmatpush.msra.mxu0 %v3867
    %4173 = vmatpush.msra.mxu0 %v3859
    %4174 = vmatpush.msra.mxu0 %v3851
    %4175 = vmatpush.msra.mxu0 %v3843
    %4176 = vmatpush.msra.mxu0 %v3835
    %4177 = vmatpush.msra.mxu0 %v3827
    %4178 = vmatpush.msra.mxu0 %v3819
    %4179 = vmatpush.msra.mxu0 %v3811
    %4180 = vmatpush.msra.mxu0 %v3803
    %4181 = vmatmul.f32.gmra.mxu0 %v3668
    %v4182 = vpop.f32.mrf.mxu0
    %v4183 = vadd.f32 %v4163, %v4182
    %4184 = vdwg.mxu0
    %4185 = vmatpush.msra.mxu0 %v3796
    %4186 = vmatpush.msra.mxu0 %v3788
    %4187 = vmatpush.msra.mxu0 %v3780
    %4188 = vmatpush.msra.mxu0 %v3772
    %4189 = vmatpush.msra.mxu0 %v3764
    %4190 = vmatpush.msra.mxu0 %v3756
    %4191 = vmatpush.msra.mxu0 %v3748
    %4192 = vmatpush.msra.mxu0 %v3740
    %4193 = vmatpush.msra.mxu0 %v3732
    %4194 = vmatpush.msra.mxu0 %v3724
    %4195 = vmatpush.msra.mxu0 %v3716
    %4196 = vmatpush.msra.mxu0 %v3708
    %4197 = vmatpush.msra.mxu0 %v3700
    %4198 = vmatpush.msra.mxu0 %v3692
    %4199 = vmatpush.msra.mxu0 %v3684
    %4200 = vmatpush.msra.mxu0 %v3676
    %4201 = vmatmul.f32.gmra.mxu0 %v3667
    %v4202 = vpop.f32.mrf.mxu0
    %v4203 = vadd.f32 %v3935, %v4202
    %4204 = vdwg.mxu0
    %4205 = vmatpush.msra.mxu0 %v3924
    %4206 = vmatpush.msra.mxu0 %v3916
    %4207 = vmatpush.msra.mxu0 %v3908
    %4208 = vmatpush.msra.mxu0 %v3900
    %4209 = vmatpush.msra.mxu0 %v3892
    %4210 = vmatpush.msra.mxu0 %v3884
    %4211 = vmatpush.msra.mxu0 %v3876
    %4212 = vmatpush.msra.mxu0 %v3868
    %4213 = vmatpush.msra.mxu0 %v3860
    %4214 = vmatpush.msra.mxu0 %v3852
    %4215 = vmatpush.msra.mxu0 %v3844
    %4216 = vmatpush.msra.mxu0 %v3836
    %4217 = vmatpush.msra.mxu0 %v3828
    %4218 = vmatpush.msra.mxu0 %v3820
    %4219 = vmatpush.msra.mxu0 %v3812
    %4220 = vmatpush.msra.mxu0 %v3804
    %4221 = vmatmul.f32.gmra.mxu0 %v3668
    %v4222 = vpop.f32.mrf.mxu0
    %v4223 = vadd.f32 %v4203, %v4222
    %4224 = vdwg.mxu0
    %4225 = vmatpush.msra.mxu0 %v3797
    %4226 = vmatpush.msra.mxu0 %v3789
    %4227 = vmatpush.msra.mxu0 %v3781
    %4228 = vmatpush.msra.mxu0 %v3773
    %4229 = vmatpush.msra.mxu0 %v3765
    %4230 = vmatpush.msra.mxu0 %v3757
    %4231 = vmatpush.msra.mxu0 %v3749
    %4232 = vmatpush.msra.mxu0 %v3741
    %4233 = vmatpush.msra.mxu0 %v3733
    %4234 = vmatpush.msra.mxu0 %v3725
    %4235 = vmatpush.msra.mxu0 %v3717
    %4236 = vmatpush.msra.mxu0 %v3709
    %4237 = vmatpush.msra.mxu0 %v3701
    %4238 = vmatpush.msra.mxu0 %v3693
    %4239 = vmatpush.msra.mxu0 %v3685
    %4240 = vmatpush.msra.mxu0 %v3677
    %4241 = vmatmul.f32.gmra.mxu0 %v3667
    %v4242 = vpop.f32.mrf.mxu0
    %v4243 = vadd.f32 %v3936, %v4242
    %4244 = vdwg.mxu0
    %4245 = vmatpush.msra.mxu0 %v3925
    %4246 = vmatpush.msra.mxu0 %v3917
    %4247 = vmatpush.msra.mxu0 %v3909
    %4248 = vmatpush.msra.mxu0 %v3901
    %4249 = vmatpush.msra.mxu0 %v3893
    %4250 = vmatpush.msra.mxu0 %v3885
    %4251 = vmatpush.msra.mxu0 %v3877
    %4252 = vmatpush.msra.mxu0 %v3869
    %4253 = vmatpush.msra.mxu0 %v3861
    %4254 = vmatpush.msra.mxu0 %v3853
    %4255 = vmatpush.msra.mxu0 %v3845
    %4256 = vmatpush.msra.mxu0 %v3837
    %4257 = vmatpush.msra.mxu0 %v3829
    %4258 = vmatpush.msra.mxu0 %v3821
    %4259 = vmatpush.msra.mxu0 %v3813
    %4260 = vmatpush.msra.mxu0 %v3805
    %4261 = vmatmul.f32.gmra.mxu0 %v3668
    %v4262 = vpop.f32.mrf.mxu0
    %v4263 = vadd.f32 %v4243, %v4262
    %4264 = vdwg.mxu0
    %vm4265 = vcmp.gt.f32.partialorder %v3983, 20.0
    %vm4266 = vcmp.gt.f32.partialorder %v4023, 20.0
    %vm4267 = vcmp.gt.f32.partialorder %v4063, 20.0
    %vm4268 = vcmp.gt.f32.partialorder %v4103, 20.0
    %vm4269 = vcmp.gt.f32.partialorder %v4143, 20.0
    %vm4270 = vcmp.gt.f32.partialorder %v4183, 20.0
    %vm4271 = vcmp.gt.f32.partialorder %v4223, 20.0
    %vm4272 = vcmp.gt.f32.partialorder %v4263, 20.0
    %v4273 = vmin.f32 %v3983, 20.0
    %v4274 = vmin.f32 %v4023, 20.0
    %v4275 = vmin.f32 %v4063, 20.0
    %v4276 = vmin.f32 %v4103, 20.0
    %v4277 = vmin.f32 %v4143, 20.0
    %v4278 = vmin.f32 %v4183, 20.0
    %v4279 = vmin.f32 %v4223, 20.0
    %v4280 = vmin.f32 %v4263, 20.0
    %v4281 = vmul.f32 %v4273, 1.442695
    %v4282 = vpow.pop %v4281
    %v4283 = vmul.f32 %v4274, 1.442695
    %v4284 = vpow.pop %v4283
    %v4285 = vmul.f32 %v4275, 1.442695
    %v4286 = vpow.pop %v4285
    %v4287 = vmul.f32 %v4276, 1.442695
    %v4288 = vpow.pop %v4287
    %v4289 = vmul.f32 %v4277, 1.442695
    %v4290 = vpow.pop %v4289
    %v4291 = vmul.f32 %v4278, 1.442695
    %v4292 = vpow.pop %v4291
    %v4293 = vmul.f32 %v4279, 1.442695
    %v4294 = vpow.pop %v4293
    %v4295 = vmul.f32 %v4280, 1.442695
    %v4296 = vpow.pop %v4295
    %v4297 = vadd.f32 %v4282, 1.0
    %v4298 = vlog2.pop %v4297
    %v4299 = vmul.f32 %v4298, 0.6931472
    %v4300 = vmul.f32 -0.5, %v4282
    %v4301 = vadd.f32 %v4300, 1.0
    %v4302 = vmul.f32 %v4301, %v4282
    %v4303 = vand.u32 2147483647, %v4282
    %vm4304 = vcmp.lt.f32.partialorder %v4303, 0.0004427343
    %v4305 = vsel %vm4304, %v4302, %v4299
    %v4306 = vadd.f32 %v4284, 1.0
    %v4307 = vlog2.pop %v4306
    %v4308 = vmul.f32 %v4307, 0.6931472
    %v4309 = vmul.f32 -0.5, %v4284
    %v4310 = vadd.f32 %v4309, 1.0
    %v4311 = vmul.f32 %v4310, %v4284
    %v4312 = vand.u32 2147483647, %v4284
    %vm4313 = vcmp.lt.f32.partialorder %v4312, 0.0004427343
    %v4314 = vsel %vm4313, %v4311, %v4308
    %v4315 = vadd.f32 %v4286, 1.0
    %v4316 = vlog2.pop %v4315
    %v4317 = vmul.f32 %v4316, 0.6931472
    %v4318 = vmul.f32 -0.5, %v4286
    %v4319 = vadd.f32 %v4318, 1.0
    %v4320 = vmul.f32 %v4319, %v4286
    %v4321 = vand.u32 2147483647, %v4286
    %vm4322 = vcmp.lt.f32.partialorder %v4321, 0.0004427343
    %v4323 = vsel %vm4322, %v4320, %v4317
    %v4324 = vadd.f32 %v4288, 1.0
    %v4325 = vlog2.pop %v4324
    %v4326 = vmul.f32 %v4325, 0.6931472
    %v4327 = vmul.f32 -0.5, %v4288
    %v4328 = vadd.f32 %v4327, 1.0
    %v4329 = vmul.f32 %v4328, %v4288
    %v4330 = vand.u32 2147483647, %v4288
    %vm4331 = vcmp.lt.f32.partialorder %v4330, 0.0004427343
    %v4332 = vsel %vm4331, %v4329, %v4326
    %v4333 = vadd.f32 %v4290, 1.0
    %v4334 = vlog2.pop %v4333
    %v4335 = vmul.f32 %v4334, 0.6931472
    %v4336 = vmul.f32 -0.5, %v4290
    %v4337 = vadd.f32 %v4336, 1.0
    %v4338 = vmul.f32 %v4337, %v4290
    %v4339 = vand.u32 2147483647, %v4290
    %vm4340 = vcmp.lt.f32.partialorder %v4339, 0.0004427343
    %v4341 = vsel %vm4340, %v4338, %v4335
    %v4342 = vadd.f32 %v4292, 1.0
    %v4343 = vlog2.pop %v4342
    %v4344 = vmul.f32 %v4343, 0.6931472
    %v4345 = vmul.f32 -0.5, %v4292
    %v4346 = vadd.f32 %v4345, 1.0
    %v4347 = vmul.f32 %v4346, %v4292
    %v4348 = vand.u32 2147483647, %v4292
    %vm4349 = vcmp.lt.f32.partialorder %v4348, 0.0004427343
    %v4350 = vsel %vm4349, %v4347, %v4344
    %v4351 = vadd.f32 %v4294, 1.0
    %v4352 = vlog2.pop %v4351
    %v4353 = vmul.f32 %v4352, 0.6931472
    %v4354 = vmul.f32 -0.5, %v4294
    %v4355 = vadd.f32 %v4354, 1.0
    %v4356 = vmul.f32 %v4355, %v4294
    %v4357 = vand.u32 2147483647, %v4294
    %vm4358 = vcmp.lt.f32.partialorder %v4357, 0.0004427343
    %v4359 = vsel %vm4358, %v4356, %v4353
    %v4360 = vadd.f32 %v4296, 1.0
    %v4361 = vlog2.pop %v4360
    %v4362 = vmul.f32 %v4361, 0.6931472
    %v4363 = vmul.f32 -0.5, %v4296
    %v4364 = vadd.f32 %v4363, 1.0
    %v4365 = vmul.f32 %v4364, %v4296
    %v4366 = vand.u32 2147483647, %v4296
    %vm4367 = vcmp.lt.f32.partialorder %v4366, 0.0004427343
    %v4368 = vsel %vm4367, %v4365, %v4362
    %v4369 = vsel %vm4265, %v3983, %v4305
    %v4370 = vsel %vm4266, %v4023, %v4314
    %v4371 = vsel %vm4267, %v4063, %v4323
    %v4372 = vsel %vm4268, %v4103, %v4332
    %v4373 = vsel %vm4269, %v4143, %v4341
    %v4374 = vsel %vm4270, %v4183, %v4350
    %v4375 = vsel %vm4271, %v4223, %v4359
    %v4376 = vsel %vm4272, %v4263, %v4368
    %v4377 = vtanh.pop %v4369
    %v4378 = vtanh.pop %v4370
    %v4379 = vtanh.pop %v4371
    %v4380 = vtanh.pop %v4372
    %v4381 = vtanh.pop %v4373
    %v4382 = vtanh.pop %v4374
    %v4383 = vtanh.pop %v4375
    %v4384 = vtanh.pop %v4376
    %v4385 = vmul.f32 %v3983, %v4377
    %v4386 = vmul.f32 %v4023, %v4378
    %v4387 = vmul.f32 %v4063, %v4379
    %v4388 = vmul.f32 %v4103, %v4380
    %v4389 = vmul.f32 %v4143, %v4381
    %v4390 = vmul.f32 %v4183, %v4382
    %v4391 = vmul.f32 %v4223, %v4383
    %v4392 = vmul.f32 %v4263, %v4384
    %s4393 = scalar_lea.vmem [#allocation23], 4096
    %v4394 = vld [vmem:[%s4393] sm:$0xff]
    %v4395 = vld [vmem:[%s4393 + $0x8] sm:$0xff]
    %v4396 = vld [vmem:[%s4393 + $0x10] sm:$0xff]
    %v4397 = vld [vmem:[%s4393 + $0x18] sm:$0xff]
    %v4398 = vld [vmem:[%s4393 + $0x20] sm:$0xff]
    %v4399 = vld [vmem:[%s4393 + $0x28] sm:$0xff]
    %v4400 = vld [vmem:[%s4393 + $0x30] sm:$0xff]
    %v4401 = vld [vmem:[%s4393 + $0x38] sm:$0xff]
    %v4402 = vld [vmem:[%s4393 + $0x40] sm:$0xff]
    %v4403 = vld [vmem:[%s4393 + $0x48] sm:$0xff]
    %v4404 = vld [vmem:[%s4393 + $0x50] sm:$0xff]
    %v4405 = vld [vmem:[%s4393 + $0x58] sm:$0xff]
    %v4406 = vld [vmem:[%s4393 + $0x60] sm:$0xff]
    %v4407 = vld [vmem:[%s4393 + $0x68] sm:$0xff]
    %v4408 = vld [vmem:[%s4393 + $0x70] sm:$0xff]
    %v4409 = vld [vmem:[%s4393 + $0x78] sm:$0xff]
    %v4410 = vld [vmem:[%s4393 + $0x80] sm:$0xff]
    %v4411 = vld [vmem:[%s4393 + $0x88] sm:$0xff]
    %v4412 = vld [vmem:[%s4393 + $0x90] sm:$0xff]
    %v4413 = vld [vmem:[%s4393 + $0x98] sm:$0xff]
    %v4414 = vld [vmem:[%s4393 + $0xa0] sm:$0xff]
    %v4415 = vld [vmem:[%s4393 + $0xa8] sm:$0xff]
    %v4416 = vld [vmem:[%s4393 + $0xb0] sm:$0xff]
    %v4417 = vld [vmem:[%s4393 + $0xb8] sm:$0xff]
    %v4418 = vld [vmem:[%s4393 + $0xc0] sm:$0xff]
    %v4419 = vld [vmem:[%s4393 + $0xc8] sm:$0xff]
    %v4420 = vld [vmem:[%s4393 + $0xd0] sm:$0xff]
    %v4421 = vld [vmem:[%s4393 + $0xd8] sm:$0xff]
    %v4422 = vld [vmem:[%s4393 + $0xe0] sm:$0xff]
    %v4423 = vld [vmem:[%s4393 + $0xe8] sm:$0xff]
    %v4424 = vld [vmem:[%s4393 + $0xf0] sm:$0xff]
    %v4425 = vld [vmem:[%s4393 + $0xf8] sm:$0xff]
    %v4426 = vld [vmem:[%s4393 + $0x100] sm:$0xff]
    %v4427 = vld [vmem:[%s4393 + $0x108] sm:$0xff]
    %v4428 = vld [vmem:[%s4393 + $0x110] sm:$0xff]
    %v4429 = vld [vmem:[%s4393 + $0x118] sm:$0xff]
    %v4430 = vld [vmem:[%s4393 + $0x120] sm:$0xff]
    %v4431 = vld [vmem:[%s4393 + $0x128] sm:$0xff]
    %v4432 = vld [vmem:[%s4393 + $0x130] sm:$0xff]
    %v4433 = vld [vmem:[%s4393 + $0x138] sm:$0xff]
    %v4434 = vld [vmem:[%s4393 + $0x140] sm:$0xff]
    %v4435 = vld [vmem:[%s4393 + $0x148] sm:$0xff]
    %v4436 = vld [vmem:[%s4393 + $0x150] sm:$0xff]
    %v4437 = vld [vmem:[%s4393 + $0x158] sm:$0xff]
    %v4438 = vld [vmem:[%s4393 + $0x160] sm:$0xff]
    %v4439 = vld [vmem:[%s4393 + $0x168] sm:$0xff]
    %v4440 = vld [vmem:[%s4393 + $0x170] sm:$0xff]
    %v4441 = vld [vmem:[%s4393 + $0x178] sm:$0xff]
    %v4442 = vld [vmem:[%s4393 + $0x180] sm:$0xff]
    %v4443 = vld [vmem:[%s4393 + $0x188] sm:$0xff]
    %v4444 = vld [vmem:[%s4393 + $0x190] sm:$0xff]
    %v4445 = vld [vmem:[%s4393 + $0x198] sm:$0xff]
    %v4446 = vld [vmem:[%s4393 + $0x1a0] sm:$0xff]
    %v4447 = vld [vmem:[%s4393 + $0x1a8] sm:$0xff]
    %v4448 = vld [vmem:[%s4393 + $0x1b0] sm:$0xff]
    %v4449 = vld [vmem:[%s4393 + $0x1b8] sm:$0xff]
    %v4450 = vld [vmem:[%s4393 + $0x1c0] sm:$0xff]
    %v4451 = vld [vmem:[%s4393 + $0x1c8] sm:$0xff]
    %v4452 = vld [vmem:[%s4393 + $0x1d0] sm:$0xff]
    %v4453 = vld [vmem:[%s4393 + $0x1d8] sm:$0xff]
    %v4454 = vld [vmem:[%s4393 + $0x1e0] sm:$0xff]
    %v4455 = vld [vmem:[%s4393 + $0x1e8] sm:$0xff]
    %v4456 = vld [vmem:[%s4393 + $0x1f0] sm:$0xff]
    %v4457 = vld [vmem:[%s4393 + $0x1f8] sm:$0xff]
    %v4458 = vld [vmem:[%s4393 + $0x200] sm:$0xff]
    %v4459 = vld [vmem:[%s4393 + $0x208] sm:$0xff]
    %v4460 = vld [vmem:[%s4393 + $0x210] sm:$0xff]
    %v4461 = vld [vmem:[%s4393 + $0x218] sm:$0xff]
    %v4462 = vld [vmem:[%s4393 + $0x220] sm:$0xff]
    %v4463 = vld [vmem:[%s4393 + $0x228] sm:$0xff]
    %v4464 = vld [vmem:[%s4393 + $0x230] sm:$0xff]
    %v4465 = vld [vmem:[%s4393 + $0x238] sm:$0xff]
    %v4466 = vld [vmem:[%s4393 + $0x240] sm:$0xff]
    %v4467 = vld [vmem:[%s4393 + $0x248] sm:$0xff]
    %v4468 = vld [vmem:[%s4393 + $0x250] sm:$0xff]
    %v4469 = vld [vmem:[%s4393 + $0x258] sm:$0xff]
    %v4470 = vld [vmem:[%s4393 + $0x260] sm:$0xff]
    %v4471 = vld [vmem:[%s4393 + $0x268] sm:$0xff]
    %v4472 = vld [vmem:[%s4393 + $0x270] sm:$0xff]
    %v4473 = vld [vmem:[%s4393 + $0x278] sm:$0xff]
    %v4474 = vld [vmem:[%s4393 + $0x280] sm:$0xff]
    %v4475 = vld [vmem:[%s4393 + $0x288] sm:$0xff]
    %v4476 = vld [vmem:[%s4393 + $0x290] sm:$0xff]
    %v4477 = vld [vmem:[%s4393 + $0x298] sm:$0xff]
    %v4478 = vld [vmem:[%s4393 + $0x2a0] sm:$0xff]
    %v4479 = vld [vmem:[%s4393 + $0x2a8] sm:$0xff]
    %v4480 = vld [vmem:[%s4393 + $0x2b0] sm:$0xff]
    %v4481 = vld [vmem:[%s4393 + $0x2b8] sm:$0xff]
    %v4482 = vld [vmem:[%s4393 + $0x2c0] sm:$0xff]
    %v4483 = vld [vmem:[%s4393 + $0x2c8] sm:$0xff]
    %v4484 = vld [vmem:[%s4393 + $0x2d0] sm:$0xff]
    %v4485 = vld [vmem:[%s4393 + $0x2d8] sm:$0xff]
    %v4486 = vld [vmem:[%s4393 + $0x2e0] sm:$0xff]
    %v4487 = vld [vmem:[%s4393 + $0x2e8] sm:$0xff]
    %v4488 = vld [vmem:[%s4393 + $0x2f0] sm:$0xff]
    %v4489 = vld [vmem:[%s4393 + $0x2f8] sm:$0xff]
    %v4490 = vld [vmem:[%s4393 + $0x300] sm:$0xff]
    %v4491 = vld [vmem:[%s4393 + $0x308] sm:$0xff]
    %v4492 = vld [vmem:[%s4393 + $0x310] sm:$0xff]
    %v4493 = vld [vmem:[%s4393 + $0x318] sm:$0xff]
    %v4494 = vld [vmem:[%s4393 + $0x320] sm:$0xff]
    %v4495 = vld [vmem:[%s4393 + $0x328] sm:$0xff]
    %v4496 = vld [vmem:[%s4393 + $0x330] sm:$0xff]
    %v4497 = vld [vmem:[%s4393 + $0x338] sm:$0xff]
    %v4498 = vld [vmem:[%s4393 + $0x340] sm:$0xff]
    %v4499 = vld [vmem:[%s4393 + $0x348] sm:$0xff]
    %v4500 = vld [vmem:[%s4393 + $0x350] sm:$0xff]
    %v4501 = vld [vmem:[%s4393 + $0x358] sm:$0xff]
    %v4502 = vld [vmem:[%s4393 + $0x360] sm:$0xff]
    %v4503 = vld [vmem:[%s4393 + $0x368] sm:$0xff]
    %v4504 = vld [vmem:[%s4393 + $0x370] sm:$0xff]
    %v4505 = vld [vmem:[%s4393 + $0x378] sm:$0xff]
    %v4506 = vld [vmem:[%s4393 + $0x380] sm:$0xff]
    %v4507 = vld [vmem:[%s4393 + $0x388] sm:$0xff]
    %v4508 = vld [vmem:[%s4393 + $0x390] sm:$0xff]
    %v4509 = vld [vmem:[%s4393 + $0x398] sm:$0xff]
    %v4510 = vld [vmem:[%s4393 + $0x3a0] sm:$0xff]
    %v4511 = vld [vmem:[%s4393 + $0x3a8] sm:$0xff]
    %v4512 = vld [vmem:[%s4393 + $0x3b0] sm:$0xff]
    %v4513 = vld [vmem:[%s4393 + $0x3b8] sm:$0xff]
    %v4514 = vld [vmem:[%s4393 + $0x3c0] sm:$0xff]
    %v4515 = vld [vmem:[%s4393 + $0x3c8] sm:$0xff]
    %v4516 = vld [vmem:[%s4393 + $0x3d0] sm:$0xff]
    %v4517 = vld [vmem:[%s4393 + $0x3d8] sm:$0xff]
    %v4518 = vld [vmem:[%s4393 + $0x3e0] sm:$0xff]
    %v4519 = vld [vmem:[%s4393 + $0x3e8] sm:$0xff]
    %v4520 = vld [vmem:[%s4393 + $0x3f0] sm:$0xff]
    %v4521 = vld [vmem:[%s4393 + $0x3f8] sm:$0xff]
    %v4522 = vld [vmem:[%s4393 + $0x400] sm:$0xff]
    %v4523 = vld [vmem:[%s4393 + $0x408] sm:$0xff]
    %v4524 = vld [vmem:[%s4393 + $0x410] sm:$0xff]
    %v4525 = vld [vmem:[%s4393 + $0x418] sm:$0xff]
    %v4526 = vld [vmem:[%s4393 + $0x420] sm:$0xff]
    %v4527 = vld [vmem:[%s4393 + $0x428] sm:$0xff]
    %v4528 = vld [vmem:[%s4393 + $0x430] sm:$0xff]
    %v4529 = vld [vmem:[%s4393 + $0x438] sm:$0xff]
    %v4530 = vld [vmem:[%s4393 + $0x440] sm:$0xff]
    %v4531 = vld [vmem:[%s4393 + $0x448] sm:$0xff]
    %v4532 = vld [vmem:[%s4393 + $0x450] sm:$0xff]
    %v4533 = vld [vmem:[%s4393 + $0x458] sm:$0xff]
    %v4534 = vld [vmem:[%s4393 + $0x460] sm:$0xff]
    %v4535 = vld [vmem:[%s4393 + $0x468] sm:$0xff]
    %v4536 = vld [vmem:[%s4393 + $0x470] sm:$0xff]
    %v4537 = vld [vmem:[%s4393 + $0x478] sm:$0xff]
    %v4538 = vld [vmem:[%s4393 + $0x480] sm:$0xff]
    %v4539 = vld [vmem:[%s4393 + $0x488] sm:$0xff]
    %v4540 = vld [vmem:[%s4393 + $0x490] sm:$0xff]
    %v4541 = vld [vmem:[%s4393 + $0x498] sm:$0xff]
    %v4542 = vld [vmem:[%s4393 + $0x4a0] sm:$0xff]
    %v4543 = vld [vmem:[%s4393 + $0x4a8] sm:$0xff]
    %v4544 = vld [vmem:[%s4393 + $0x4b0] sm:$0xff]
    %v4545 = vld [vmem:[%s4393 + $0x4b8] sm:$0xff]
    %v4546 = vld [vmem:[%s4393 + $0x4c0] sm:$0xff]
    %v4547 = vld [vmem:[%s4393 + $0x4c8] sm:$0xff]
    %v4548 = vld [vmem:[%s4393 + $0x4d0] sm:$0xff]
    %v4549 = vld [vmem:[%s4393 + $0x4d8] sm:$0xff]
    %v4550 = vld [vmem:[%s4393 + $0x4e0] sm:$0xff]
    %v4551 = vld [vmem:[%s4393 + $0x4e8] sm:$0xff]
    %v4552 = vld [vmem:[%s4393 + $0x4f0] sm:$0xff]
    %v4553 = vld [vmem:[%s4393 + $0x4f8] sm:$0xff]
    %v4554 = vld [vmem:[%s4393 + $0x500] sm:$0xff]
    %v4555 = vld [vmem:[%s4393 + $0x508] sm:$0xff]
    %v4556 = vld [vmem:[%s4393 + $0x510] sm:$0xff]
    %v4557 = vld [vmem:[%s4393 + $0x518] sm:$0xff]
    %v4558 = vld [vmem:[%s4393 + $0x520] sm:$0xff]
    %v4559 = vld [vmem:[%s4393 + $0x528] sm:$0xff]
    %v4560 = vld [vmem:[%s4393 + $0x530] sm:$0xff]
    %v4561 = vld [vmem:[%s4393 + $0x538] sm:$0xff]
    %v4562 = vld [vmem:[%s4393 + $0x540] sm:$0xff]
    %v4563 = vld [vmem:[%s4393 + $0x548] sm:$0xff]
    %v4564 = vld [vmem:[%s4393 + $0x550] sm:$0xff]
    %v4565 = vld [vmem:[%s4393 + $0x558] sm:$0xff]
    %v4566 = vld [vmem:[%s4393 + $0x560] sm:$0xff]
    %v4567 = vld [vmem:[%s4393 + $0x568] sm:$0xff]
    %v4568 = vld [vmem:[%s4393 + $0x570] sm:$0xff]
    %v4569 = vld [vmem:[%s4393 + $0x578] sm:$0xff]
    %v4570 = vld [vmem:[%s4393 + $0x580] sm:$0xff]
    %v4571 = vld [vmem:[%s4393 + $0x588] sm:$0xff]
    %v4572 = vld [vmem:[%s4393 + $0x590] sm:$0xff]
    %v4573 = vld [vmem:[%s4393 + $0x598] sm:$0xff]
    %v4574 = vld [vmem:[%s4393 + $0x5a0] sm:$0xff]
    %v4575 = vld [vmem:[%s4393 + $0x5a8] sm:$0xff]
    %v4576 = vld [vmem:[%s4393 + $0x5b0] sm:$0xff]
    %v4577 = vld [vmem:[%s4393 + $0x5b8] sm:$0xff]
    %v4578 = vld [vmem:[%s4393 + $0x5c0] sm:$0xff]
    %v4579 = vld [vmem:[%s4393 + $0x5c8] sm:$0xff]
    %v4580 = vld [vmem:[%s4393 + $0x5d0] sm:$0xff]
    %v4581 = vld [vmem:[%s4393 + $0x5d8] sm:$0xff]
    %v4582 = vld [vmem:[%s4393 + $0x5e0] sm:$0xff]
    %v4583 = vld [vmem:[%s4393 + $0x5e8] sm:$0xff]
    %v4584 = vld [vmem:[%s4393 + $0x5f0] sm:$0xff]
    %v4585 = vld [vmem:[%s4393 + $0x5f8] sm:$0xff]
    %v4586 = vld [vmem:[%s4393 + $0x600] sm:$0xff]
    %v4587 = vld [vmem:[%s4393 + $0x608] sm:$0xff]
    %v4588 = vld [vmem:[%s4393 + $0x610] sm:$0xff]
    %v4589 = vld [vmem:[%s4393 + $0x618] sm:$0xff]
    %v4590 = vld [vmem:[%s4393 + $0x620] sm:$0xff]
    %v4591 = vld [vmem:[%s4393 + $0x628] sm:$0xff]
    %v4592 = vld [vmem:[%s4393 + $0x630] sm:$0xff]
    %v4593 = vld [vmem:[%s4393 + $0x638] sm:$0xff]
    %v4594 = vld [vmem:[%s4393 + $0x640] sm:$0xff]
    %v4595 = vld [vmem:[%s4393 + $0x648] sm:$0xff]
    %v4596 = vld [vmem:[%s4393 + $0x650] sm:$0xff]
    %v4597 = vld [vmem:[%s4393 + $0x658] sm:$0xff]
    %v4598 = vld [vmem:[%s4393 + $0x660] sm:$0xff]
    %v4599 = vld [vmem:[%s4393 + $0x668] sm:$0xff]
    %v4600 = vld [vmem:[%s4393 + $0x670] sm:$0xff]
    %v4601 = vld [vmem:[%s4393 + $0x678] sm:$0xff]
    %v4602 = vld [vmem:[%s4393 + $0x680] sm:$0xff]
    %v4603 = vld [vmem:[%s4393 + $0x688] sm:$0xff]
    %v4604 = vld [vmem:[%s4393 + $0x690] sm:$0xff]
    %v4605 = vld [vmem:[%s4393 + $0x698] sm:$0xff]
    %v4606 = vld [vmem:[%s4393 + $0x6a0] sm:$0xff]
    %v4607 = vld [vmem:[%s4393 + $0x6a8] sm:$0xff]
    %v4608 = vld [vmem:[%s4393 + $0x6b0] sm:$0xff]
    %v4609 = vld [vmem:[%s4393 + $0x6b8] sm:$0xff]
    %v4610 = vld [vmem:[%s4393 + $0x6c0] sm:$0xff]
    %v4611 = vld [vmem:[%s4393 + $0x6c8] sm:$0xff]
    %v4612 = vld [vmem:[%s4393 + $0x6d0] sm:$0xff]
    %v4613 = vld [vmem:[%s4393 + $0x6d8] sm:$0xff]
    %v4614 = vld [vmem:[%s4393 + $0x6e0] sm:$0xff]
    %v4615 = vld [vmem:[%s4393 + $0x6e8] sm:$0xff]
    %v4616 = vld [vmem:[%s4393 + $0x6f0] sm:$0xff]
    %v4617 = vld [vmem:[%s4393 + $0x6f8] sm:$0xff]
    %v4618 = vld [vmem:[%s4393 + $0x700] sm:$0xff]
    %v4619 = vld [vmem:[%s4393 + $0x708] sm:$0xff]
    %v4620 = vld [vmem:[%s4393 + $0x710] sm:$0xff]
    %v4621 = vld [vmem:[%s4393 + $0x718] sm:$0xff]
    %v4622 = vld [vmem:[%s4393 + $0x720] sm:$0xff]
    %v4623 = vld [vmem:[%s4393 + $0x728] sm:$0xff]
    %v4624 = vld [vmem:[%s4393 + $0x730] sm:$0xff]
    %v4625 = vld [vmem:[%s4393 + $0x738] sm:$0xff]
    %v4626 = vld [vmem:[%s4393 + $0x740] sm:$0xff]
    %v4627 = vld [vmem:[%s4393 + $0x748] sm:$0xff]
    %v4628 = vld [vmem:[%s4393 + $0x750] sm:$0xff]
    %v4629 = vld [vmem:[%s4393 + $0x758] sm:$0xff]
    %v4630 = vld [vmem:[%s4393 + $0x760] sm:$0xff]
    %v4631 = vld [vmem:[%s4393 + $0x768] sm:$0xff]
    %v4632 = vld [vmem:[%s4393 + $0x770] sm:$0xff]
    %v4633 = vld [vmem:[%s4393 + $0x778] sm:$0xff]
    %v4634 = vld [vmem:[%s4393 + $0x780] sm:$0xff]
    %v4635 = vld [vmem:[%s4393 + $0x788] sm:$0xff]
    %v4636 = vld [vmem:[%s4393 + $0x790] sm:$0xff]
    %v4637 = vld [vmem:[%s4393 + $0x798] sm:$0xff]
    %v4638 = vld [vmem:[%s4393 + $0x7a0] sm:$0xff]
    %v4639 = vld [vmem:[%s4393 + $0x7a8] sm:$0xff]
    %v4640 = vld [vmem:[%s4393 + $0x7b0] sm:$0xff]
    %v4641 = vld [vmem:[%s4393 + $0x7b8] sm:$0xff]
    %v4642 = vld [vmem:[%s4393 + $0x7c0] sm:$0xff]
    %v4643 = vld [vmem:[%s4393 + $0x7c8] sm:$0xff]
    %v4644 = vld [vmem:[%s4393 + $0x7d0] sm:$0xff]
    %v4645 = vld [vmem:[%s4393 + $0x7d8] sm:$0xff]
    %v4646 = vld [vmem:[%s4393 + $0x7e0] sm:$0xff]
    %v4647 = vld [vmem:[%s4393 + $0x7e8] sm:$0xff]
    %v4648 = vld [vmem:[%s4393 + $0x7f0] sm:$0xff]
    %v4649 = vld [vmem:[%s4393 + $0x7f8] sm:$0xff]
    %s4650 = scalar_lea.vmem [#allocation25], 4
    %v4651 = vld [vmem:[%s4650] sm:$0x3]
    %v4653 = vperm.slane %v4651, 0
    %v4654 = vperm.slane %v4651, 1
    %4657 = vmatpush.msra.mxu0 %v4424
    %4658 = vmatpush.msra.mxu0 %v4422
    %4659 = vmatpush.msra.mxu0 %v4420
    %4660 = vmatpush.msra.mxu0 %v4418
    %4661 = vmatpush.msra.mxu0 %v4416
    %4662 = vmatpush.msra.mxu0 %v4414
    %4663 = vmatpush.msra.mxu0 %v4412
    %4664 = vmatpush.msra.mxu0 %v4410
    %4665 = vmatpush.msra.mxu0 %v4408
    %4666 = vmatpush.msra.mxu0 %v4406
    %4667 = vmatpush.msra.mxu0 %v4404
    %4668 = vmatpush.msra.mxu0 %v4402
    %4669 = vmatpush.msra.mxu0 %v4400
    %4670 = vmatpush.msra.mxu0 %v4398
    %4671 = vmatpush.msra.mxu0 %v4396
    %4672 = vmatpush.msra.mxu0 %v4394
    %4673 = vmatmul.f32.gmra.mxu0 %v4385
    %v4674 = vpop.f32.mrf.mxu0
    %v4675 = vadd.f32 %v4653, %v4674
    %4676 = vdwg.mxu0
    %4677 = vmatpush.msra.mxu0 %v4456
    %4678 = vmatpush.msra.mxu0 %v4454
    %4679 = vmatpush.msra.mxu0 %v4452
    %4680 = vmatpush.msra.mxu0 %v4450
    %4681 = vmatpush.msra.mxu0 %v4448
    %4682 = vmatpush.msra.mxu0 %v4446
    %4683 = vmatpush.msra.mxu0 %v4444
    %4684 = vmatpush.msra.mxu0 %v4442
    %4685 = vmatpush.msra.mxu0 %v4440
    %4686 = vmatpush.msra.mxu0 %v4438
    %4687 = vmatpush.msra.mxu0 %v4436
    %4688 = vmatpush.msra.mxu0 %v4434
    %4689 = vmatpush.msra.mxu0 %v4432
    %4690 = vmatpush.msra.mxu0 %v4430
    %4691 = vmatpush.msra.mxu0 %v4428
    %4692 = vmatpush.msra.mxu0 %v4426
    %4693 = vmatmul.f32.gmra.mxu0 %v4386
    %v4694 = vpop.f32.mrf.mxu0
    %v4695 = vadd.f32 %v4675, %v4694
    %4696 = vdwg.mxu0
    %4697 = vmatpush.msra.mxu0 %v4488
    %4698 = vmatpush.msra.mxu0 %v4486
    %4699 = vmatpush.msra.mxu0 %v4484
    %4700 = vmatpush.msra.mxu0 %v4482
    %4701 = vmatpush.msra.mxu0 %v4480
    %4702 = vmatpush.msra.mxu0 %v4478
    %4703 = vmatpush.msra.mxu0 %v4476
    %4704 = vmatpush.msra.mxu0 %v4474
    %4705 = vmatpush.msra.mxu0 %v4472
    %4706 = vmatpush.msra.mxu0 %v4470
    %4707 = vmatpush.msra.mxu0 %v4468
    %4708 = vmatpush.msra.mxu0 %v4466
    %4709 = vmatpush.msra.mxu0 %v4464
    %4710 = vmatpush.msra.mxu0 %v4462
    %4711 = vmatpush.msra.mxu0 %v4460
    %4712 = vmatpush.msra.mxu0 %v4458
    %4713 = vmatmul.f32.gmra.mxu0 %v4387
    %v4714 = vpop.f32.mrf.mxu0
    %v4715 = vadd.f32 %v4695, %v4714
    %4716 = vdwg.mxu0
    %4717 = vmatpush.msra.mxu0 %v4520
    %4718 = vmatpush.msra.mxu0 %v4518
    %4719 = vmatpush.msra.mxu0 %v4516
    %4720 = vmatpush.msra.mxu0 %v4514
    %4721 = vmatpush.msra.mxu0 %v4512
    %4722 = vmatpush.msra.mxu0 %v4510
    %4723 = vmatpush.msra.mxu0 %v4508
    %4724 = vmatpush.msra.mxu0 %v4506
    %4725 = vmatpush.msra.mxu0 %v4504
    %4726 = vmatpush.msra.mxu0 %v4502
    %4727 = vmatpush.msra.mxu0 %v4500
    %4728 = vmatpush.msra.mxu0 %v4498
    %4729 = vmatpush.msra.mxu0 %v4496
    %4730 = vmatpush.msra.mxu0 %v4494
    %4731 = vmatpush.msra.mxu0 %v4492
    %4732 = vmatpush.msra.mxu0 %v4490
    %4733 = vmatmul.f32.gmra.mxu0 %v4388
    %v4734 = vpop.f32.mrf.mxu0
    %v4735 = vadd.f32 %v4715, %v4734
    %4736 = vdwg.mxu0
    %4737 = vmatpush.msra.mxu0 %v4552
    %4738 = vmatpush.msra.mxu0 %v4550
    %4739 = vmatpush.msra.mxu0 %v4548
    %4740 = vmatpush.msra.mxu0 %v4546
    %4741 = vmatpush.msra.mxu0 %v4544
    %4742 = vmatpush.msra.mxu0 %v4542
    %4743 = vmatpush.msra.mxu0 %v4540
    %4744 = vmatpush.msra.mxu0 %v4538
    %4745 = vmatpush.msra.mxu0 %v4536
    %4746 = vmatpush.msra.mxu0 %v4534
    %4747 = vmatpush.msra.mxu0 %v4532
    %4748 = vmatpush.msra.mxu0 %v4530
    %4749 = vmatpush.msra.mxu0 %v4528
    %4750 = vmatpush.msra.mxu0 %v4526
    %4751 = vmatpush.msra.mxu0 %v4524
    %4752 = vmatpush.msra.mxu0 %v4522
    %4753 = vmatmul.f32.gmra.mxu0 %v4389
    %v4754 = vpop.f32.mrf.mxu0
    %v4755 = vadd.f32 %v4735, %v4754
    %4756 = vdwg.mxu0
    %4757 = vmatpush.msra.mxu0 %v4584
    %4758 = vmatpush.msra.mxu0 %v4582
    %4759 = vmatpush.msra.mxu0 %v4580
    %4760 = vmatpush.msra.mxu0 %v4578
    %4761 = vmatpush.msra.mxu0 %v4576
    %4762 = vmatpush.msra.mxu0 %v4574
    %4763 = vmatpush.msra.mxu0 %v4572
    %4764 = vmatpush.msra.mxu0 %v4570
    %4765 = vmatpush.msra.mxu0 %v4568
    %4766 = vmatpush.msra.mxu0 %v4566
    %4767 = vmatpush.msra.mxu0 %v4564
    %4768 = vmatpush.msra.mxu0 %v4562
    %4769 = vmatpush.msra.mxu0 %v4560
    %4770 = vmatpush.msra.mxu0 %v4558
    %4771 = vmatpush.msra.mxu0 %v4556
    %4772 = vmatpush.msra.mxu0 %v4554
    %4773 = vmatmul.f32.gmra.mxu0 %v4390
    %v4774 = vpop.f32.mrf.mxu0
    %v4775 = vadd.f32 %v4755, %v4774
    %4776 = vdwg.mxu0
    %4777 = vmatpush.msra.mxu0 %v4616
    %4778 = vmatpush.msra.mxu0 %v4614
    %4779 = vmatpush.msra.mxu0 %v4612
    %4780 = vmatpush.msra.mxu0 %v4610
    %4781 = vmatpush.msra.mxu0 %v4608
    %4782 = vmatpush.msra.mxu0 %v4606
    %4783 = vmatpush.msra.mxu0 %v4604
    %4784 = vmatpush.msra.mxu0 %v4602
    %4785 = vmatpush.msra.mxu0 %v4600
    %4786 = vmatpush.msra.mxu0 %v4598
    %4787 = vmatpush.msra.mxu0 %v4596
    %4788 = vmatpush.msra.mxu0 %v4594
    %4789 = vmatpush.msra.mxu0 %v4592
    %4790 = vmatpush.msra.mxu0 %v4590
    %4791 = vmatpush.msra.mxu0 %v4588
    %4792 = vmatpush.msra.mxu0 %v4586
    %4793 = vmatmul.f32.gmra.mxu0 %v4391
    %v4794 = vpop.f32.mrf.mxu0
    %v4795 = vadd.f32 %v4775, %v4794
    %4796 = vdwg.mxu0
    %4797 = vmatpush.msra.mxu0 %v4648
    %4798 = vmatpush.msra.mxu0 %v4646
    %4799 = vmatpush.msra.mxu0 %v4644
    %4800 = vmatpush.msra.mxu0 %v4642
    %4801 = vmatpush.msra.mxu0 %v4640
    %4802 = vmatpush.msra.mxu0 %v4638
    %4803 = vmatpush.msra.mxu0 %v4636
    %4804 = vmatpush.msra.mxu0 %v4634
    %4805 = vmatpush.msra.mxu0 %v4632
    %4806 = vmatpush.msra.mxu0 %v4630
    %4807 = vmatpush.msra.mxu0 %v4628
    %4808 = vmatpush.msra.mxu0 %v4626
    %4809 = vmatpush.msra.mxu0 %v4624
    %4810 = vmatpush.msra.mxu0 %v4622
    %4811 = vmatpush.msra.mxu0 %v4620
    %4812 = vmatpush.msra.mxu0 %v4618
    %4813 = vmatmul.f32.gmra.mxu0 %v4392
    %v4814 = vpop.f32.mrf.mxu0
    %v4815 = vadd.f32 %v4795, %v4814
    %4816 = vdwg.mxu0
    %4817 = vmatpush.msra.mxu0 %v4425
    %4818 = vmatpush.msra.mxu0 %v4423
    %4819 = vmatpush.msra.mxu0 %v4421
    %4820 = vmatpush.msra.mxu0 %v4419
    %4821 = vmatpush.msra.mxu0 %v4417
    %4822 = vmatpush.msra.mxu0 %v4415
    %4823 = vmatpush.msra.mxu0 %v4413
    %4824 = vmatpush.msra.mxu0 %v4411
    %4825 = vmatpush.msra.mxu0 %v4409
    %4826 = vmatpush.msra.mxu0 %v4407
    %4827 = vmatpush.msra.mxu0 %v4405
    %4828 = vmatpush.msra.mxu0 %v4403
    %4829 = vmatpush.msra.mxu0 %v4401
    %4830 = vmatpush.msra.mxu0 %v4399
    %4831 = vmatpush.msra.mxu0 %v4397
    %4832 = vmatpush.msra.mxu0 %v4395
    %4833 = vmatmul.f32.gmra.mxu0 %v4385
    %v4834 = vpop.f32.mrf.mxu0
    %v4835 = vadd.f32 %v4654, %v4834
    %4836 = vdwg.mxu0
    %4837 = vmatpush.msra.mxu0 %v4457
    %4838 = vmatpush.msra.mxu0 %v4455
    %4839 = vmatpush.msra.mxu0 %v4453
    %4840 = vmatpush.msra.mxu0 %v4451
    %4841 = vmatpush.msra.mxu0 %v4449
    %4842 = vmatpush.msra.mxu0 %v4447
    %4843 = vmatpush.msra.mxu0 %v4445
    %4844 = vmatpush.msra.mxu0 %v4443
    %4845 = vmatpush.msra.mxu0 %v4441
    %4846 = vmatpush.msra.mxu0 %v4439
    %4847 = vmatpush.msra.mxu0 %v4437
    %4848 = vmatpush.msra.mxu0 %v4435
    %4849 = vmatpush.msra.mxu0 %v4433
    %4850 = vmatpush.msra.mxu0 %v4431
    %4851 = vmatpush.msra.mxu0 %v4429
    %4852 = vmatpush.msra.mxu0 %v4427
    %4853 = vmatmul.f32.gmra.mxu0 %v4386
    %v4854 = vpop.f32.mrf.mxu0
    %v4855 = vadd.f32 %v4835, %v4854
    %4856 = vdwg.mxu0
    %4857 = vmatpush.msra.mxu0 %v4489
    %4858 = vmatpush.msra.mxu0 %v4487
    %4859 = vmatpush.msra.mxu0 %v4485
    %4860 = vmatpush.msra.mxu0 %v4483
    %4861 = vmatpush.msra.mxu0 %v4481
    %4862 = vmatpush.msra.mxu0 %v4479
    %4863 = vmatpush.msra.mxu0 %v4477
    %4864 = vmatpush.msra.mxu0 %v4475
    %4865 = vmatpush.msra.mxu0 %v4473
    %4866 = vmatpush.msra.mxu0 %v4471
    %4867 = vmatpush.msra.mxu0 %v4469
    %4868 = vmatpush.msra.mxu0 %v4467
    %4869 = vmatpush.msra.mxu0 %v4465
    %4870 = vmatpush.msra.mxu0 %v4463
    %4871 = vmatpush.msra.mxu0 %v4461
    %4872 = vmatpush.msra.mxu0 %v4459
    %4873 = vmatmul.f32.gmra.mxu0 %v4387
    %v4874 = vpop.f32.mrf.mxu0
    %v4875 = vadd.f32 %v4855, %v4874
    %4876 = vdwg.mxu0
    %4877 = vmatpush.msra.mxu0 %v4521
    %4878 = vmatpush.msra.mxu0 %v4519
    %4879 = vmatpush.msra.mxu0 %v4517
    %4880 = vmatpush.msra.mxu0 %v4515
    %4881 = vmatpush.msra.mxu0 %v4513
    %4882 = vmatpush.msra.mxu0 %v4511
    %4883 = vmatpush.msra.mxu0 %v4509
    %4884 = vmatpush.msra.mxu0 %v4507
    %4885 = vmatpush.msra.mxu0 %v4505
    %4886 = vmatpush.msra.mxu0 %v4503
    %4887 = vmatpush.msra.mxu0 %v4501
    %4888 = vmatpush.msra.mxu0 %v4499
    %4889 = vmatpush.msra.mxu0 %v4497
    %4890 = vmatpush.msra.mxu0 %v4495
    %4891 = vmatpush.msra.mxu0 %v4493
    %4892 = vmatpush.msra.mxu0 %v4491
    %4893 = vmatmul.f32.gmra.mxu0 %v4388
    %v4894 = vpop.f32.mrf.mxu0
    %v4895 = vadd.f32 %v4875, %v4894
    %4896 = vdwg.mxu0
    %4897 = vmatpush.msra.mxu0 %v4553
    %4898 = vmatpush.msra.mxu0 %v4551
    %4899 = vmatpush.msra.mxu0 %v4549
    %4900 = vmatpush.msra.mxu0 %v4547
    %4901 = vmatpush.msra.mxu0 %v4545
    %4902 = vmatpush.msra.mxu0 %v4543
    %4903 = vmatpush.msra.mxu0 %v4541
    %4904 = vmatpush.msra.mxu0 %v4539
    %4905 = vmatpush.msra.mxu0 %v4537
    %4906 = vmatpush.msra.mxu0 %v4535
    %4907 = vmatpush.msra.mxu0 %v4533
    %4908 = vmatpush.msra.mxu0 %v4531
    %4909 = vmatpush.msra.mxu0 %v4529
    %4910 = vmatpush.msra.mxu0 %v4527
    %4911 = vmatpush.msra.mxu0 %v4525
    %4912 = vmatpush.msra.mxu0 %v4523
    %4913 = vmatmul.f32.gmra.mxu0 %v4389
    %v4914 = vpop.f32.mrf.mxu0
    %v4915 = vadd.f32 %v4895, %v4914
    %4916 = vdwg.mxu0
    %4917 = vmatpush.msra.mxu0 %v4585
    %4918 = vmatpush.msra.mxu0 %v4583
    %4919 = vmatpush.msra.mxu0 %v4581
    %4920 = vmatpush.msra.mxu0 %v4579
    %4921 = vmatpush.msra.mxu0 %v4577
    %4922 = vmatpush.msra.mxu0 %v4575
    %4923 = vmatpush.msra.mxu0 %v4573
    %4924 = vmatpush.msra.mxu0 %v4571
    %4925 = vmatpush.msra.mxu0 %v4569
    %4926 = vmatpush.msra.mxu0 %v4567
    %4927 = vmatpush.msra.mxu0 %v4565
    %4928 = vmatpush.msra.mxu0 %v4563
    %4929 = vmatpush.msra.mxu0 %v4561
    %4930 = vmatpush.msra.mxu0 %v4559
    %4931 = vmatpush.msra.mxu0 %v4557
    %4932 = vmatpush.msra.mxu0 %v4555
    %4933 = vmatmul.f32.gmra.mxu0 %v4390
    %v4934 = vpop.f32.mrf.mxu0
    %v4935 = vadd.f32 %v4915, %v4934
    %4936 = vdwg.mxu0
    %4937 = vmatpush.msra.mxu0 %v4617
    %4938 = vmatpush.msra.mxu0 %v4615
    %4939 = vmatpush.msra.mxu0 %v4613
    %4940 = vmatpush.msra.mxu0 %v4611
    %4941 = vmatpush.msra.mxu0 %v4609
    %4942 = vmatpush.msra.mxu0 %v4607
    %4943 = vmatpush.msra.mxu0 %v4605
    %4944 = vmatpush.msra.mxu0 %v4603
    %4945 = vmatpush.msra.mxu0 %v4601
    %4946 = vmatpush.msra.mxu0 %v4599
    %4947 = vmatpush.msra.mxu0 %v4597
    %4948 = vmatpush.msra.mxu0 %v4595
    %4949 = vmatpush.msra.mxu0 %v4593
    %4950 = vmatpush.msra.mxu0 %v4591
    %4951 = vmatpush.msra.mxu0 %v4589
    %4952 = vmatpush.msra.mxu0 %v4587
    %4953 = vmatmul.f32.gmra.mxu0 %v4391
    %v4954 = vpop.f32.mrf.mxu0
    %v4955 = vadd.f32 %v4935, %v4954
    %4956 = vdwg.mxu0
    %4957 = vmatpush.msra.mxu0 %v4649
    %4958 = vmatpush.msra.mxu0 %v4647
    %4959 = vmatpush.msra.mxu0 %v4645
    %4960 = vmatpush.msra.mxu0 %v4643
    %4961 = vmatpush.msra.mxu0 %v4641
    %4962 = vmatpush.msra.mxu0 %v4639
    %4963 = vmatpush.msra.mxu0 %v4637
    %4964 = vmatpush.msra.mxu0 %v4635
    %4965 = vmatpush.msra.mxu0 %v4633
    %4966 = vmatpush.msra.mxu0 %v4631
    %4967 = vmatpush.msra.mxu0 %v4629
    %4968 = vmatpush.msra.mxu0 %v4627
    %4969 = vmatpush.msra.mxu0 %v4625
    %4970 = vmatpush.msra.mxu0 %v4623
    %4971 = vmatpush.msra.mxu0 %v4621
    %4972 = vmatpush.msra.mxu0 %v4619
    %4973 = vmatmul.f32.gmra.mxu0 %v4392
    %v4974 = vpop.f32.mrf.mxu0
    %v4975 = vadd.f32 %v4955, %v4974
    %4976 = vdwg.mxu0
    %v4977 = vadd.f32 %v3620, %v4815
    %v4978 = vadd.f32 %v3621, %v4975
    %vm4979 = vcmp.gt.f32.partialorder %v4977, 20.0
    %vm4980 = vcmp.gt.f32.partialorder %v4978, 20.0
    %v4981 = vmin.f32 %v4977, 20.0
    %v4982 = vmin.f32 %v4978, 20.0
    %v4983 = vmul.f32 %v4981, 1.442695
    %v4984 = vpow.pop %v4983
    %v4985 = vmul.f32 %v4982, 1.442695
    %v4986 = vpow.pop %v4985
    %v4987 = vadd.f32 %v4984, 1.0
    %v4988 = vlog2.pop %v4987
    %v4989 = vmul.f32 %v4988, 0.6931472
    %v4990 = vmul.f32 -0.5, %v4984
    %v4991 = vadd.f32 %v4990, 1.0
    %v4992 = vmul.f32 %v4991, %v4984
    %v4993 = vand.u32 2147483647, %v4984
    %vm4994 = vcmp.lt.f32.partialorder %v4993, 0.0004427343
    %v4995 = vsel %vm4994, %v4992, %v4989
    %v4996 = vadd.f32 %v4986, 1.0
    %v4997 = vlog2.pop %v4996
    %v4998 = vmul.f32 %v4997, 0.6931472
    %v4999 = vmul.f32 -0.5, %v4986
    %v5000 = vadd.f32 %v4999, 1.0
    %v5001 = vmul.f32 %v5000, %v4986
    %v5002 = vand.u32 2147483647, %v4986
    %vm5003 = vcmp.lt.f32.partialorder %v5002, 0.0004427343
    %v5004 = vsel %vm5003, %v5001, %v4998
    %v5005 = vsel %vm4979, %v4977, %v4995
    %v5006 = vsel %vm4980, %v4978, %v5004
    %v5007 = vtanh.pop %v5005
    %v5008 = vtanh.pop %v5006
    %v5009 = vmul.f32 %v4977, %v5007
    %v5010 = vmul.f32 %v4978, %v5008
    %v5011 = vld [vmem:[#allocation26] sm:$0xff]
    %v5012 = vld [vmem:[#allocation26 + $0x8] sm:$0xff]
    %v5013 = vld [vmem:[#allocation26 + $0x10] sm:$0xff]
    %v5014 = vld [vmem:[#allocation26 + $0x18] sm:$0xff]
    %v5015 = vld [vmem:[#allocation26 + $0x20] sm:$0xff]
    %v5016 = vld [vmem:[#allocation26 + $0x28] sm:$0xff]
    %v5017 = vld [vmem:[#allocation26 + $0x30] sm:$0xff]
    %v5018 = vld [vmem:[#allocation26 + $0x38] sm:$0xff]
    %v5019 = vld [vmem:[#allocation26 + $0x40] sm:$0xff]
    %v5020 = vld [vmem:[#allocation26 + $0x48] sm:$0xff]
    %v5021 = vld [vmem:[#allocation26 + $0x50] sm:$0xff]
    %v5022 = vld [vmem:[#allocation26 + $0x58] sm:$0xff]
    %v5023 = vld [vmem:[#allocation26 + $0x60] sm:$0xff]
    %v5024 = vld [vmem:[#allocation26 + $0x68] sm:$0xff]
    %v5025 = vld [vmem:[#allocation26 + $0x70] sm:$0xff]
    %v5026 = vld [vmem:[#allocation26 + $0x78] sm:$0xff]
    %v5027 = vld [vmem:[#allocation26 + $0x80] sm:$0xff]
    %v5028 = vld [vmem:[#allocation26 + $0x88] sm:$0xff]
    %v5029 = vld [vmem:[#allocation26 + $0x90] sm:$0xff]
    %v5030 = vld [vmem:[#allocation26 + $0x98] sm:$0xff]
    %v5031 = vld [vmem:[#allocation26 + $0xa0] sm:$0xff]
    %v5032 = vld [vmem:[#allocation26 + $0xa8] sm:$0xff]
    %v5033 = vld [vmem:[#allocation26 + $0xb0] sm:$0xff]
    %v5034 = vld [vmem:[#allocation26 + $0xb8] sm:$0xff]
    %v5035 = vld [vmem:[#allocation26 + $0xc0] sm:$0xff]
    %v5036 = vld [vmem:[#allocation26 + $0xc8] sm:$0xff]
    %v5037 = vld [vmem:[#allocation26 + $0xd0] sm:$0xff]
    %v5038 = vld [vmem:[#allocation26 + $0xd8] sm:$0xff]
    %v5039 = vld [vmem:[#allocation26 + $0xe0] sm:$0xff]
    %v5040 = vld [vmem:[#allocation26 + $0xe8] sm:$0xff]
    %v5041 = vld [vmem:[#allocation26 + $0xf0] sm:$0xff]
    %v5042 = vld [vmem:[#allocation26 + $0xf8] sm:$0xff]
    %v5043 = vld [vmem:[#allocation28] sm:$0x1]
    %v5045 = vperm.slane %v5043, 0
    %5047 = vmatpush.msra.mxu0 %v5026
    %5048 = vmatpush.msra.mxu0 %v5025
    %5049 = vmatpush.msra.mxu0 %v5024
    %5050 = vmatpush.msra.mxu0 %v5023
    %5051 = vmatpush.msra.mxu0 %v5022
    %5052 = vmatpush.msra.mxu0 %v5021
    %5053 = vmatpush.msra.mxu0 %v5020
    %5054 = vmatpush.msra.mxu0 %v5019
    %5055 = vmatpush.msra.mxu0 %v5018
    %5056 = vmatpush.msra.mxu0 %v5017
    %5057 = vmatpush.msra.mxu0 %v5016
    %5058 = vmatpush.msra.mxu0 %v5015
    %5059 = vmatpush.msra.mxu0 %v5014
    %5060 = vmatpush.msra.mxu0 %v5013
    %5061 = vmatpush.msra.mxu0 %v5012
    %5062 = vmatpush.msra.mxu0 %v5011
    %5063 = vmatmul.f32.gmra.mxu0 %v5009
    %v5064 = vpop.f32.mrf.mxu0
    %v5065 = vadd.f32 %v5045, %v5064
    %5066 = vdwg.mxu0
    %5067 = vmatpush.msra.mxu0 %v5042
    %5068 = vmatpush.msra.mxu0 %v5041
    %5069 = vmatpush.msra.mxu0 %v5040
    %5070 = vmatpush.msra.mxu0 %v5039
    %5071 = vmatpush.msra.mxu0 %v5038
    %5072 = vmatpush.msra.mxu0 %v5037
    %5073 = vmatpush.msra.mxu0 %v5036
    %5074 = vmatpush.msra.mxu0 %v5035
    %5075 = vmatpush.msra.mxu0 %v5034
    %5076 = vmatpush.msra.mxu0 %v5033
    %5077 = vmatpush.msra.mxu0 %v5032
    %5078 = vmatpush.msra.mxu0 %v5031
    %5079 = vmatpush.msra.mxu0 %v5030
    %5080 = vmatpush.msra.mxu0 %v5029
    %5081 = vmatpush.msra.mxu0 %v5028
    %5082 = vmatpush.msra.mxu0 %v5027
    %5083 = vmatmul.f32.gmra.mxu0 %v5010
    %v5084 = vpop.f32.mrf.mxu0
    %v5085 = vadd.f32 %v5065, %v5084
    %5086 = vdwg.mxu0
    %5087 = vst [vmem:[#allocation29] sm:$0x3] %v5085
    // Predicated region
    $region146: #{idql_diffusion_forward.1} parent=1 // pred_check
      _
    $region147: #{idql_diffusion_forward.1} parent=1 // pred_check_branch
      %5089 = sbr.rel (0) target = $region149
    $region148: #{idql_diffusion_forward.1} parent=1 // pred_region
      %5091 = vsyncadd [#allocation4], 0
      %s5093 = sshll.u32 [#allocation29], 4
      %s5094 = int_to_ptr.vmem [resolvable:$true] %s5093
      %s5095 = sshll.u32 %s19, 4
      %s5096 = int_to_ptr.hbm [resolvable:$true] %s5095
      %5098 = dma.vmem_to_hbm [thread:$0]  %s5094, 32, %s5096, [#allocation4]
    $region149: #{idql_diffusion_forward.1} parent=1 // pred_fallthru
      _
    // Predicated region
    $region150: #{idql_diffusion_forward.1} parent=1 // pred_check
      _
    $region151: #{idql_diffusion_forward.1} parent=1 // pred_check_branch
      %5100 = sbr.rel (0) target = $region153
    $region152: #{idql_diffusion_forward.1} parent=1 // pred_region
      %5102 = dma.done [#allocation4], 32
    $region153: #{idql_diffusion_forward.1} parent=1 // pred_fallthru
      _
    %5103 = vsyncpa [#allocation3], 1
    %5104 = vsyncpa [#allocation6], 1
    %5105 = vsyncpa [#allocation9], 1
    %5106 = vsyncpa [#allocation12], 1
    %5107 = vsyncpa [#allocation15], 1
    %5108 = vsyncpa [#allocation18], 1
    %5109 = vsyncpa [#allocation21], 1
    %5110 = vsyncpa [#allocation24], 1
    %5111 = vsyncpa [#allocation27], 1
    %5112 = vsyncpa [#allocation4], 1

</llo_original>
